<compile_context>
chip_gen: v7x
topology: tpu7x:2x2x1
jax: 0.10.0
libtpu: 0.0.40
codegen_flags: <defaults>
</compile_context>

<pallas_src>
import functools
import jax
import jax.numpy as jnp
from jax.experimental import pallas as pl
from jax.experimental.pallas import tpu as pltpu


# ------------------------- packed-parameter indexing -------------------------

# singles stack: remaining (d_model -> d_model) linears, transposed to (din, dout)
(S_SA_OUT, S_GCX_Q, S_GCX_O, S_GSX_O, S_GATE_LIN,
 S_CA_QC, S_CA_KP, S_CA_QSINE, S_CA_OUT) = range(9)
N_SGL = 9

# LayerNorm parameter stack rows
(LN_G1, LN_B1, LN_GG, LN_BG, LN_G2, LN_B2, LN_G3, LN_B3) = range(8)
N_LN = 8


# ------------------------------ fused kernel ---------------------------------

def _decoder_layer_kernel(tgt_ref, mem_ref, pos_ref, qpos_ref, qsine_ref, txt_ref,
                          w_tgt0, b_tgt0, w_qpos, b_qpos, w_txt, b_txt,
                          w_tgt2, b_tgt2, w_mem, b_mem, w_sgl, b_sgl, ln_ref,
                          w_ff1, b_ff1, w_ff2, b_ff2, o_ref,
                          *, nhead, d_model, eps):
    D = d_model
    hd = D // nhead
    f32, bf16 = jnp.float32, jnp.bfloat16

    def mm(x, w, b):
        # bf16 MXU operands, f32 accumulation, f32 bias add on the VPU.
        return jnp.dot(x.astype(bf16), w, preferred_element_type=f32) + b

    def sgl(x, i):                          # single (D -> D) linear from the stack
        return mm(x, w_sgl[i], b_sgl[i])

    def layer_norm(x, gi, bi):
        mu = jnp.mean(x, axis=-1, keepdims=True)
        xc = x - mu
        var = jnp.mean(xc * xc, axis=-1, keepdims=True)
        return xc * jax.lax.rsqrt(var + eps) * ln_ref[gi] + ln_ref[bi]

    def softmax_rows(s):
        m = jnp.max(s, axis=-1, keepdims=True)
        p = jnp.exp(s - m)
        return p * pl.reciprocal(jnp.sum(p, axis=-1, keepdims=True), approx=True)

    def attention(q_parts, k_parts, v, nh, scale, w_out, b_out):
        """out_proj(MHA(q, k, v)) for ONE batch element.

        q_parts/k_parts: lists of (Lq, Dk)/(Lk, Dk) f32 arrays.  The effective
        per-head query/key is the concatenation of per-part head slices
        (conditional-DETR content|positional layout); the concatenated contraction
        decomposes into a sum of per-part sliced dots, so no masking or lane
        concat is needed.  The head concat of outputs is folded into out_proj:
            concat_h(o_h) @ Wo + b == sum_h o_h @ Wo[h*hd_v:(h+1)*hd_v, :] + b.
        """
        Dk = q_parts[0].shape[-1]
        Dv = v.shape[-1]
        hd_qk, hd_v = Dk // nh, Dv // nh
        q_parts = [qp * scale for qp in q_parts]       # scale q (smaller than scores)
        out = None
        for h in range(nh):
            s = None
            for qp, kp in zip(q_parts, k_parts):
                qh = qp[:, h * hd_qk:(h + 1) * hd_qk].astype(bf16)
                kh = kp[:, h * hd_qk:(h + 1) * hd_qk].astype(bf16)
                c = jax.lax.dot_general(qh, kh, (((1,), (1,)), ((), ())),
                                        preferred_element_type=f32)
                s = c if s is None else s + c
            p = softmax_rows(s)
            vh = v[:, h * hd_v:(h + 1) * hd_v].astype(bf16)
            oh = jnp.dot(p.astype(bf16), vh, preferred_element_type=f32)
            proj = jnp.dot(oh.astype(bf16), w_out[h * hd_v:(h + 1) * hd_v, :],
                           preferred_element_type=f32)
            out = proj if out is None else out + proj
        return out + b_out

    tgt = tgt_ref[...]
    qpos = qpos_ref[...]

    # ---- self-attention: fused {qc|kc|v} from tgt and {sa_qp|sa_kp|ca_qp} from qpos
    t0 = mm(tgt, w_tgt0[...], b_tgt0[...])             # (Lq, 3D)
    qp3 = mm(qpos, w_qpos[...], b_qpos[...])           # (Lq, 3D)
    q = t0[:, :D] + qp3[:, :D]
    k = t0[:, D:2 * D] + qp3[:, D:2 * D]
    v = t0[:, 2 * D:]
    ca_qpos = qp3[:, 2 * D:]                           # reused by cross-attn below
    sa = attention([q], [k], v, nhead, float(hd) ** -0.5,
                   w_sgl[S_SA_OUT], b_sgl[S_SA_OUT])
    tgt = layer_norm(tgt + sa, LN_G1, LN_B1)           # dropout1: identity (eval)

    # ---- gating block: two standard single-head MHAs + sigmoid gate
    gq = sgl(tgt, S_GCX_Q)
    gkv = mm(txt_ref[...], w_txt[...], b_txt[...])     # (Ltxt, 2D): k | v
    tgt2 = attention([gq], [gkv[:, :D]], gkv[:, D:], 1, float(D) ** -0.5,
                     w_sgl[S_GCX_O], b_sgl[S_GCX_O])
    gate = pl.reciprocal(1.0 + jnp.exp(-(tgt * tgt2)), approx=True)  # sigmoid on EUP
    tgt2 = tgt + tgt2
    g3 = mm(tgt2, w_tgt2[...], b_tgt2[...])            # (Lq, 3D): q | k | v
    tgt2 = attention([g3[:, :D]], [g3[:, D:2 * D]], g3[:, 2 * D:], 1,
                     float(D) ** -0.5, w_sgl[S_GSX_O], b_sgl[S_GSX_O])
    tgt = layer_norm(jnp.maximum(sgl(gate * tgt2, S_GATE_LIN), 0.0) + tgt,
                     LN_GG, LN_BG)                     # gate_dropout: identity

    # ---- cross-attention: per-head [content | positional] query/key concat
    mkv = mm(mem_ref[...], w_mem[...], b_mem[...])     # (hw, 2D): kc | v
    kpos = sgl(pos_ref[...], S_CA_KP)
    q_ca = sgl(tgt, S_CA_QC) + ca_qpos
    qse = sgl(qsine_ref[...], S_CA_QSINE)
    kk = mkv[:, :D] + kpos
    ca = attention([q_ca, qse], [kk, kpos], mkv[:, D:], nhead,
                   float(2 * hd) ** -0.5, w_sgl[S_CA_OUT], b_sgl[S_CA_OUT])
    tgt = layer_norm(tgt + ca, LN_G2, LN_B2)           # dropout2: identity

    # ---- feed-forward
    h1 = jnp.maximum(mm(tgt, w_ff1[...], b_ff1[...]), 0.0)
    tgt = layer_norm(tgt + mm(h1, w_ff2[...], b_ff2[...]), LN_G3, LN_B3)  # dropout3

    o_ref[...] = tgt


# ------------------------------ forward wrapper -------------------------------

@functools.partial(jax.jit, static_argnums=(7,))
def transformer_decoder_first_layer(packed, tgt, memory, pos, query_pos,
                                    query_sine_embed, src_txt_global, nhead):
    """Fused Pallas forward (eval mode). Sequence tensors are seq-first (L, B, D)."""
    Lq, B, D = tgt.shape
    hw = memory.shape[0]
    n_txt = src_txt_global.shape[0]
    dim_ff = packed[13].shape[1]           # w_ff1 is (D, F)

    # TODO(synk): in a production pipeline keep tensors batch-major end-to-end (or
    # fold this reorder into the BlockSpec index_map) instead of transposing here.
    def bm(x):                              # (L, B, D) -> (B, L, D)
        return jnp.transpose(x.astype(jnp.float32), (1, 0, 2))

    def act_spec(L):
        return pl.BlockSpec((None, L, D), lambda b: (b, 0, 0))

    def full_spec(a):                       # VMEM-resident weight block (constant idx)
        return pl.BlockSpec(a.shape, lambda b: (0,) * a.ndim)

    acts = (bm(tgt), bm(memory), bm(pos), bm(query_pos),
            bm(query_sine_embed), bm(src_txt_global))

    # Advisory cost hint for XLA scheduling around the custom call.
    flops = 2 * B * (Lq * D * (17 * D + 2 * dim_ff)
                     + n_txt * 2 * D * D + hw * 3 * D * D
                     + 4 * Lq * Lq * D + 2 * Lq * n_txt * D + 3 * Lq * hw * D)
    transc = B * (2 * Lq * Lq + Lq * n_txt + Lq * hw + Lq * D)
    bytes_acc = (sum(int(a.size) * 4 for a in acts) + B * Lq * D * 4
                 + sum(int(w.size) * w.dtype.itemsize for w in packed))

    out = pl.pallas_call(
        functools.partial(_decoder_layer_kernel, nhead=nhead, d_model=D, eps=1e-5),
        grid=(B,),
        in_specs=[act_spec(Lq), act_spec(hw), act_spec(hw), act_spec(Lq),
                  act_spec(Lq), act_spec(n_txt)] + [full_spec(w) for w in packed],
        out_specs=pl.BlockSpec((None, Lq, D), lambda b: (b, 0, 0)),
        out_shape=jax.ShapeDtypeStruct((B, Lq, D), jnp.float32),
        compiler_params=pltpu.CompilerParams(dimension_semantics=("parallel",)),
        cost_estimate=pl.CostEstimate(flops=flops, transcendentals=transc,
                                      bytes_accessed=bytes_acc),
    )(*acts, *packed)
    return jnp.transpose(out, (1, 0, 2))


# ------------------------------ parameters ------------------------------------

def init_params(key, d_model, dim_ff):
    """PyTorch-layout parameters: Linear weight (out, in), bias (out,)."""
    keys = iter(jax.random.split(key, 64))

    def lin(dout, din):
        w = jax.random.normal(next(keys), (dout, din), jnp.float32) * 0.05
        b = jax.random.normal(next(keys), (dout,), jnp.float32) * 0.05
        return (w, b)

    def ln(d):
        return (jnp.ones((d,), jnp.float32), jnp.zeros((d,), jnp.float32))

    def std_mha(d):
        in_w = jax.random.normal(next(keys), (3 * d, d), jnp.float32) * 0.05
        in_b = jax.random.normal(next(keys), (3 * d,), jnp.float32) * 0.05
        out_w, out_b = lin(d, d)
        return {"in_w": in_w, "in_b": in_b, "out_w": out_w, "out_b": out_b}

    d = d_model
    return {
        "sa_qcontent_proj": lin(d, d), "sa_qpos_proj": lin(d, d),
        "sa_kcontent_proj": lin(d, d), "sa_kpos_proj": lin(d, d),
        "sa_v_proj": lin(d, d),
        "self_attn_out_proj": lin(d, d),          # custom MHA: out_proj(vdim, vdim)
        "norm1": ln(d),
        "gate_cross_attn": std_mha(d),
        "gate_self_attn": std_mha(d),
        "gate_linear": lin(d, d),
        "gate_norm": ln(d),
        "ca_qcontent_proj": lin(d, d), "ca_qpos_proj": lin(d, d),
        "ca_kcontent_proj": lin(d, d), "ca_kpos_proj": lin(d, d),
        "ca_v_proj": lin(d, d), "ca_qpos_sine_proj": lin(d, d),
        "cross_attn_out_proj": lin(d, d),         # custom MHA (embed 2d, vdim d)
        "linear1": lin(dim_ff, d),
        "linear2": lin(d, dim_ff),
        "norm2": ln(d),
        "norm3": ln(d),
    }


def pack_params(p, d_model):
    """One-time packing (outside the hot path): transpose to (din, dout), fuse
    same-input linears along dout, cast matmul weights to bf16, keep biases and
    LayerNorm parameters in f32."""
    D = d_model
    f32, bf16 = jnp.float32, jnp.bfloat16

    def wt(w):                                      # (out, in) -> (in, out)
        return jnp.asarray(w, f32).T

    def wcat(*ws):                                  # fuse along dout, bf16
        return jnp.concatenate([wt(w) for w in ws], axis=1).astype(bf16)

    def bcat(*bs):                                  # fused bias row, f32
        return jnp.concatenate([jnp.asarray(b, f32) for b in bs]).reshape(1, -1)

    gcx, gsx = p["gate_cross_attn"], p["gate_self_attn"]
    gcx_qw, gcx_kw, gcx_vw = gcx["in_w"][:D], gcx["in_w"][D:2 * D], gcx["in_w"][2 * D:]
    gcx_qb, gcx_kb, gcx_vb = gcx["in_b"][:D], gcx["in_b"][D:2 * D], gcx["in_b"][2 * D:]
    gsw, gsb = gsx["in_w"], gsx["in_b"]

    w_tgt0 = wcat(p["sa_qcontent_proj"][0], p["sa_kcontent_proj"][0], p["sa_v_proj"][0])
    b_tgt0 = bcat(p["sa_qcontent_proj"][1], p["sa_kcontent_proj"][1], p["sa_v_proj"][1])
    w_qpos = wcat(p["sa_qpos_proj"][0], p["sa_kpos_proj"][0], p["ca_qpos_proj"][0])
    b_qpos = bcat(p["sa_qpos_proj"][1], p["sa_kpos_proj"][1], p["ca_qpos_proj"][1])
    w_txt = wcat(gcx_kw, gcx_vw)
    b_txt = bcat(gcx_kb, gcx_vb)
    w_tgt2 = wcat(gsw[:D], gsw[D:2 * D], gsw[2 * D:])
    b_tgt2 = bcat(gsb[:D], gsb[D:2 * D], gsb[2 * D:])
    w_mem = wcat(p["ca_kcontent_proj"][0], p["ca_v_proj"][0])
    b_mem = bcat(p["ca_kcontent_proj"][1], p["ca_v_proj"][1])

    singles = [p["self_attn_out_proj"], (gcx_qw, gcx_qb),
               (gcx["out_w"], gcx["out_b"]), (gsx["out_w"], gsx["out_b"]),
               p["gate_linear"], p["ca_qcontent_proj"], p["ca_kpos_proj"],
               p["ca_qpos_sine_proj"], p["cross_attn_out_proj"]]
    w_sgl = jnp.stack([wt(w).astype(bf16) for w, _ in singles])            # (9, D, D)
    b_sgl = jnp.stack([jnp.asarray(b, f32).reshape(1, D) for _, b in singles])

    ln = jnp.stack([jnp.asarray(v, f32).reshape(1, D) for v in
                    [p["norm1"][0], p["norm1"][1], p["gate_norm"][0], p["gate_norm"][1],
                     p["norm2"][0], p["norm2"][1], p["norm3"][0], p["norm3"][1]]])

    w_ff1 = wt(p["linear1"][0]).astype(bf16)                               # (D, F)
    b_ff1 = jnp.asarray(p["linear1"][1], f32).reshape(1, -1)               # (1, F)
    w_ff2 = wt(p["linear2"][0]).astype(bf16)                               # (F, D)
    b_ff2 = jnp.asarray(p["linear2"][1], f32).reshape(1, -1)               # (1, D)

    return (w_tgt0, b_tgt0, w_qpos, b_qpos, w_txt, b_txt, w_tgt2, b_tgt2,
            w_mem, b_mem, w_sgl, b_sgl, ln, w_ff1, b_ff1, w_ff2, b_ff2)


# --------------------------------- main ---------------------------------------

if __name__ == "__main__":
    d_model, nhead, dim_ff = 32, 4, 64
    num_queries, bs, hw, n_txt = 8, 2, 16, 8

    key = jax.random.PRNGKey(0)
    kp, k1, k2, k3, k4, k5, k6 = jax.random.split(key, 7)
    params = init_params(kp, d_model, dim_ff)
    packed = pack_params(params, d_model)   # one-time weight transpose/fuse/bf16 pack

    tgt = jax.random.normal(k1, (num_queries, bs, d_model), jnp.float32)
    memory = jax.random.normal(k2, (hw, bs, d_model), jnp.float32)
    pos = jax.random.normal(k3, (hw, bs, d_model), jnp.float32)
    query_pos = jax.random.normal(k4, (num_queries, bs, d_model), jnp.float32)
    query_sine_embed = jax.random.normal(k5, (num_queries, bs, d_model), jnp.float32)
    src_txt_global = jax.random.normal(k6, (n_txt, bs, d_model), jnp.float32)

    out = transformer_decoder_first_layer(
        packed, tgt, memory, pos, query_pos, query_sine_embed, src_txt_global, nhead)
    out = jax.block_until_ready(out)

    assert out.shape == (num_queries, bs, d_model)
    assert bool(jnp.all(jnp.isfinite(out)))
    print("KERNEL_OK")
</pallas_src>

<mosaic_0001>
module attributes {stable_mosaic.version = 11 : i64} {
  func.func @_decoder_layer_kernel(%arg0: i32, %arg1: memref<1x8x32xf32, #tpu.memory_space<vmem>>, %arg2: memref<1x16x32xf32, #tpu.memory_space<vmem>>, %arg3: memref<1x16x32xf32, #tpu.memory_space<vmem>>, %arg4: memref<1x8x32xf32, #tpu.memory_space<vmem>>, %arg5: memref<1x8x32xf32, #tpu.memory_space<vmem>>, %arg6: memref<1x8x32xf32, #tpu.memory_space<vmem>>, %arg7: memref<32x96xbf16, #tpu.memory_space<vmem>>, %arg8: memref<1x96xf32, #tpu.memory_space<vmem>>, %arg9: memref<32x96xbf16, #tpu.memory_space<vmem>>, %arg10: memref<1x96xf32, #tpu.memory_space<vmem>>, %arg11: memref<32x64xbf16, #tpu.memory_space<vmem>>, %arg12: memref<1x64xf32, #tpu.memory_space<vmem>>, %arg13: memref<32x96xbf16, #tpu.memory_space<vmem>>, %arg14: memref<1x96xf32, #tpu.memory_space<vmem>>, %arg15: memref<32x64xbf16, #tpu.memory_space<vmem>>, %arg16: memref<1x64xf32, #tpu.memory_space<vmem>>, %arg17: memref<9x32x32xbf16, #tpu.memory_space<vmem>>, %arg18: memref<9x1x32xf32, #tpu.memory_space<vmem>>, %arg19: memref<8x1x32xf32, #tpu.memory_space<vmem>>, %arg20: memref<32x64xbf16, #tpu.memory_space<vmem>>, %arg21: memref<1x64xf32, #tpu.memory_space<vmem>>, %arg22: memref<64x32xbf16, #tpu.memory_space<vmem>>, %arg23: memref<1x32xf32, #tpu.memory_space<vmem>>, %arg24: memref<1x8x32xf32, #tpu.memory_space<vmem>>) attributes {dimension_semantics = [#tpu.dimension_semantics<parallel>], iteration_bounds = array<i64: 2>, scalar_prefetch = 0 : i64, scratch_operands = 0 : i64, tpu.core_type = #tpu.core_type<tc>, window_params = [{transform_indices = @transform_0, window_bounds = array<i64: 1, 8, 32>}, {transform_indices = @transform_1, window_bounds = array<i64: 1, 16, 32>}, {transform_indices = @transform_2, window_bounds = array<i64: 1, 16, 32>}, {transform_indices = @transform_3, window_bounds = array<i64: 1, 8, 32>}, {transform_indices = @transform_4, window_bounds = array<i64: 1, 8, 32>}, {transform_indices = @transform_5, window_bounds = array<i64: 1, 8, 32>}, {pipeline_mode = #tpu.pipeline_mode<synchronous>, transform_indices = @transform_6, window_bounds = array<i64: 32, 96>}, {pipeline_mode = #tpu.pipeline_mode<synchronous>, transform_indices = @transform_7, window_bounds = array<i64: 1, 96>}, {pipeline_mode = #tpu.pipeline_mode<synchronous>, transform_indices = @transform_8, window_bounds = array<i64: 32, 96>}, {pipeline_mode = #tpu.pipeline_mode<synchronous>, transform_indices = @transform_9, window_bounds = array<i64: 1, 96>}, {pipeline_mode = #tpu.pipeline_mode<synchronous>, transform_indices = @transform_10, window_bounds = array<i64: 32, 64>}, {pipeline_mode = #tpu.pipeline_mode<synchronous>, transform_indices = @transform_11, window_bounds = array<i64: 1, 64>}, {pipeline_mode = #tpu.pipeline_mode<synchronous>, transform_indices = @transform_12, window_bounds = array<i64: 32, 96>}, {pipeline_mode = #tpu.pipeline_mode<synchronous>, transform_indices = @transform_13, window_bounds = array<i64: 1, 96>}, {pipeline_mode = #tpu.pipeline_mode<synchronous>, transform_indices = @transform_14, window_bounds = array<i64: 32, 64>}, {pipeline_mode = #tpu.pipeline_mode<synchronous>, transform_indices = @transform_15, window_bounds = array<i64: 1, 64>}, {pipeline_mode = #tpu.pipeline_mode<synchronous>, transform_indices = @transform_16, window_bounds = array<i64: 9, 32, 32>}, {pipeline_mode = #tpu.pipeline_mode<synchronous>, transform_indices = @transform_17, window_bounds = array<i64: 9, 1, 32>}, {pipeline_mode = #tpu.pipeline_mode<synchronous>, transform_indices = @transform_18, window_bounds = array<i64: 8, 1, 32>}, {pipeline_mode = #tpu.pipeline_mode<synchronous>, transform_indices = @transform_19, window_bounds = array<i64: 32, 64>}, {pipeline_mode = #tpu.pipeline_mode<synchronous>, transform_indices = @transform_20, window_bounds = array<i64: 1, 64>}, {pipeline_mode = #tpu.pipeline_mode<synchronous>, transform_indices = @transform_21, window_bounds = array<i64: 64, 32>}, {pipeline_mode = #tpu.pipeline_mode<synchronous>, transform_indices = @transform_22, window_bounds = array<i64: 1, 32>}, {transform_indices = @transform_23, window_bounds = array<i64: 1, 8, 32>}]} {
    %c0 = arith.constant 0 : index
    %c0_0 = arith.constant 0 : index
    %c0_1 = arith.constant 0 : index
    %0 = vector.load %arg1[%c0, %c0_0, %c0_1] : memref<1x8x32xf32, #tpu.memory_space<vmem>>, vector<1x8x32xf32>
    %1 = vector.shape_cast %0 : vector<1x8x32xf32> to vector<8x32xf32>
    %c0_2 = arith.constant 0 : index
    %c0_3 = arith.constant 0 : index
    %c0_4 = arith.constant 0 : index
    %2 = vector.load %arg4[%c0_2, %c0_3, %c0_4] : memref<1x8x32xf32, #tpu.memory_space<vmem>>, vector<1x8x32xf32>
    %3 = vector.shape_cast %2 : vector<1x8x32xf32> to vector<8x32xf32>
    %c0_5 = arith.constant 0 : index
    %c0_6 = arith.constant 0 : index
    %4 = vector.load %arg7[%c0_5, %c0_6] : memref<32x96xbf16, #tpu.memory_space<vmem>>, vector<32x96xbf16>
    %c0_7 = arith.constant 0 : index
    %c0_8 = arith.constant 0 : index
    %5 = vector.load %arg8[%c0_7, %c0_8] : memref<1x96xf32, #tpu.memory_space<vmem>>, vector<1x96xf32>
    %6 = arith.truncf %1 : vector<8x32xf32> to vector<8x32xbf16>
    %cst = arith.constant dense<0.000000e+00> : vector<8x96xf32>
    %7 = tpu.matmul %6, %4, %cst {dimension_numbers = #tpu.dot_dimension_numbers<[1], [0], [0], [1], [0, 0, 1, 1], [], []>} : vector<8x32xbf16>, vector<32x96xbf16>, vector<8x96xf32> -> vector<8x96xf32>
    %8 = vector.broadcast %5 : vector<1x96xf32> to vector<8x96xf32>
    %9 = arith.addf %7, %8 : vector<8x96xf32>
    %c0_9 = arith.constant 0 : index
    %c0_10 = arith.constant 0 : index
    %10 = vector.load %arg9[%c0_9, %c0_10] : memref<32x96xbf16, #tpu.memory_space<vmem>>, vector<32x96xbf16>
    %c0_11 = arith.constant 0 : index
    %c0_12 = arith.constant 0 : index
    %11 = vector.load %arg10[%c0_11, %c0_12] : memref<1x96xf32, #tpu.memory_space<vmem>>, vector<1x96xf32>
    %12 = arith.truncf %3 : vector<8x32xf32> to vector<8x32xbf16>
    %cst_13 = arith.constant dense<0.000000e+00> : vector<8x96xf32>
    %13 = tpu.matmul %12, %10, %cst_13 {dimension_numbers = #tpu.dot_dimension_numbers<[1], [0], [0], [1], [0, 0, 1, 1], [], []>} : vector<8x32xbf16>, vector<32x96xbf16>, vector<8x96xf32> -> vector<8x96xf32>
    %14 = vector.broadcast %11 : vector<1x96xf32> to vector<8x96xf32>
    %15 = arith.addf %13, %14 : vector<8x96xf32>
    %16 = vector.extract_strided_slice %9 {offsets = [0, 0], sizes = [8, 32], strides = [1, 1]} : vector<8x96xf32> to vector<8x32xf32>
    %17 = vector.extract_strided_slice %15 {offsets = [0, 0], sizes = [8, 32], strides = [1, 1]} : vector<8x96xf32> to vector<8x32xf32>
    %18 = arith.addf %16, %17 : vector<8x32xf32>
    %19 = vector.extract_strided_slice %9 {offsets = [0, 32], sizes = [8, 32], strides = [1, 1]} : vector<8x96xf32> to vector<8x32xf32>
    %20 = vector.extract_strided_slice %15 {offsets = [0, 32], sizes = [8, 32], strides = [1, 1]} : vector<8x96xf32> to vector<8x32xf32>
    %21 = arith.addf %19, %20 : vector<8x32xf32>
    %22 = vector.extract_strided_slice %9 {offsets = [0, 64], sizes = [8, 32], strides = [1, 1]} : vector<8x96xf32> to vector<8x32xf32>
    %23 = vector.extract_strided_slice %15 {offsets = [0, 64], sizes = [8, 32], strides = [1, 1]} : vector<8x96xf32> to vector<8x32xf32>
    %c0_14 = arith.constant 0 : index
    %c0_15 = arith.constant 0 : index
    %c0_16 = arith.constant 0 : index
    %24 = vector.load %arg17[%c0_14, %c0_15, %c0_16] : memref<9x32x32xbf16, #tpu.memory_space<vmem>>, vector<1x32x32xbf16>
    %25 = vector.shape_cast %24 : vector<1x32x32xbf16> to vector<32x32xbf16>
    %c0_17 = arith.constant 0 : index
    %c0_18 = arith.constant 0 : index
    %c0_19 = arith.constant 0 : index
    %26 = vector.load %arg18[%c0_17, %c0_18, %c0_19] : memref<9x1x32xf32, #tpu.memory_space<vmem>>, vector<1x1x32xf32>
    %27 = vector.shape_cast %26 : vector<1x1x32xf32> to vector<1x32xf32>
    %cst_20 = arith.constant 0.353553385 : f32
    %28 = vector.broadcast %cst_20 : f32 to vector<8x32xf32>
    %29 = arith.mulf %18, %28 : vector<8x32xf32>
    %30 = vector.extract_strided_slice %29 {offsets = [0, 0], sizes = [8, 8], strides = [1, 1]} : vector<8x32xf32> to vector<8x8xf32>
    %31 = arith.truncf %30 : vector<8x8xf32> to vector<8x8xbf16>
    %32 = vector.extract_strided_slice %21 {offsets = [0, 0], sizes = [8, 8], strides = [1, 1]} : vector<8x32xf32> to vector<8x8xf32>
    %33 = arith.truncf %32 : vector<8x8xf32> to vector<8x8xbf16>
    %cst_21 = arith.constant dense<0.000000e+00> : vector<8x8xf32>
    %34 = tpu.matmul %31, %33, %cst_21 {dimension_numbers = #tpu.dot_dimension_numbers<[1], [1], [0], [0], [0, 0, 1, 0], [], []>} : vector<8x8xbf16>, vector<8x8xbf16>, vector<8x8xf32> -> vector<8x8xf32>
    %cst_22 = arith.constant dense<0xFF800000> : vector<8xf32>
    %35 = vector.multi_reduction <maximumf>, %34, %cst_22 [1] : vector<8x8xf32> to vector<8xf32>
    %36 = vector.shape_cast %35 : vector<8xf32> to vector<8x1xf32>
    %37 = vector.broadcast %36 : vector<8x1xf32> to vector<8x8xf32>
    %38 = arith.subf %34, %37 : vector<8x8xf32>
    %39 = math.exp %38 : vector<8x8xf32>
    %cst_23 = arith.constant dense<0.000000e+00> : vector<8xf32>
    %40 = vector.multi_reduction <add>, %39, %cst_23 [1] : vector<8x8xf32> to vector<8xf32>
    %41 = vector.shape_cast %40 : vector<8xf32> to vector<8x1xf32>
    %42 = tpu.reciprocal %41 {approx = true} : vector<8x1xf32> -> vector<8x1xf32>
    %43 = vector.broadcast %42 : vector<8x1xf32> to vector<8x8xf32>
    %44 = arith.mulf %39, %43 : vector<8x8xf32>
    %45 = vector.extract_strided_slice %22 {offsets = [0, 0], sizes = [8, 8], strides = [1, 1]} : vector<8x32xf32> to vector<8x8xf32>
    %46 = arith.truncf %45 : vector<8x8xf32> to vector<8x8xbf16>
    %47 = arith.truncf %44 : vector<8x8xf32> to vector<8x8xbf16>
    %cst_24 = arith.constant dense<0.000000e+00> : vector<8x8xf32>
    %48 = tpu.matmul %47, %46, %cst_24 {dimension_numbers = #tpu.dot_dimension_numbers<[1], [0], [0], [1], [0, 0, 1, 1], [], []>} : vector<8x8xbf16>, vector<8x8xbf16>, vector<8x8xf32> -> vector<8x8xf32>
    %49 = arith.truncf %48 : vector<8x8xf32> to vector<8x8xbf16>
    %50 = vector.extract_strided_slice %25 {offsets = [0, 0], sizes = [8, 32], strides = [1, 1]} : vector<32x32xbf16> to vector<8x32xbf16>
    %cst_25 = arith.constant dense<0.000000e+00> : vector<8x32xf32>
    %51 = tpu.matmul %49, %50, %cst_25 {dimension_numbers = #tpu.dot_dimension_numbers<[1], [0], [0], [1], [0, 0, 1, 1], [], []>} : vector<8x8xbf16>, vector<8x32xbf16>, vector<8x32xf32> -> vector<8x32xf32>
    %52 = vector.extract_strided_slice %29 {offsets = [0, 8], sizes = [8, 8], strides = [1, 1]} : vector<8x32xf32> to vector<8x8xf32>
    %53 = arith.truncf %52 : vector<8x8xf32> to vector<8x8xbf16>
    %54 = vector.extract_strided_slice %21 {offsets = [0, 8], sizes = [8, 8], strides = [1, 1]} : vector<8x32xf32> to vector<8x8xf32>
    %55 = arith.truncf %54 : vector<8x8xf32> to vector<8x8xbf16>
    %cst_26 = arith.constant dense<0.000000e+00> : vector<8x8xf32>
    %56 = tpu.matmul %53, %55, %cst_26 {dimension_numbers = #tpu.dot_dimension_numbers<[1], [1], [0], [0], [0, 0, 1, 0], [], []>} : vector<8x8xbf16>, vector<8x8xbf16>, vector<8x8xf32> -> vector<8x8xf32>
    %cst_27 = arith.constant dense<0xFF800000> : vector<8xf32>
    %57 = vector.multi_reduction <maximumf>, %56, %cst_27 [1] : vector<8x8xf32> to vector<8xf32>
    %58 = vector.shape_cast %57 : vector<8xf32> to vector<8x1xf32>
    %59 = vector.broadcast %58 : vector<8x1xf32> to vector<8x8xf32>
    %60 = arith.subf %56, %59 : vector<8x8xf32>
    %61 = math.exp %60 : vector<8x8xf32>
    %cst_28 = arith.constant dense<0.000000e+00> : vector<8xf32>
    %62 = vector.multi_reduction <add>, %61, %cst_28 [1] : vector<8x8xf32> to vector<8xf32>
    %63 = vector.shape_cast %62 : vector<8xf32> to vector<8x1xf32>
    %64 = tpu.reciprocal %63 {approx = true} : vector<8x1xf32> -> vector<8x1xf32>
    %65 = vector.broadcast %64 : vector<8x1xf32> to vector<8x8xf32>
    %66 = arith.mulf %61, %65 : vector<8x8xf32>
    %67 = vector.extract_strided_slice %22 {offsets = [0, 8], sizes = [8, 8], strides = [1, 1]} : vector<8x32xf32> to vector<8x8xf32>
    %68 = arith.truncf %67 : vector<8x8xf32> to vector<8x8xbf16>
    %69 = arith.truncf %66 : vector<8x8xf32> to vector<8x8xbf16>
    %cst_29 = arith.constant dense<0.000000e+00> : vector<8x8xf32>
    %70 = tpu.matmul %69, %68, %cst_29 {dimension_numbers = #tpu.dot_dimension_numbers<[1], [0], [0], [1], [0, 0, 1, 1], [], []>} : vector<8x8xbf16>, vector<8x8xbf16>, vector<8x8xf32> -> vector<8x8xf32>
    %71 = arith.truncf %70 : vector<8x8xf32> to vector<8x8xbf16>
    %72 = vector.extract_strided_slice %25 {offsets = [8, 0], sizes = [8, 32], strides = [1, 1]} : vector<32x32xbf16> to vector<8x32xbf16>
    %cst_30 = arith.constant dense<0.000000e+00> : vector<8x32xf32>
    %73 = tpu.matmul %71, %72, %cst_30 {dimension_numbers = #tpu.dot_dimension_numbers<[1], [0], [0], [1], [0, 0, 1, 1], [], []>} : vector<8x8xbf16>, vector<8x32xbf16>, vector<8x32xf32> -> vector<8x32xf32>
    %74 = arith.addf %51, %73 : vector<8x32xf32>
    %75 = vector.extract_strided_slice %29 {offsets = [0, 16], sizes = [8, 8], strides = [1, 1]} : vector<8x32xf32> to vector<8x8xf32>
    %76 = arith.truncf %75 : vector<8x8xf32> to vector<8x8xbf16>
    %77 = vector.extract_strided_slice %21 {offsets = [0, 16], sizes = [8, 8], strides = [1, 1]} : vector<8x32xf32> to vector<8x8xf32>
    %78 = arith.truncf %77 : vector<8x8xf32> to vector<8x8xbf16>
    %cst_31 = arith.constant dense<0.000000e+00> : vector<8x8xf32>
    %79 = tpu.matmul %76, %78, %cst_31 {dimension_numbers = #tpu.dot_dimension_numbers<[1], [1], [0], [0], [0, 0, 1, 0], [], []>} : vector<8x8xbf16>, vector<8x8xbf16>, vector<8x8xf32> -> vector<8x8xf32>
    %cst_32 = arith.constant dense<0xFF800000> : vector<8xf32>
    %80 = vector.multi_reduction <maximumf>, %79, %cst_32 [1] : vector<8x8xf32> to vector<8xf32>
    %81 = vector.shape_cast %80 : vector<8xf32> to vector<8x1xf32>
    %82 = vector.broadcast %81 : vector<8x1xf32> to vector<8x8xf32>
    %83 = arith.subf %79, %82 : vector<8x8xf32>
    %84 = math.exp %83 : vector<8x8xf32>
    %cst_33 = arith.constant dense<0.000000e+00> : vector<8xf32>
    %85 = vector.multi_reduction <add>, %84, %cst_33 [1] : vector<8x8xf32> to vector<8xf32>
    %86 = vector.shape_cast %85 : vector<8xf32> to vector<8x1xf32>
    %87 = tpu.reciprocal %86 {approx = true} : vector<8x1xf32> -> vector<8x1xf32>
    %88 = vector.broadcast %87 : vector<8x1xf32> to vector<8x8xf32>
    %89 = arith.mulf %84, %88 : vector<8x8xf32>
    %90 = vector.extract_strided_slice %22 {offsets = [0, 16], sizes = [8, 8], strides = [1, 1]} : vector<8x32xf32> to vector<8x8xf32>
    %91 = arith.truncf %90 : vector<8x8xf32> to vector<8x8xbf16>
    %92 = arith.truncf %89 : vector<8x8xf32> to vector<8x8xbf16>
    %cst_34 = arith.constant dense<0.000000e+00> : vector<8x8xf32>
    %93 = tpu.matmul %92, %91, %cst_34 {dimension_numbers = #tpu.dot_dimension_numbers<[1], [0], [0], [1], [0, 0, 1, 1], [], []>} : vector<8x8xbf16>, vector<8x8xbf16>, vector<8x8xf32> -> vector<8x8xf32>
    %94 = arith.truncf %93 : vector<8x8xf32> to vector<8x8xbf16>
    %95 = vector.extract_strided_slice %25 {offsets = [16, 0], sizes = [8, 32], strides = [1, 1]} : vector<32x32xbf16> to vector<8x32xbf16>
    %cst_35 = arith.constant dense<0.000000e+00> : vector<8x32xf32>
    %96 = tpu.matmul %94, %95, %cst_35 {dimension_numbers = #tpu.dot_dimension_numbers<[1], [0], [0], [1], [0, 0, 1, 1], [], []>} : vector<8x8xbf16>, vector<8x32xbf16>, vector<8x32xf32> -> vector<8x32xf32>
    %97 = arith.addf %74, %96 : vector<8x32xf32>
    %98 = vector.extract_strided_slice %29 {offsets = [0, 24], sizes = [8, 8], strides = [1, 1]} : vector<8x32xf32> to vector<8x8xf32>
    %99 = arith.truncf %98 : vector<8x8xf32> to vector<8x8xbf16>
    %100 = vector.extract_strided_slice %21 {offsets = [0, 24], sizes = [8, 8], strides = [1, 1]} : vector<8x32xf32> to vector<8x8xf32>
    %101 = arith.truncf %100 : vector<8x8xf32> to vector<8x8xbf16>
    %cst_36 = arith.constant dense<0.000000e+00> : vector<8x8xf32>
    %102 = tpu.matmul %99, %101, %cst_36 {dimension_numbers = #tpu.dot_dimension_numbers<[1], [1], [0], [0], [0, 0, 1, 0], [], []>} : vector<8x8xbf16>, vector<8x8xbf16>, vector<8x8xf32> -> vector<8x8xf32>
    %cst_37 = arith.constant dense<0xFF800000> : vector<8xf32>
    %103 = vector.multi_reduction <maximumf>, %102, %cst_37 [1] : vector<8x8xf32> to vector<8xf32>
    %104 = vector.shape_cast %103 : vector<8xf32> to vector<8x1xf32>
    %105 = vector.broadcast %104 : vector<8x1xf32> to vector<8x8xf32>
    %106 = arith.subf %102, %105 : vector<8x8xf32>
    %107 = math.exp %106 : vector<8x8xf32>
    %cst_38 = arith.constant dense<0.000000e+00> : vector<8xf32>
    %108 = vector.multi_reduction <add>, %107, %cst_38 [1] : vector<8x8xf32> to vector<8xf32>
    %109 = vector.shape_cast %108 : vector<8xf32> to vector<8x1xf32>
    %110 = tpu.reciprocal %109 {approx = true} : vector<8x1xf32> -> vector<8x1xf32>
    %111 = vector.broadcast %110 : vector<8x1xf32> to vector<8x8xf32>
    %112 = arith.mulf %107, %111 : vector<8x8xf32>
    %113 = vector.extract_strided_slice %22 {offsets = [0, 24], sizes = [8, 8], strides = [1, 1]} : vector<8x32xf32> to vector<8x8xf32>
    %114 = arith.truncf %113 : vector<8x8xf32> to vector<8x8xbf16>
    %115 = arith.truncf %112 : vector<8x8xf32> to vector<8x8xbf16>
    %cst_39 = arith.constant dense<0.000000e+00> : vector<8x8xf32>
    %116 = tpu.matmul %115, %114, %cst_39 {dimension_numbers = #tpu.dot_dimension_numbers<[1], [0], [0], [1], [0, 0, 1, 1], [], []>} : vector<8x8xbf16>, vector<8x8xbf16>, vector<8x8xf32> -> vector<8x8xf32>
    %117 = arith.truncf %116 : vector<8x8xf32> to vector<8x8xbf16>
    %118 = vector.extract_strided_slice %25 {offsets = [24, 0], sizes = [8, 32], strides = [1, 1]} : vector<32x32xbf16> to vector<8x32xbf16>
    %cst_40 = arith.constant dense<0.000000e+00> : vector<8x32xf32>
    %119 = tpu.matmul %117, %118, %cst_40 {dimension_numbers = #tpu.dot_dimension_numbers<[1], [0], [0], [1], [0, 0, 1, 1], [], []>} : vector<8x8xbf16>, vector<8x32xbf16>, vector<8x32xf32> -> vector<8x32xf32>
    %120 = arith.addf %97, %119 : vector<8x32xf32>
    %121 = vector.broadcast %27 : vector<1x32xf32> to vector<8x32xf32>
    %122 = arith.addf %120, %121 : vector<8x32xf32>
    %123 = arith.addf %1, %122 : vector<8x32xf32>
    %cst_41 = arith.constant dense<0.000000e+00> : vector<8xf32>
    %124 = vector.multi_reduction <add>, %123, %cst_41 [1] : vector<8x32xf32> to vector<8xf32>
    %125 = vector.shape_cast %124 : vector<8xf32> to vector<8x1xf32>
    %cst_42 = arith.constant 3.200000e+01 : f32
    %126 = vector.broadcast %cst_42 : f32 to vector<8x1xf32>
    %127 = arith.divf %125, %126 : vector<8x1xf32>
    %128 = vector.broadcast %127 : vector<8x1xf32> to vector<8x32xf32>
    %129 = arith.subf %123, %128 : vector<8x32xf32>
    %130 = arith.mulf %129, %129 : vector<8x32xf32>
    %cst_43 = arith.constant dense<0.000000e+00> : vector<8xf32>
    %131 = vector.multi_reduction <add>, %130, %cst_43 [1] : vector<8x32xf32> to vector<8xf32>
    %132 = vector.shape_cast %131 : vector<8xf32> to vector<8x1xf32>
    %cst_44 = arith.constant 3.200000e+01 : f32
    %133 = vector.broadcast %cst_44 : f32 to vector<8x1xf32>
    %134 = arith.divf %132, %133 : vector<8x1xf32>
    %cst_45 = arith.constant 9.99999974E-6 : f32
    %135 = vector.broadcast %cst_45 : f32 to vector<8x1xf32>
    %136 = arith.addf %134, %135 : vector<8x1xf32>
    %137 = math.rsqrt %136 : vector<8x1xf32>
    %138 = vector.broadcast %137 : vector<8x1xf32> to vector<8x32xf32>
    %139 = arith.mulf %129, %138 : vector<8x32xf32>
    %c0_46 = arith.constant 0 : index
    %c0_47 = arith.constant 0 : index
    %c0_48 = arith.constant 0 : index
    %140 = vector.load %arg19[%c0_46, %c0_47, %c0_48] : memref<8x1x32xf32, #tpu.memory_space<vmem>>, vector<1x1x32xf32>
    %141 = vector.shape_cast %140 : vector<1x1x32xf32> to vector<1x32xf32>
    %142 = vector.broadcast %141 : vector<1x32xf32> to vector<8x32xf32>
    %143 = arith.mulf %139, %142 : vector<8x32xf32>
    %c1 = arith.constant 1 : index
    %c0_49 = arith.constant 0 : index
    %c0_50 = arith.constant 0 : index
    %144 = vector.load %arg19[%c1, %c0_49, %c0_50] : memref<8x1x32xf32, #tpu.memory_space<vmem>>, vector<1x1x32xf32>
    %145 = vector.shape_cast %144 : vector<1x1x32xf32> to vector<1x32xf32>
    %146 = vector.broadcast %145 : vector<1x32xf32> to vector<8x32xf32>
    %147 = arith.addf %143, %146 : vector<8x32xf32>
    %c1_51 = arith.constant 1 : index
    %c0_52 = arith.constant 0 : index
    %c0_53 = arith.constant 0 : index
    %148 = vector.load %arg17[%c1_51, %c0_52, %c0_53] : memref<9x32x32xbf16, #tpu.memory_space<vmem>>, vector<1x32x32xbf16>
    %149 = vector.shape_cast %148 : vector<1x32x32xbf16> to vector<32x32xbf16>
    %c1_54 = arith.constant 1 : index
    %c0_55 = arith.constant 0 : index
    %c0_56 = arith.constant 0 : index
    %150 = vector.load %arg18[%c1_54, %c0_55, %c0_56] : memref<9x1x32xf32, #tpu.memory_space<vmem>>, vector<1x1x32xf32>
    %151 = vector.shape_cast %150 : vector<1x1x32xf32> to vector<1x32xf32>
    %152 = arith.truncf %147 : vector<8x32xf32> to vector<8x32xbf16>
    %cst_57 = arith.constant dense<0.000000e+00> : vector<8x32xf32>
    %153 = tpu.matmul %152, %149, %cst_57 {dimension_numbers = #tpu.dot_dimension_numbers<[1], [0], [0], [1], [0, 0, 1, 1], [], []>} : vector<8x32xbf16>, vector<32x32xbf16>, vector<8x32xf32> -> vector<8x32xf32>
    %154 = vector.broadcast %151 : vector<1x32xf32> to vector<8x32xf32>
    %155 = arith.addf %153, %154 : vector<8x32xf32>
    %c0_58 = arith.constant 0 : index
    %c0_59 = arith.constant 0 : index
    %c0_60 = arith.constant 0 : index
    %156 = vector.load %arg6[%c0_58, %c0_59, %c0_60] : memref<1x8x32xf32, #tpu.memory_space<vmem>>, vector<1x8x32xf32>
    %157 = vector.shape_cast %156 : vector<1x8x32xf32> to vector<8x32xf32>
    %c0_61 = arith.constant 0 : index
    %c0_62 = arith.constant 0 : index
    %158 = vector.load %arg11[%c0_61, %c0_62] : memref<32x64xbf16, #tpu.memory_space<vmem>>, vector<32x64xbf16>
    %c0_63 = arith.constant 0 : index
    %c0_64 = arith.constant 0 : index
    %159 = vector.load %arg12[%c0_63, %c0_64] : memref<1x64xf32, #tpu.memory_space<vmem>>, vector<1x64xf32>
    %160 = arith.truncf %157 : vector<8x32xf32> to vector<8x32xbf16>
    %cst_65 = arith.constant dense<0.000000e+00> : vector<8x64xf32>
    %161 = tpu.matmul %160, %158, %cst_65 {dimension_numbers = #tpu.dot_dimension_numbers<[1], [0], [0], [1], [0, 0, 1, 1], [], []>} : vector<8x32xbf16>, vector<32x64xbf16>, vector<8x64xf32> -> vector<8x64xf32>
    %162 = vector.broadcast %159 : vector<1x64xf32> to vector<8x64xf32>
    %163 = arith.addf %161, %162 : vector<8x64xf32>
    %164 = vector.extract_strided_slice %163 {offsets = [0, 0], sizes = [8, 32], strides = [1, 1]} : vector<8x64xf32> to vector<8x32xf32>
    %165 = vector.extract_strided_slice %163 {offsets = [0, 32], sizes = [8, 32], strides = [1, 1]} : vector<8x64xf32> to vector<8x32xf32>
    %c2 = arith.constant 2 : index
    %c0_66 = arith.constant 0 : index
    %c0_67 = arith.constant 0 : index
    %166 = vector.load %arg17[%c2, %c0_66, %c0_67] : memref<9x32x32xbf16, #tpu.memory_space<vmem>>, vector<1x32x32xbf16>
    %167 = vector.shape_cast %166 : vector<1x32x32xbf16> to vector<32x32xbf16>
    %c2_68 = arith.constant 2 : index
    %c0_69 = arith.constant 0 : index
    %c0_70 = arith.constant 0 : index
    %168 = vector.load %arg18[%c2_68, %c0_69, %c0_70] : memref<9x1x32xf32, #tpu.memory_space<vmem>>, vector<1x1x32xf32>
    %169 = vector.shape_cast %168 : vector<1x1x32xf32> to vector<1x32xf32>
    %cst_71 = arith.constant 0.176776692 : f32
    %170 = vector.broadcast %cst_71 : f32 to vector<8x32xf32>
    %171 = arith.mulf %155, %170 : vector<8x32xf32>
    %172 = arith.truncf %171 : vector<8x32xf32> to vector<8x32xbf16>
    %173 = arith.truncf %164 : vector<8x32xf32> to vector<8x32xbf16>
    %cst_72 = arith.constant dense<0.000000e+00> : vector<8x8xf32>
    %174 = tpu.matmul %172, %173, %cst_72 {dimension_numbers = #tpu.dot_dimension_numbers<[1], [1], [0], [0], [0, 0, 1, 0], [], []>} : vector<8x32xbf16>, vector<8x32xbf16>, vector<8x8xf32> -> vector<8x8xf32>
    %cst_73 = arith.constant dense<0xFF800000> : vector<8xf32>
    %175 = vector.multi_reduction <maximumf>, %174, %cst_73 [1] : vector<8x8xf32> to vector<8xf32>
    %176 = vector.shape_cast %175 : vector<8xf32> to vector<8x1xf32>
    %177 = vector.broadcast %176 : vector<8x1xf32> to vector<8x8xf32>
    %178 = arith.subf %174, %177 : vector<8x8xf32>
    %179 = math.exp %178 : vector<8x8xf32>
    %cst_74 = arith.constant dense<0.000000e+00> : vector<8xf32>
    %180 = vector.multi_reduction <add>, %179, %cst_74 [1] : vector<8x8xf32> to vector<8xf32>
    %181 = vector.shape_cast %180 : vector<8xf32> to vector<8x1xf32>
    %182 = tpu.reciprocal %181 {approx = true} : vector<8x1xf32> -> vector<8x1xf32>
    %183 = vector.broadcast %182 : vector<8x1xf32> to vector<8x8xf32>
    %184 = arith.mulf %179, %183 : vector<8x8xf32>
    %185 = arith.truncf %165 : vector<8x32xf32> to vector<8x32xbf16>
    %186 = arith.truncf %184 : vector<8x8xf32> to vector<8x8xbf16>
    %cst_75 = arith.constant dense<0.000000e+00> : vector<8x32xf32>
    %187 = tpu.matmul %186, %185, %cst_75 {dimension_numbers = #tpu.dot_dimension_numbers<[1], [0], [0], [1], [0, 0, 1, 1], [], []>} : vector<8x8xbf16>, vector<8x32xbf16>, vector<8x32xf32> -> vector<8x32xf32>
    %188 = arith.truncf %187 : vector<8x32xf32> to vector<8x32xbf16>
    %cst_76 = arith.constant dense<0.000000e+00> : vector<8x32xf32>
    %189 = tpu.matmul %188, %167, %cst_76 {dimension_numbers = #tpu.dot_dimension_numbers<[1], [0], [0], [1], [0, 0, 1, 1], [], []>} : vector<8x32xbf16>, vector<32x32xbf16>, vector<8x32xf32> -> vector<8x32xf32>
    %190 = vector.broadcast %169 : vector<1x32xf32> to vector<8x32xf32>
    %191 = arith.addf %189, %190 : vector<8x32xf32>
    %192 = arith.mulf %147, %191 : vector<8x32xf32>
    %cst_77 = arith.constant 0.000000e+00 : f32
    %193 = vector.broadcast %cst_77 : f32 to vector<8x32xf32>
    %194 = arith.subf %193, %192 : vector<8x32xf32>
    %195 = math.exp %194 : vector<8x32xf32>
    %cst_78 = arith.constant 1.000000e+00 : f32
    %196 = vector.broadcast %cst_78 : f32 to vector<8x32xf32>
    %197 = arith.addf %196, %195 : vector<8x32xf32>
    %198 = tpu.reciprocal %197 {approx = true} : vector<8x32xf32> -> vector<8x32xf32>
    %199 = arith.addf %147, %191 : vector<8x32xf32>
    %c0_79 = arith.constant 0 : index
    %c0_80 = arith.constant 0 : index
    %200 = vector.load %arg13[%c0_79, %c0_80] : memref<32x96xbf16, #tpu.memory_space<vmem>>, vector<32x96xbf16>
    %c0_81 = arith.constant 0 : index
    %c0_82 = arith.constant 0 : index
    %201 = vector.load %arg14[%c0_81, %c0_82] : memref<1x96xf32, #tpu.memory_space<vmem>>, vector<1x96xf32>
    %202 = arith.truncf %199 : vector<8x32xf32> to vector<8x32xbf16>
    %cst_83 = arith.constant dense<0.000000e+00> : vector<8x96xf32>
    %203 = tpu.matmul %202, %200, %cst_83 {dimension_numbers = #tpu.dot_dimension_numbers<[1], [0], [0], [1], [0, 0, 1, 1], [], []>} : vector<8x32xbf16>, vector<32x96xbf16>, vector<8x96xf32> -> vector<8x96xf32>
    %204 = vector.broadcast %201 : vector<1x96xf32> to vector<8x96xf32>
    %205 = arith.addf %203, %204 : vector<8x96xf32>
    %206 = vector.extract_strided_slice %205 {offsets = [0, 0], sizes = [8, 32], strides = [1, 1]} : vector<8x96xf32> to vector<8x32xf32>
    %207 = vector.extract_strided_slice %205 {offsets = [0, 32], sizes = [8, 32], strides = [1, 1]} : vector<8x96xf32> to vector<8x32xf32>
    %208 = vector.extract_strided_slice %205 {offsets = [0, 64], sizes = [8, 32], strides = [1, 1]} : vector<8x96xf32> to vector<8x32xf32>
    %c3 = arith.constant 3 : index
    %c0_84 = arith.constant 0 : index
    %c0_85 = arith.constant 0 : index
    %209 = vector.load %arg17[%c3, %c0_84, %c0_85] : memref<9x32x32xbf16, #tpu.memory_space<vmem>>, vector<1x32x32xbf16>
    %210 = vector.shape_cast %209 : vector<1x32x32xbf16> to vector<32x32xbf16>
    %c3_86 = arith.constant 3 : index
    %c0_87 = arith.constant 0 : index
    %c0_88 = arith.constant 0 : index
    %211 = vector.load %arg18[%c3_86, %c0_87, %c0_88] : memref<9x1x32xf32, #tpu.memory_space<vmem>>, vector<1x1x32xf32>
    %212 = vector.shape_cast %211 : vector<1x1x32xf32> to vector<1x32xf32>
    %cst_89 = arith.constant 0.176776692 : f32
    %213 = vector.broadcast %cst_89 : f32 to vector<8x32xf32>
    %214 = arith.mulf %206, %213 : vector<8x32xf32>
    %215 = arith.truncf %214 : vector<8x32xf32> to vector<8x32xbf16>
    %216 = arith.truncf %207 : vector<8x32xf32> to vector<8x32xbf16>
    %cst_90 = arith.constant dense<0.000000e+00> : vector<8x8xf32>
    %217 = tpu.matmul %215, %216, %cst_90 {dimension_numbers = #tpu.dot_dimension_numbers<[1], [1], [0], [0], [0, 0, 1, 0], [], []>} : vector<8x32xbf16>, vector<8x32xbf16>, vector<8x8xf32> -> vector<8x8xf32>
    %cst_91 = arith.constant dense<0xFF800000> : vector<8xf32>
    %218 = vector.multi_reduction <maximumf>, %217, %cst_91 [1] : vector<8x8xf32> to vector<8xf32>
    %219 = vector.shape_cast %218 : vector<8xf32> to vector<8x1xf32>
    %220 = vector.broadcast %219 : vector<8x1xf32> to vector<8x8xf32>
    %221 = arith.subf %217, %220 : vector<8x8xf32>
    %222 = math.exp %221 : vector<8x8xf32>
    %cst_92 = arith.constant dense<0.000000e+00> : vector<8xf32>
    %223 = vector.multi_reduction <add>, %222, %cst_92 [1] : vector<8x8xf32> to vector<8xf32>
    %224 = vector.shape_cast %223 : vector<8xf32> to vector<8x1xf32>
    %225 = tpu.reciprocal %224 {approx = true} : vector<8x1xf32> -> vector<8x1xf32>
    %226 = vector.broadcast %225 : vector<8x1xf32> to vector<8x8xf32>
    %227 = arith.mulf %222, %226 : vector<8x8xf32>
    %228 = arith.truncf %208 : vector<8x32xf32> to vector<8x32xbf16>
    %229 = arith.truncf %227 : vector<8x8xf32> to vector<8x8xbf16>
    %cst_93 = arith.constant dense<0.000000e+00> : vector<8x32xf32>
    %230 = tpu.matmul %229, %228, %cst_93 {dimension_numbers = #tpu.dot_dimension_numbers<[1], [0], [0], [1], [0, 0, 1, 1], [], []>} : vector<8x8xbf16>, vector<8x32xbf16>, vector<8x32xf32> -> vector<8x32xf32>
    %231 = arith.truncf %230 : vector<8x32xf32> to vector<8x32xbf16>
    %cst_94 = arith.constant dense<0.000000e+00> : vector<8x32xf32>
    %232 = tpu.matmul %231, %210, %cst_94 {dimension_numbers = #tpu.dot_dimension_numbers<[1], [0], [0], [1], [0, 0, 1, 1], [], []>} : vector<8x32xbf16>, vector<32x32xbf16>, vector<8x32xf32> -> vector<8x32xf32>
    %233 = vector.broadcast %212 : vector<1x32xf32> to vector<8x32xf32>
    %234 = arith.addf %232, %233 : vector<8x32xf32>
    %235 = arith.mulf %198, %234 : vector<8x32xf32>
    %c4 = arith.constant 4 : index
    %c0_95 = arith.constant 0 : index
    %c0_96 = arith.constant 0 : index
    %236 = vector.load %arg17[%c4, %c0_95, %c0_96] : memref<9x32x32xbf16, #tpu.memory_space<vmem>>, vector<1x32x32xbf16>
    %237 = vector.shape_cast %236 : vector<1x32x32xbf16> to vector<32x32xbf16>
    %c4_97 = arith.constant 4 : index
    %c0_98 = arith.constant 0 : index
    %c0_99 = arith.constant 0 : index
    %238 = vector.load %arg18[%c4_97, %c0_98, %c0_99] : memref<9x1x32xf32, #tpu.memory_space<vmem>>, vector<1x1x32xf32>
    %239 = vector.shape_cast %238 : vector<1x1x32xf32> to vector<1x32xf32>
    %240 = arith.truncf %235 : vector<8x32xf32> to vector<8x32xbf16>
    %cst_100 = arith.constant dense<0.000000e+00> : vector<8x32xf32>
    %241 = tpu.matmul %240, %237, %cst_100 {dimension_numbers = #tpu.dot_dimension_numbers<[1], [0], [0], [1], [0, 0, 1, 1], [], []>} : vector<8x32xbf16>, vector<32x32xbf16>, vector<8x32xf32> -> vector<8x32xf32>
    %242 = vector.broadcast %239 : vector<1x32xf32> to vector<8x32xf32>
    %243 = arith.addf %241, %242 : vector<8x32xf32>
    %cst_101 = arith.constant 0.000000e+00 : f32
    %244 = vector.broadcast %cst_101 : f32 to vector<8x32xf32>
    %245 = arith.maximumf %243, %244 : vector<8x32xf32>
    %246 = arith.addf %245, %147 : vector<8x32xf32>
    %cst_102 = arith.constant dense<0.000000e+00> : vector<8xf32>
    %247 = vector.multi_reduction <add>, %246, %cst_102 [1] : vector<8x32xf32> to vector<8xf32>
    %248 = vector.shape_cast %247 : vector<8xf32> to vector<8x1xf32>
    %cst_103 = arith.constant 3.200000e+01 : f32
    %249 = vector.broadcast %cst_103 : f32 to vector<8x1xf32>
    %250 = arith.divf %248, %249 : vector<8x1xf32>
    %251 = vector.broadcast %250 : vector<8x1xf32> to vector<8x32xf32>
    %252 = arith.subf %246, %251 : vector<8x32xf32>
    %253 = arith.mulf %252, %252 : vector<8x32xf32>
    %cst_104 = arith.constant dense<0.000000e+00> : vector<8xf32>
    %254 = vector.multi_reduction <add>, %253, %cst_104 [1] : vector<8x32xf32> to vector<8xf32>
    %255 = vector.shape_cast %254 : vector<8xf32> to vector<8x1xf32>
    %cst_105 = arith.constant 3.200000e+01 : f32
    %256 = vector.broadcast %cst_105 : f32 to vector<8x1xf32>
    %257 = arith.divf %255, %256 : vector<8x1xf32>
    %cst_106 = arith.constant 9.99999974E-6 : f32
    %258 = vector.broadcast %cst_106 : f32 to vector<8x1xf32>
    %259 = arith.addf %257, %258 : vector<8x1xf32>
    %260 = math.rsqrt %259 : vector<8x1xf32>
    %261 = vector.broadcast %260 : vector<8x1xf32> to vector<8x32xf32>
    %262 = arith.mulf %252, %261 : vector<8x32xf32>
    %c2_107 = arith.constant 2 : index
    %c0_108 = arith.constant 0 : index
    %c0_109 = arith.constant 0 : index
    %263 = vector.load %arg19[%c2_107, %c0_108, %c0_109] : memref<8x1x32xf32, #tpu.memory_space<vmem>>, vector<1x1x32xf32>
    %264 = vector.shape_cast %263 : vector<1x1x32xf32> to vector<1x32xf32>
    %265 = vector.broadcast %264 : vector<1x32xf32> to vector<8x32xf32>
    %266 = arith.mulf %262, %265 : vector<8x32xf32>
    %c3_110 = arith.constant 3 : index
    %c0_111 = arith.constant 0 : index
    %c0_112 = arith.constant 0 : index
    %267 = vector.load %arg19[%c3_110, %c0_111, %c0_112] : memref<8x1x32xf32, #tpu.memory_space<vmem>>, vector<1x1x32xf32>
    %268 = vector.shape_cast %267 : vector<1x1x32xf32> to vector<1x32xf32>
    %269 = vector.broadcast %268 : vector<1x32xf32> to vector<8x32xf32>
    %270 = arith.addf %266, %269 : vector<8x32xf32>
    %c0_113 = arith.constant 0 : index
    %c0_114 = arith.constant 0 : index
    %c0_115 = arith.constant 0 : index
    %271 = vector.load %arg2[%c0_113, %c0_114, %c0_115] : memref<1x16x32xf32, #tpu.memory_space<vmem>>, vector<1x16x32xf32>
    %272 = vector.shape_cast %271 : vector<1x16x32xf32> to vector<16x32xf32>
    %c0_116 = arith.constant 0 : index
    %c0_117 = arith.constant 0 : index
    %273 = vector.load %arg15[%c0_116, %c0_117] : memref<32x64xbf16, #tpu.memory_space<vmem>>, vector<32x64xbf16>
    %c0_118 = arith.constant 0 : index
    %c0_119 = arith.constant 0 : index
    %274 = vector.load %arg16[%c0_118, %c0_119] : memref<1x64xf32, #tpu.memory_space<vmem>>, vector<1x64xf32>
    %275 = arith.truncf %272 : vector<16x32xf32> to vector<16x32xbf16>
    %cst_120 = arith.constant dense<0.000000e+00> : vector<16x64xf32>
    %276 = tpu.matmul %275, %273, %cst_120 {dimension_numbers = #tpu.dot_dimension_numbers<[1], [0], [0], [1], [0, 0, 1, 1], [], []>} : vector<16x32xbf16>, vector<32x64xbf16>, vector<16x64xf32> -> vector<16x64xf32>
    %277 = vector.broadcast %274 : vector<1x64xf32> to vector<16x64xf32>
    %278 = arith.addf %276, %277 : vector<16x64xf32>
    %c0_121 = arith.constant 0 : index
    %c0_122 = arith.constant 0 : index
    %c0_123 = arith.constant 0 : index
    %279 = vector.load %arg3[%c0_121, %c0_122, %c0_123] : memref<1x16x32xf32, #tpu.memory_space<vmem>>, vector<1x16x32xf32>
    %280 = vector.shape_cast %279 : vector<1x16x32xf32> to vector<16x32xf32>
    %c6 = arith.constant 6 : index
    %c0_124 = arith.constant 0 : index
    %c0_125 = arith.constant 0 : index
    %281 = vector.load %arg17[%c6, %c0_124, %c0_125] : memref<9x32x32xbf16, #tpu.memory_space<vmem>>, vector<1x32x32xbf16>
    %282 = vector.shape_cast %281 : vector<1x32x32xbf16> to vector<32x32xbf16>
    %c6_126 = arith.constant 6 : index
    %c0_127 = arith.constant 0 : index
    %c0_128 = arith.constant 0 : index
    %283 = vector.load %arg18[%c6_126, %c0_127, %c0_128] : memref<9x1x32xf32, #tpu.memory_space<vmem>>, vector<1x1x32xf32>
    %284 = vector.shape_cast %283 : vector<1x1x32xf32> to vector<1x32xf32>
    %285 = arith.truncf %280 : vector<16x32xf32> to vector<16x32xbf16>
    %cst_129 = arith.constant dense<0.000000e+00> : vector<16x32xf32>
    %286 = tpu.matmul %285, %282, %cst_129 {dimension_numbers = #tpu.dot_dimension_numbers<[1], [0], [0], [1], [0, 0, 1, 1], [], []>} : vector<16x32xbf16>, vector<32x32xbf16>, vector<16x32xf32> -> vector<16x32xf32>
    %287 = vector.broadcast %284 : vector<1x32xf32> to vector<16x32xf32>
    %288 = arith.addf %286, %287 : vector<16x32xf32>
    %c5 = arith.constant 5 : index
    %c0_130 = arith.constant 0 : index
    %c0_131 = arith.constant 0 : index
    %289 = vector.load %arg17[%c5, %c0_130, %c0_131] : memref<9x32x32xbf16, #tpu.memory_space<vmem>>, vector<1x32x32xbf16>
    %290 = vector.shape_cast %289 : vector<1x32x32xbf16> to vector<32x32xbf16>
    %c5_132 = arith.constant 5 : index
    %c0_133 = arith.constant 0 : index
    %c0_134 = arith.constant 0 : index
    %291 = vector.load %arg18[%c5_132, %c0_133, %c0_134] : memref<9x1x32xf32, #tpu.memory_space<vmem>>, vector<1x1x32xf32>
    %292 = vector.shape_cast %291 : vector<1x1x32xf32> to vector<1x32xf32>
    %293 = arith.truncf %270 : vector<8x32xf32> to vector<8x32xbf16>
    %cst_135 = arith.constant dense<0.000000e+00> : vector<8x32xf32>
    %294 = tpu.matmul %293, %290, %cst_135 {dimension_numbers = #tpu.dot_dimension_numbers<[1], [0], [0], [1], [0, 0, 1, 1], [], []>} : vector<8x32xbf16>, vector<32x32xbf16>, vector<8x32xf32> -> vector<8x32xf32>
    %295 = vector.broadcast %292 : vector<1x32xf32> to vector<8x32xf32>
    %296 = arith.addf %294, %295 : vector<8x32xf32>
    %297 = arith.addf %296, %23 : vector<8x32xf32>
    %c0_136 = arith.constant 0 : index
    %c0_137 = arith.constant 0 : index
    %c0_138 = arith.constant 0 : index
    %298 = vector.load %arg5[%c0_136, %c0_137, %c0_138] : memref<1x8x32xf32, #tpu.memory_space<vmem>>, vector<1x8x32xf32>
    %299 = vector.shape_cast %298 : vector<1x8x32xf32> to vector<8x32xf32>
    %c7 = arith.constant 7 : index
    %c0_139 = arith.constant 0 : index
    %c0_140 = arith.constant 0 : index
    %300 = vector.load %arg17[%c7, %c0_139, %c0_140] : memref<9x32x32xbf16, #tpu.memory_space<vmem>>, vector<1x32x32xbf16>
    %301 = vector.shape_cast %300 : vector<1x32x32xbf16> to vector<32x32xbf16>
    %c7_141 = arith.constant 7 : index
    %c0_142 = arith.constant 0 : index
    %c0_143 = arith.constant 0 : index
    %302 = vector.load %arg18[%c7_141, %c0_142, %c0_143] : memref<9x1x32xf32, #tpu.memory_space<vmem>>, vector<1x1x32xf32>
    %303 = vector.shape_cast %302 : vector<1x1x32xf32> to vector<1x32xf32>
    %304 = arith.truncf %299 : vector<8x32xf32> to vector<8x32xbf16>
    %cst_144 = arith.constant dense<0.000000e+00> : vector<8x32xf32>
    %305 = tpu.matmul %304, %301, %cst_144 {dimension_numbers = #tpu.dot_dimension_numbers<[1], [0], [0], [1], [0, 0, 1, 1], [], []>} : vector<8x32xbf16>, vector<32x32xbf16>, vector<8x32xf32> -> vector<8x32xf32>
    %306 = vector.broadcast %303 : vector<1x32xf32> to vector<8x32xf32>
    %307 = arith.addf %305, %306 : vector<8x32xf32>
    %308 = vector.extract_strided_slice %278 {offsets = [0, 0], sizes = [16, 32], strides = [1, 1]} : vector<16x64xf32> to vector<16x32xf32>
    %309 = arith.addf %308, %288 : vector<16x32xf32>
    %310 = vector.extract_strided_slice %278 {offsets = [0, 32], sizes = [16, 32], strides = [1, 1]} : vector<16x64xf32> to vector<16x32xf32>
    %c8 = arith.constant 8 : index
    %c0_145 = arith.constant 0 : index
    %c0_146 = arith.constant 0 : index
    %311 = vector.load %arg17[%c8, %c0_145, %c0_146] : memref<9x32x32xbf16, #tpu.memory_space<vmem>>, vector<1x32x32xbf16>
    %312 = vector.shape_cast %311 : vector<1x32x32xbf16> to vector<32x32xbf16>
    %c8_147 = arith.constant 8 : index
    %c0_148 = arith.constant 0 : index
    %c0_149 = arith.constant 0 : index
    %313 = vector.load %arg18[%c8_147, %c0_148, %c0_149] : memref<9x1x32xf32, #tpu.memory_space<vmem>>, vector<1x1x32xf32>
    %314 = vector.shape_cast %313 : vector<1x1x32xf32> to vector<1x32xf32>
    %cst_150 = arith.constant 2.500000e-01 : f32
    %315 = vector.broadcast %cst_150 : f32 to vector<8x32xf32>
    %316 = arith.mulf %297, %315 : vector<8x32xf32>
    %cst_151 = arith.constant 2.500000e-01 : f32
    %317 = vector.broadcast %cst_151 : f32 to vector<8x32xf32>
    %318 = arith.mulf %307, %317 : vector<8x32xf32>
    %319 = vector.extract_strided_slice %316 {offsets = [0, 0], sizes = [8, 8], strides = [1, 1]} : vector<8x32xf32> to vector<8x8xf32>
    %320 = arith.truncf %319 : vector<8x8xf32> to vector<8x8xbf16>
    %321 = vector.extract_strided_slice %309 {offsets = [0, 0], sizes = [16, 8], strides = [1, 1]} : vector<16x32xf32> to vector<16x8xf32>
    %322 = arith.truncf %321 : vector<16x8xf32> to vector<16x8xbf16>
    %cst_152 = arith.constant dense<0.000000e+00> : vector<8x16xf32>
    %323 = tpu.matmul %320, %322, %cst_152 {dimension_numbers = #tpu.dot_dimension_numbers<[1], [1], [0], [0], [0, 0, 1, 0], [], []>} : vector<8x8xbf16>, vector<16x8xbf16>, vector<8x16xf32> -> vector<8x16xf32>
    %324 = vector.extract_strided_slice %318 {offsets = [0, 0], sizes = [8, 8], strides = [1, 1]} : vector<8x32xf32> to vector<8x8xf32>
    %325 = arith.truncf %324 : vector<8x8xf32> to vector<8x8xbf16>
    %326 = vector.extract_strided_slice %288 {offsets = [0, 0], sizes = [16, 8], strides = [1, 1]} : vector<16x32xf32> to vector<16x8xf32>
    %327 = arith.truncf %326 : vector<16x8xf32> to vector<16x8xbf16>
    %cst_153 = arith.constant dense<0.000000e+00> : vector<8x16xf32>
    %328 = tpu.matmul %325, %327, %cst_153 {dimension_numbers = #tpu.dot_dimension_numbers<[1], [1], [0], [0], [0, 0, 1, 0], [], []>} : vector<8x8xbf16>, vector<16x8xbf16>, vector<8x16xf32> -> vector<8x16xf32>
    %329 = arith.addf %323, %328 : vector<8x16xf32>
    %cst_154 = arith.constant dense<0xFF800000> : vector<8xf32>
    %330 = vector.multi_reduction <maximumf>, %329, %cst_154 [1] : vector<8x16xf32> to vector<8xf32>
    %331 = vector.shape_cast %330 : vector<8xf32> to vector<8x1xf32>
    %332 = vector.broadcast %331 : vector<8x1xf32> to vector<8x16xf32>
    %333 = arith.subf %329, %332 : vector<8x16xf32>
    %334 = math.exp %333 : vector<8x16xf32>
    %cst_155 = arith.constant dense<0.000000e+00> : vector<8xf32>
    %335 = vector.multi_reduction <add>, %334, %cst_155 [1] : vector<8x16xf32> to vector<8xf32>
    %336 = vector.shape_cast %335 : vector<8xf32> to vector<8x1xf32>
    %337 = tpu.reciprocal %336 {approx = true} : vector<8x1xf32> -> vector<8x1xf32>
    %338 = vector.broadcast %337 : vector<8x1xf32> to vector<8x16xf32>
    %339 = arith.mulf %334, %338 : vector<8x16xf32>
    %340 = vector.extract_strided_slice %310 {offsets = [0, 0], sizes = [16, 8], strides = [1, 1]} : vector<16x32xf32> to vector<16x8xf32>
    %341 = arith.truncf %340 : vector<16x8xf32> to vector<16x8xbf16>
    %342 = arith.truncf %339 : vector<8x16xf32> to vector<8x16xbf16>
    %cst_156 = arith.constant dense<0.000000e+00> : vector<8x8xf32>
    %343 = tpu.matmul %342, %341, %cst_156 {dimension_numbers = #tpu.dot_dimension_numbers<[1], [0], [0], [1], [0, 0, 1, 1], [], []>} : vector<8x16xbf16>, vector<16x8xbf16>, vector<8x8xf32> -> vector<8x8xf32>
    %344 = arith.truncf %343 : vector<8x8xf32> to vector<8x8xbf16>
    %345 = vector.extract_strided_slice %312 {offsets = [0, 0], sizes = [8, 32], strides = [1, 1]} : vector<32x32xbf16> to vector<8x32xbf16>
    %cst_157 = arith.constant dense<0.000000e+00> : vector<8x32xf32>
    %346 = tpu.matmul %344, %345, %cst_157 {dimension_numbers = #tpu.dot_dimension_numbers<[1], [0], [0], [1], [0, 0, 1, 1], [], []>} : vector<8x8xbf16>, vector<8x32xbf16>, vector<8x32xf32> -> vector<8x32xf32>
    %347 = vector.extract_strided_slice %316 {offsets = [0, 8], sizes = [8, 8], strides = [1, 1]} : vector<8x32xf32> to vector<8x8xf32>
    %348 = arith.truncf %347 : vector<8x8xf32> to vector<8x8xbf16>
    %349 = vector.extract_strided_slice %309 {offsets = [0, 8], sizes = [16, 8], strides = [1, 1]} : vector<16x32xf32> to vector<16x8xf32>
    %350 = arith.truncf %349 : vector<16x8xf32> to vector<16x8xbf16>
    %cst_158 = arith.constant dense<0.000000e+00> : vector<8x16xf32>
    %351 = tpu.matmul %348, %350, %cst_158 {dimension_numbers = #tpu.dot_dimension_numbers<[1], [1], [0], [0], [0, 0, 1, 0], [], []>} : vector<8x8xbf16>, vector<16x8xbf16>, vector<8x16xf32> -> vector<8x16xf32>
    %352 = vector.extract_strided_slice %318 {offsets = [0, 8], sizes = [8, 8], strides = [1, 1]} : vector<8x32xf32> to vector<8x8xf32>
    %353 = arith.truncf %352 : vector<8x8xf32> to vector<8x8xbf16>
    %354 = vector.extract_strided_slice %288 {offsets = [0, 8], sizes = [16, 8], strides = [1, 1]} : vector<16x32xf32> to vector<16x8xf32>
    %355 = arith.truncf %354 : vector<16x8xf32> to vector<16x8xbf16>
    %cst_159 = arith.constant dense<0.000000e+00> : vector<8x16xf32>
    %356 = tpu.matmul %353, %355, %cst_159 {dimension_numbers = #tpu.dot_dimension_numbers<[1], [1], [0], [0], [0, 0, 1, 0], [], []>} : vector<8x8xbf16>, vector<16x8xbf16>, vector<8x16xf32> -> vector<8x16xf32>
    %357 = arith.addf %351, %356 : vector<8x16xf32>
    %cst_160 = arith.constant dense<0xFF800000> : vector<8xf32>
    %358 = vector.multi_reduction <maximumf>, %357, %cst_160 [1] : vector<8x16xf32> to vector<8xf32>
    %359 = vector.shape_cast %358 : vector<8xf32> to vector<8x1xf32>
    %360 = vector.broadcast %359 : vector<8x1xf32> to vector<8x16xf32>
    %361 = arith.subf %357, %360 : vector<8x16xf32>
    %362 = math.exp %361 : vector<8x16xf32>
    %cst_161 = arith.constant dense<0.000000e+00> : vector<8xf32>
    %363 = vector.multi_reduction <add>, %362, %cst_161 [1] : vector<8x16xf32> to vector<8xf32>
    %364 = vector.shape_cast %363 : vector<8xf32> to vector<8x1xf32>
    %365 = tpu.reciprocal %364 {approx = true} : vector<8x1xf32> -> vector<8x1xf32>
    %366 = vector.broadcast %365 : vector<8x1xf32> to vector<8x16xf32>
    %367 = arith.mulf %362, %366 : vector<8x16xf32>
    %368 = vector.extract_strided_slice %310 {offsets = [0, 8], sizes = [16, 8], strides = [1, 1]} : vector<16x32xf32> to vector<16x8xf32>
    %369 = arith.truncf %368 : vector<16x8xf32> to vector<16x8xbf16>
    %370 = arith.truncf %367 : vector<8x16xf32> to vector<8x16xbf16>
    %cst_162 = arith.constant dense<0.000000e+00> : vector<8x8xf32>
    %371 = tpu.matmul %370, %369, %cst_162 {dimension_numbers = #tpu.dot_dimension_numbers<[1], [0], [0], [1], [0, 0, 1, 1], [], []>} : vector<8x16xbf16>, vector<16x8xbf16>, vector<8x8xf32> -> vector<8x8xf32>
    %372 = arith.truncf %371 : vector<8x8xf32> to vector<8x8xbf16>
    %373 = vector.extract_strided_slice %312 {offsets = [8, 0], sizes = [8, 32], strides = [1, 1]} : vector<32x32xbf16> to vector<8x32xbf16>
    %cst_163 = arith.constant dense<0.000000e+00> : vector<8x32xf32>
    %374 = tpu.matmul %372, %373, %cst_163 {dimension_numbers = #tpu.dot_dimension_numbers<[1], [0], [0], [1], [0, 0, 1, 1], [], []>} : vector<8x8xbf16>, vector<8x32xbf16>, vector<8x32xf32> -> vector<8x32xf32>
    %375 = arith.addf %346, %374 : vector<8x32xf32>
    %376 = vector.extract_strided_slice %316 {offsets = [0, 16], sizes = [8, 8], strides = [1, 1]} : vector<8x32xf32> to vector<8x8xf32>
    %377 = arith.truncf %376 : vector<8x8xf32> to vector<8x8xbf16>
    %378 = vector.extract_strided_slice %309 {offsets = [0, 16], sizes = [16, 8], strides = [1, 1]} : vector<16x32xf32> to vector<16x8xf32>
    %379 = arith.truncf %378 : vector<16x8xf32> to vector<16x8xbf16>
    %cst_164 = arith.constant dense<0.000000e+00> : vector<8x16xf32>
    %380 = tpu.matmul %377, %379, %cst_164 {dimension_numbers = #tpu.dot_dimension_numbers<[1], [1], [0], [0], [0, 0, 1, 0], [], []>} : vector<8x8xbf16>, vector<16x8xbf16>, vector<8x16xf32> -> vector<8x16xf32>
    %381 = vector.extract_strided_slice %318 {offsets = [0, 16], sizes = [8, 8], strides = [1, 1]} : vector<8x32xf32> to vector<8x8xf32>
    %382 = arith.truncf %381 : vector<8x8xf32> to vector<8x8xbf16>
    %383 = vector.extract_strided_slice %288 {offsets = [0, 16], sizes = [16, 8], strides = [1, 1]} : vector<16x32xf32> to vector<16x8xf32>
    %384 = arith.truncf %383 : vector<16x8xf32> to vector<16x8xbf16>
    %cst_165 = arith.constant dense<0.000000e+00> : vector<8x16xf32>
    %385 = tpu.matmul %382, %384, %cst_165 {dimension_numbers = #tpu.dot_dimension_numbers<[1], [1], [0], [0], [0, 0, 1, 0], [], []>} : vector<8x8xbf16>, vector<16x8xbf16>, vector<8x16xf32> -> vector<8x16xf32>
    %386 = arith.addf %380, %385 : vector<8x16xf32>
    %cst_166 = arith.constant dense<0xFF800000> : vector<8xf32>
    %387 = vector.multi_reduction <maximumf>, %386, %cst_166 [1] : vector<8x16xf32> to vector<8xf32>
    %388 = vector.shape_cast %387 : vector<8xf32> to vector<8x1xf32>
    %389 = vector.broadcast %388 : vector<8x1xf32> to vector<8x16xf32>
    %390 = arith.subf %386, %389 : vector<8x16xf32>
    %391 = math.exp %390 : vector<8x16xf32>
    %cst_167 = arith.constant dense<0.000000e+00> : vector<8xf32>
    %392 = vector.multi_reduction <add>, %391, %cst_167 [1] : vector<8x16xf32> to vector<8xf32>
    %393 = vector.shape_cast %392 : vector<8xf32> to vector<8x1xf32>
    %394 = tpu.reciprocal %393 {approx = true} : vector<8x1xf32> -> vector<8x1xf32>
    %395 = vector.broadcast %394 : vector<8x1xf32> to vector<8x16xf32>
    %396 = arith.mulf %391, %395 : vector<8x16xf32>
    %397 = vector.extract_strided_slice %310 {offsets = [0, 16], sizes = [16, 8], strides = [1, 1]} : vector<16x32xf32> to vector<16x8xf32>
    %398 = arith.truncf %397 : vector<16x8xf32> to vector<16x8xbf16>
    %399 = arith.truncf %396 : vector<8x16xf32> to vector<8x16xbf16>
    %cst_168 = arith.constant dense<0.000000e+00> : vector<8x8xf32>
    %400 = tpu.matmul %399, %398, %cst_168 {dimension_numbers = #tpu.dot_dimension_numbers<[1], [0], [0], [1], [0, 0, 1, 1], [], []>} : vector<8x16xbf16>, vector<16x8xbf16>, vector<8x8xf32> -> vector<8x8xf32>
    %401 = arith.truncf %400 : vector<8x8xf32> to vector<8x8xbf16>
    %402 = vector.extract_strided_slice %312 {offsets = [16, 0], sizes = [8, 32], strides = [1, 1]} : vector<32x32xbf16> to vector<8x32xbf16>
    %cst_169 = arith.constant dense<0.000000e+00> : vector<8x32xf32>
    %403 = tpu.matmul %401, %402, %cst_169 {dimension_numbers = #tpu.dot_dimension_numbers<[1], [0], [0], [1], [0, 0, 1, 1], [], []>} : vector<8x8xbf16>, vector<8x32xbf16>, vector<8x32xf32> -> vector<8x32xf32>
    %404 = arith.addf %375, %403 : vector<8x32xf32>
    %405 = vector.extract_strided_slice %316 {offsets = [0, 24], sizes = [8, 8], strides = [1, 1]} : vector<8x32xf32> to vector<8x8xf32>
    %406 = arith.truncf %405 : vector<8x8xf32> to vector<8x8xbf16>
    %407 = vector.extract_strided_slice %309 {offsets = [0, 24], sizes = [16, 8], strides = [1, 1]} : vector<16x32xf32> to vector<16x8xf32>
    %408 = arith.truncf %407 : vector<16x8xf32> to vector<16x8xbf16>
    %cst_170 = arith.constant dense<0.000000e+00> : vector<8x16xf32>
    %409 = tpu.matmul %406, %408, %cst_170 {dimension_numbers = #tpu.dot_dimension_numbers<[1], [1], [0], [0], [0, 0, 1, 0], [], []>} : vector<8x8xbf16>, vector<16x8xbf16>, vector<8x16xf32> -> vector<8x16xf32>
    %410 = vector.extract_strided_slice %318 {offsets = [0, 24], sizes = [8, 8], strides = [1, 1]} : vector<8x32xf32> to vector<8x8xf32>
    %411 = arith.truncf %410 : vector<8x8xf32> to vector<8x8xbf16>
    %412 = vector.extract_strided_slice %288 {offsets = [0, 24], sizes = [16, 8], strides = [1, 1]} : vector<16x32xf32> to vector<16x8xf32>
    %413 = arith.truncf %412 : vector<16x8xf32> to vector<16x8xbf16>
    %cst_171 = arith.constant dense<0.000000e+00> : vector<8x16xf32>
    %414 = tpu.matmul %411, %413, %cst_171 {dimension_numbers = #tpu.dot_dimension_numbers<[1], [1], [0], [0], [0, 0, 1, 0], [], []>} : vector<8x8xbf16>, vector<16x8xbf16>, vector<8x16xf32> -> vector<8x16xf32>
    %415 = arith.addf %409, %414 : vector<8x16xf32>
    %cst_172 = arith.constant dense<0xFF800000> : vector<8xf32>
    %416 = vector.multi_reduction <maximumf>, %415, %cst_172 [1] : vector<8x16xf32> to vector<8xf32>
    %417 = vector.shape_cast %416 : vector<8xf32> to vector<8x1xf32>
    %418 = vector.broadcast %417 : vector<8x1xf32> to vector<8x16xf32>
    %419 = arith.subf %415, %418 : vector<8x16xf32>
    %420 = math.exp %419 : vector<8x16xf32>
    %cst_173 = arith.constant dense<0.000000e+00> : vector<8xf32>
    %421 = vector.multi_reduction <add>, %420, %cst_173 [1] : vector<8x16xf32> to vector<8xf32>
    %422 = vector.shape_cast %421 : vector<8xf32> to vector<8x1xf32>
    %423 = tpu.reciprocal %422 {approx = true} : vector<8x1xf32> -> vector<8x1xf32>
    %424 = vector.broadcast %423 : vector<8x1xf32> to vector<8x16xf32>
    %425 = arith.mulf %420, %424 : vector<8x16xf32>
    %426 = vector.extract_strided_slice %310 {offsets = [0, 24], sizes = [16, 8], strides = [1, 1]} : vector<16x32xf32> to vector<16x8xf32>
    %427 = arith.truncf %426 : vector<16x8xf32> to vector<16x8xbf16>
    %428 = arith.truncf %425 : vector<8x16xf32> to vector<8x16xbf16>
    %cst_174 = arith.constant dense<0.000000e+00> : vector<8x8xf32>
    %429 = tpu.matmul %428, %427, %cst_174 {dimension_numbers = #tpu.dot_dimension_numbers<[1], [0], [0], [1], [0, 0, 1, 1], [], []>} : vector<8x16xbf16>, vector<16x8xbf16>, vector<8x8xf32> -> vector<8x8xf32>
    %430 = arith.truncf %429 : vector<8x8xf32> to vector<8x8xbf16>
    %431 = vector.extract_strided_slice %312 {offsets = [24, 0], sizes = [8, 32], strides = [1, 1]} : vector<32x32xbf16> to vector<8x32xbf16>
    %cst_175 = arith.constant dense<0.000000e+00> : vector<8x32xf32>
    %432 = tpu.matmul %430, %431, %cst_175 {dimension_numbers = #tpu.dot_dimension_numbers<[1], [0], [0], [1], [0, 0, 1, 1], [], []>} : vector<8x8xbf16>, vector<8x32xbf16>, vector<8x32xf32> -> vector<8x32xf32>
    %433 = arith.addf %404, %432 : vector<8x32xf32>
    %434 = vector.broadcast %314 : vector<1x32xf32> to vector<8x32xf32>
    %435 = arith.addf %433, %434 : vector<8x32xf32>
    %436 = arith.addf %270, %435 : vector<8x32xf32>
    %cst_176 = arith.constant dense<0.000000e+00> : vector<8xf32>
    %437 = vector.multi_reduction <add>, %436, %cst_176 [1] : vector<8x32xf32> to vector<8xf32>
    %438 = vector.shape_cast %437 : vector<8xf32> to vector<8x1xf32>
    %cst_177 = arith.constant 3.200000e+01 : f32
    %439 = vector.broadcast %cst_177 : f32 to vector<8x1xf32>
    %440 = arith.divf %438, %439 : vector<8x1xf32>
    %441 = vector.broadcast %440 : vector<8x1xf32> to vector<8x32xf32>
    %442 = arith.subf %436, %441 : vector<8x32xf32>
    %443 = arith.mulf %442, %442 : vector<8x32xf32>
    %cst_178 = arith.constant dense<0.000000e+00> : vector<8xf32>
    %444 = vector.multi_reduction <add>, %443, %cst_178 [1] : vector<8x32xf32> to vector<8xf32>
    %445 = vector.shape_cast %444 : vector<8xf32> to vector<8x1xf32>
    %cst_179 = arith.constant 3.200000e+01 : f32
    %446 = vector.broadcast %cst_179 : f32 to vector<8x1xf32>
    %447 = arith.divf %445, %446 : vector<8x1xf32>
    %cst_180 = arith.constant 9.99999974E-6 : f32
    %448 = vector.broadcast %cst_180 : f32 to vector<8x1xf32>
    %449 = arith.addf %447, %448 : vector<8x1xf32>
    %450 = math.rsqrt %449 : vector<8x1xf32>
    %451 = vector.broadcast %450 : vector<8x1xf32> to vector<8x32xf32>
    %452 = arith.mulf %442, %451 : vector<8x32xf32>
    %c4_181 = arith.constant 4 : index
    %c0_182 = arith.constant 0 : index
    %c0_183 = arith.constant 0 : index
    %453 = vector.load %arg19[%c4_181, %c0_182, %c0_183] : memref<8x1x32xf32, #tpu.memory_space<vmem>>, vector<1x1x32xf32>
    %454 = vector.shape_cast %453 : vector<1x1x32xf32> to vector<1x32xf32>
    %455 = vector.broadcast %454 : vector<1x32xf32> to vector<8x32xf32>
    %456 = arith.mulf %452, %455 : vector<8x32xf32>
    %c5_184 = arith.constant 5 : index
    %c0_185 = arith.constant 0 : index
    %c0_186 = arith.constant 0 : index
    %457 = vector.load %arg19[%c5_184, %c0_185, %c0_186] : memref<8x1x32xf32, #tpu.memory_space<vmem>>, vector<1x1x32xf32>
    %458 = vector.shape_cast %457 : vector<1x1x32xf32> to vector<1x32xf32>
    %459 = vector.broadcast %458 : vector<1x32xf32> to vector<8x32xf32>
    %460 = arith.addf %456, %459 : vector<8x32xf32>
    %c0_187 = arith.constant 0 : index
    %c0_188 = arith.constant 0 : index
    %461 = vector.load %arg20[%c0_187, %c0_188] : memref<32x64xbf16, #tpu.memory_space<vmem>>, vector<32x64xbf16>
    %c0_189 = arith.constant 0 : index
    %c0_190 = arith.constant 0 : index
    %462 = vector.load %arg21[%c0_189, %c0_190] : memref<1x64xf32, #tpu.memory_space<vmem>>, vector<1x64xf32>
    %463 = arith.truncf %460 : vector<8x32xf32> to vector<8x32xbf16>
    %cst_191 = arith.constant dense<0.000000e+00> : vector<8x64xf32>
    %464 = tpu.matmul %463, %461, %cst_191 {dimension_numbers = #tpu.dot_dimension_numbers<[1], [0], [0], [1], [0, 0, 1, 1], [], []>} : vector<8x32xbf16>, vector<32x64xbf16>, vector<8x64xf32> -> vector<8x64xf32>
    %465 = vector.broadcast %462 : vector<1x64xf32> to vector<8x64xf32>
    %466 = arith.addf %464, %465 : vector<8x64xf32>
    %cst_192 = arith.constant 0.000000e+00 : f32
    %467 = vector.broadcast %cst_192 : f32 to vector<8x64xf32>
    %468 = arith.maximumf %466, %467 : vector<8x64xf32>
    %c0_193 = arith.constant 0 : index
    %c0_194 = arith.constant 0 : index
    %469 = vector.load %arg22[%c0_193, %c0_194] : memref<64x32xbf16, #tpu.memory_space<vmem>>, vector<64x32xbf16>
    %c0_195 = arith.constant 0 : index
    %c0_196 = arith.constant 0 : index
    %470 = vector.load %arg23[%c0_195, %c0_196] : memref<1x32xf32, #tpu.memory_space<vmem>>, vector<1x32xf32>
    %471 = arith.truncf %468 : vector<8x64xf32> to vector<8x64xbf16>
    %cst_197 = arith.constant dense<0.000000e+00> : vector<8x32xf32>
    %472 = tpu.matmul %471, %469, %cst_197 {dimension_numbers = #tpu.dot_dimension_numbers<[1], [0], [0], [1], [0, 0, 1, 1], [], []>} : vector<8x64xbf16>, vector<64x32xbf16>, vector<8x32xf32> -> vector<8x32xf32>
    %473 = vector.broadcast %470 : vector<1x32xf32> to vector<8x32xf32>
    %474 = arith.addf %472, %473 : vector<8x32xf32>
    %475 = arith.addf %460, %474 : vector<8x32xf32>
    %cst_198 = arith.constant dense<0.000000e+00> : vector<8xf32>
    %476 = vector.multi_reduction <add>, %475, %cst_198 [1] : vector<8x32xf32> to vector<8xf32>
    %477 = vector.shape_cast %476 : vector<8xf32> to vector<8x1xf32>
    %cst_199 = arith.constant 3.200000e+01 : f32
    %478 = vector.broadcast %cst_199 : f32 to vector<8x1xf32>
    %479 = arith.divf %477, %478 : vector<8x1xf32>
    %480 = vector.broadcast %479 : vector<8x1xf32> to vector<8x32xf32>
    %481 = arith.subf %475, %480 : vector<8x32xf32>
    %482 = arith.mulf %481, %481 : vector<8x32xf32>
    %cst_200 = arith.constant dense<0.000000e+00> : vector<8xf32>
    %483 = vector.multi_reduction <add>, %482, %cst_200 [1] : vector<8x32xf32> to vector<8xf32>
    %484 = vector.shape_cast %483 : vector<8xf32> to vector<8x1xf32>
    %cst_201 = arith.constant 3.200000e+01 : f32
    %485 = vector.broadcast %cst_201 : f32 to vector<8x1xf32>
    %486 = arith.divf %484, %485 : vector<8x1xf32>
    %cst_202 = arith.constant 9.99999974E-6 : f32
    %487 = vector.broadcast %cst_202 : f32 to vector<8x1xf32>
    %488 = arith.addf %486, %487 : vector<8x1xf32>
    %489 = math.rsqrt %488 : vector<8x1xf32>
    %490 = vector.broadcast %489 : vector<8x1xf32> to vector<8x32xf32>
    %491 = arith.mulf %481, %490 : vector<8x32xf32>
    %c6_203 = arith.constant 6 : index
    %c0_204 = arith.constant 0 : index
    %c0_205 = arith.constant 0 : index
    %492 = vector.load %arg19[%c6_203, %c0_204, %c0_205] : memref<8x1x32xf32, #tpu.memory_space<vmem>>, vector<1x1x32xf32>
    %493 = vector.shape_cast %492 : vector<1x1x32xf32> to vector<1x32xf32>
    %494 = vector.broadcast %493 : vector<1x32xf32> to vector<8x32xf32>
    %495 = arith.mulf %491, %494 : vector<8x32xf32>
    %c7_206 = arith.constant 7 : index
    %c0_207 = arith.constant 0 : index
    %c0_208 = arith.constant 0 : index
    %496 = vector.load %arg19[%c7_206, %c0_207, %c0_208] : memref<8x1x32xf32, #tpu.memory_space<vmem>>, vector<1x1x32xf32>
    %497 = vector.shape_cast %496 : vector<1x1x32xf32> to vector<1x32xf32>
    %498 = vector.broadcast %497 : vector<1x32xf32> to vector<8x32xf32>
    %499 = arith.addf %495, %498 : vector<8x32xf32>
    %c0_209 = arith.constant 0 : index
    %c0_210 = arith.constant 0 : index
    %c0_211 = arith.constant 0 : index
    %500 = vector.load %arg24[%c0_209, %c0_210, %c0_211] : memref<1x8x32xf32, #tpu.memory_space<vmem>>, vector<1x8x32xf32>
    %501 = vector.shape_cast %500 : vector<1x8x32xf32> to vector<8x32xf32>
    %502 = vector.shape_cast %499 : vector<8x32xf32> to vector<1x8x32xf32>
    tpu.vector_store %arg24[%c0_209, %c0_210, %c0_211], %502 {strides = array<i32>} : memref<1x8x32xf32, #tpu.memory_space<vmem>>, vector<1x8x32xf32>,
    return
  }
  func.func @transform_0(%arg0: i32) -> (i32, i32, i32) {
    %c0_i32 = arith.constant 0 : i32
    %c0_i32_0 = arith.constant 0 : i32
    %c0_i32_1 = arith.constant 0 : i32
    return %arg0, %c0_i32, %c0_i32_0 : i32, i32, i32
  }
  func.func @transform_1(%arg0: i32) -> (i32, i32, i32) {
    %c0_i32 = arith.constant 0 : i32
    %c0_i32_0 = arith.constant 0 : i32
    %c0_i32_1 = arith.constant 0 : i32
    return %arg0, %c0_i32, %c0_i32_0 : i32, i32, i32
  }
  func.func @transform_2(%arg0: i32) -> (i32, i32, i32) {
    %c0_i32 = arith.constant 0 : i32
    %c0_i32_0 = arith.constant 0 : i32
    %c0_i32_1 = arith.constant 0 : i32
    return %arg0, %c0_i32, %c0_i32_0 : i32, i32, i32
  }
  func.func @transform_3(%arg0: i32) -> (i32, i32, i32) {
    %c0_i32 = arith.constant 0 : i32
    %c0_i32_0 = arith.constant 0 : i32
    %c0_i32_1 = arith.constant 0 : i32
    return %arg0, %c0_i32, %c0_i32_0 : i32, i32, i32
  }
  func.func @transform_4(%arg0: i32) -> (i32, i32, i32) {
    %c0_i32 = arith.constant 0 : i32
    %c0_i32_0 = arith.constant 0 : i32
    %c0_i32_1 = arith.constant 0 : i32
    return %arg0, %c0_i32, %c0_i32_0 : i32, i32, i32
  }
  func.func @transform_5(%arg0: i32) -> (i32, i32, i32) {
    %c0_i32 = arith.constant 0 : i32
    %c0_i32_0 = arith.constant 0 : i32
    %c0_i32_1 = arith.constant 0 : i32
    return %arg0, %c0_i32, %c0_i32_0 : i32, i32, i32
  }
  func.func @transform_6(%arg0: i32) -> (i32, i32) {
    %c0_i32 = arith.constant 0 : i32
    %c0_i32_0 = arith.constant 0 : i32
    %c0_i32_1 = arith.constant 0 : i32
    return %c0_i32, %c0_i32_0 : i32, i32
  }
  func.func @transform_7(%arg0: i32) -> (i32, i32) {
    %c0_i32 = arith.constant 0 : i32
    %c0_i32_0 = arith.constant 0 : i32
    %c0_i32_1 = arith.constant 0 : i32
    return %c0_i32, %c0_i32_0 : i32, i32
  }
  func.func @transform_8(%arg0: i32) -> (i32, i32) {
    %c0_i32 = arith.constant 0 : i32
    %c0_i32_0 = arith.constant 0 : i32
    %c0_i32_1 = arith.constant 0 : i32
    return %c0_i32, %c0_i32_0 : i32, i32
  }
  func.func @transform_9(%arg0: i32) -> (i32, i32) {
    %c0_i32 = arith.constant 0 : i32
    %c0_i32_0 = arith.constant 0 : i32
    %c0_i32_1 = arith.constant 0 : i32
    return %c0_i32, %c0_i32_0 : i32, i32
  }
  func.func @transform_10(%arg0: i32) -> (i32, i32) {
    %c0_i32 = arith.constant 0 : i32
    %c0_i32_0 = arith.constant 0 : i32
    %c0_i32_1 = arith.constant 0 : i32
    return %c0_i32, %c0_i32_0 : i32, i32
  }
  func.func @transform_11(%arg0: i32) -> (i32, i32) {
    %c0_i32 = arith.constant 0 : i32
    %c0_i32_0 = arith.constant 0 : i32
    %c0_i32_1 = arith.constant 0 : i32
    return %c0_i32, %c0_i32_0 : i32, i32
  }
  func.func @transform_12(%arg0: i32) -> (i32, i32) {
    %c0_i32 = arith.constant 0 : i32
    %c0_i32_0 = arith.constant 0 : i32
    %c0_i32_1 = arith.constant 0 : i32
    return %c0_i32, %c0_i32_0 : i32, i32
  }
  func.func @transform_13(%arg0: i32) -> (i32, i32) {
    %c0_i32 = arith.constant 0 : i32
    %c0_i32_0 = arith.constant 0 : i32
    %c0_i32_1 = arith.constant 0 : i32
    return %c0_i32, %c0_i32_0 : i32, i32
  }
  func.func @transform_14(%arg0: i32) -> (i32, i32) {
    %c0_i32 = arith.constant 0 : i32
    %c0_i32_0 = arith.constant 0 : i32
    %c0_i32_1 = arith.constant 0 : i32
    return %c0_i32, %c0_i32_0 : i32, i32
  }
  func.func @transform_15(%arg0: i32) -> (i32, i32) {
    %c0_i32 = arith.constant 0 : i32
    %c0_i32_0 = arith.constant 0 : i32
    %c0_i32_1 = arith.constant 0 : i32
    return %c0_i32, %c0_i32_0 : i32, i32
  }
  func.func @transform_16(%arg0: i32) -> (i32, i32, i32) {
    %c0_i32 = arith.constant 0 : i32
    %c0_i32_0 = arith.constant 0 : i32
    %c0_i32_1 = arith.constant 0 : i32
    %c0_i32_2 = arith.constant 0 : i32
    return %c0_i32, %c0_i32_0, %c0_i32_1 : i32, i32, i32
  }
  func.func @transform_17(%arg0: i32) -> (i32, i32, i32) {
    %c0_i32 = arith.constant 0 : i32
    %c0_i32_0 = arith.constant 0 : i32
    %c0_i32_1 = arith.constant 0 : i32
    %c0_i32_2 = arith.constant 0 : i32
    return %c0_i32, %c0_i32_0, %c0_i32_1 : i32, i32, i32
  }
  func.func @transform_18(%arg0: i32) -> (i32, i32, i32) {
    %c0_i32 = arith.constant 0 : i32
    %c0_i32_0 = arith.constant 0 : i32
    %c0_i32_1 = arith.constant 0 : i32
    %c0_i32_2 = arith.constant 0 : i32
    return %c0_i32, %c0_i32_0, %c0_i32_1 : i32, i32, i32
  }
  func.func @transform_19(%arg0: i32) -> (i32, i32) {
    %c0_i32 = arith.constant 0 : i32
    %c0_i32_0 = arith.constant 0 : i32
    %c0_i32_1 = arith.constant 0 : i32
    return %c0_i32, %c0_i32_0 : i32, i32
  }
  func.func @transform_20(%arg0: i32) -> (i32, i32) {
    %c0_i32 = arith.constant 0 : i32
    %c0_i32_0 = arith.constant 0 : i32
    %c0_i32_1 = arith.constant 0 : i32
    return %c0_i32, %c0_i32_0 : i32, i32
  }
  func.func @transform_21(%arg0: i32) -> (i32, i32) {
    %c0_i32 = arith.constant 0 : i32
    %c0_i32_0 = arith.constant 0 : i32
    %c0_i32_1 = arith.constant 0 : i32
    return %c0_i32, %c0_i32_0 : i32, i32
  }
  func.func @transform_22(%arg0: i32) -> (i32, i32) {
    %c0_i32 = arith.constant 0 : i32
    %c0_i32_0 = arith.constant 0 : i32
    %c0_i32_1 = arith.constant 0 : i32
    return %c0_i32, %c0_i32_0 : i32, i32
  }
  func.func @transform_23(%arg0: i32) -> (i32, i32, i32) {
    %c0_i32 = arith.constant 0 : i32
    %c0_i32_0 = arith.constant 0 : i32
    %c0_i32_1 = arith.constant 0 : i32
    return %arg0, %c0_i32, %c0_i32_0 : i32, i32, i32
  }
}

</mosaic_0001>

<llo_original>
// kernel: transformer_decoder_first_layer.1
$region0: #{transformer_decoder_first_layer.1}
  #allocation0 [shape = 'u32[]', space=smem, size = 0x4, offset = 0x4, fixed_abs, tag = 'smem constant byte address 0x4 - core index']
  #allocation1 [shape = 'u32[144,128]{1,0:T(1,128)}', space=vmem, size = 0x12000, scoped, tag = 'internal scratch']
  %s0 = inlined_call_operand.vmem [shape: f32[2,8,32], index: 0, kind: input, shape index: {}]
  %s1 = inlined_call_operand.vmem [shape: f32[2,16,32], index: 1, kind: input, shape index: {}]
  %s2 = inlined_call_operand.vmem [shape: f32[2,16,32], index: 2, kind: input, shape index: {}]
  %s3 = inlined_call_operand.vmem [shape: f32[2,8,32], index: 3, kind: input, shape index: {}]
  %s4 = inlined_call_operand.vmem [shape: f32[2,8,32], index: 4, kind: input, shape index: {}]
  %s5 = inlined_call_operand.vmem [shape: f32[2,8,32], index: 5, kind: input, shape index: {}]
  %s6 = inlined_call_operand.vmem [shape: bf16[32,96], index: 6, kind: input, shape index: {}]
  %s7 = inlined_call_operand.hbm [shape: f32[1,96], index: 7, kind: input, shape index: {}]
  %s8 = inlined_call_operand.vmem [shape: bf16[32,96], index: 8, kind: input, shape index: {}]
  %s9 = inlined_call_operand.hbm [shape: f32[1,96], index: 9, kind: input, shape index: {}]
  %s10 = inlined_call_operand.vmem [shape: bf16[32,64], index: 10, kind: input, shape index: {}]
  %s11 = inlined_call_operand.hbm [shape: f32[1,64], index: 11, kind: input, shape index: {}]
  %s12 = inlined_call_operand.vmem [shape: bf16[32,96], index: 12, kind: input, shape index: {}]
  %s13 = inlined_call_operand.hbm [shape: f32[1,96], index: 13, kind: input, shape index: {}]
  %s14 = inlined_call_operand.vmem [shape: bf16[32,64], index: 14, kind: input, shape index: {}]
  %s15 = inlined_call_operand.hbm [shape: f32[1,64], index: 15, kind: input, shape index: {}]
  %s16 = inlined_call_operand.vmem [shape: bf16[9,32,32], index: 16, kind: input, shape index: {}]
  %s17 = inlined_call_operand.hbm [shape: f32[9,1,32], index: 17, kind: input, shape index: {}]
  %s18 = inlined_call_operand.hbm [shape: f32[8,1,32], index: 18, kind: input, shape index: {}]
  %s19 = inlined_call_operand.vmem [shape: bf16[32,64], index: 19, kind: input, shape index: {}]
  %s20 = inlined_call_operand.vmem [shape: f32[1,64], index: 20, kind: input, shape index: {}]
  %s21 = inlined_call_operand.vmem [shape: bf16[64,32], index: 21, kind: input, shape index: {}]
  %s22 = inlined_call_operand.vmem [shape: f32[1,32], index: 22, kind: input, shape index: {}]
  %s23 = inlined_call_operand.vmem [shape: f32[2,8,32], index: 23, kind: output, shape index: {}]
  %s24 = sld [smem:[#allocation0]]
  $region153: #{transformer_decoder_first_layer.1} parent=0
    _
  %s26 = ssub.s32 1, %s24
  %s27 = scalar_select 0, %s26, %s24
  $region1: #{transformer_decoder_first_layer.1} parent=0
    #allocation2 [shape = 'u8[512]{0}', space=vmem, size = 0x400, scoped, tag = 'input window, operand 7, single buffered']
    #allocation3 [shape = 's32[2]{0}', space=sflag, size = 0x8, scoped, tag = 'scoped memory for transformer_decoder_first_layer.1']
    #allocation4 [shape = 'u8[512]{0}', space=vmem, size = 0x400, scoped, tag = 'input window, operand 9, single buffered']
    #allocation5 [shape = 's32[1]{0}', space=sflag, size = 0x4, scoped, tag = 'scoped memory for transformer_decoder_first_layer.1']
    #allocation6 [shape = 'u8[512]{0}', space=vmem, size = 0x400, scoped, tag = 'input window, operand 11, single buffered']
    #allocation7 [shape = 'u8[512]{0}', space=vmem, size = 0x400, scoped, tag = 'input window, operand 13, single buffered']
    #allocation8 [shape = 's32[1]{0}', space=sflag, size = 0x4, scoped, tag = 'scoped memory for transformer_decoder_first_layer.1']
    #allocation9 [shape = 'u8[512]{0}', space=vmem, size = 0x400, scoped, tag = 'input window, operand 15, single buffered']
    #allocation10 [shape = 'u8[4608]{0}', space=vmem, size = 0x1400, scoped, tag = 'input window, operand 17, single buffered']
    #allocation11 [shape = 's32[1]{0}', space=sflag, size = 0x4, scoped, tag = 'scoped memory for transformer_decoder_first_layer.1']
    #allocation12 [shape = 'u8[4096]{0}', space=vmem, size = 0x1000, scoped, tag = 'input window, operand 18, single buffered']
    %28 = vsyncpa [#allocation3], 0
    %29 = vsyncpa [#allocation5], 0
    %30 = vsyncpa [#allocation8], 0
    %31 = vsyncpa [#allocation11], 0
    loop: start=0, step=1, limit=4
    $region2: #{transformer_decoder_first_layer.1} parent=1 // loop_pre_header
      _
    $region3: #{transformer_decoder_first_layer.1} parent=1 // loop_header
      %s33 = sphi 0, %s37
      %p34 = scmp.ge.s32.totalorder %s33, 4
      %s43 = sphi 0, %s45
      %s46 = sphi 0, %s43
      %s47 = sphi 0, %s46
      %s63 = sphi 0, %s47
      %s69 = sphi 0, %s71
      %s72 = sphi 0, %s69
      %s73 = sphi 0, %s72
      %s89 = sphi 0, %s73
      %s95 = sphi 0, %s97
      %s98 = sphi 0, %s95
      %s99 = sphi 0, %s98
      %s115 = sphi 0, %s99
      %s121 = sphi 0, %s123
      %s124 = sphi 0, %s121
      %s125 = sphi 0, %s124
      %s141 = sphi 0, %s125
      %s147 = sphi 0, %s149
      %s150 = sphi 0, %s147
      %s151 = sphi 0, %s150
      %s167 = sphi 0, %s151
      %s173 = sphi 0, %s175
      %s176 = sphi 0, %s173
      %s177 = sphi 0, %s176
      %s193 = sphi 0, %s177
      %s197 = sphi 0, %s197
      %s199 = sphi 0, %s197
      %s200 = sphi 0, %s199
      %s214 = sphi 0, %s200
      %s218 = sphi 0, %s218
      %s220 = sphi 0, %s218
      %s221 = sphi 0, %s220
      %s235 = sphi 0, %s221
      %s239 = sphi 0, %s239
      %s241 = sphi 0, %s239
      %s242 = sphi 0, %s241
      %s256 = sphi 0, %s242
      %s260 = sphi 0, %s260
      %s262 = sphi 0, %s260
      %s263 = sphi 0, %s262
      %s277 = sphi 0, %s263
      %s281 = sphi 0, %s281
      %s283 = sphi 0, %s281
      %s284 = sphi 0, %s283
      %s298 = sphi 0, %s284
      %s302 = sphi 0, %s302
      %s304 = sphi 0, %s302
      %s305 = sphi 0, %s304
      %s319 = sphi 0, %s305
      %s323 = sphi 0, %s323
      %s325 = sphi 0, %s323
      %s326 = sphi 0, %s325
      %s340 = sphi 0, %s326
      %s344 = sphi 0, %s344
      %s346 = sphi 0, %s344
      %s347 = sphi 0, %s346
      %s361 = sphi 0, %s347
      %s365 = sphi 0, %s365
      %s367 = sphi 0, %s365
      %s368 = sphi 0, %s367
      %s382 = sphi 0, %s368
      %s386 = sphi 0, %s386
      %s388 = sphi 0, %s386
      %s389 = sphi 0, %s388
      %s403 = sphi 0, %s389
      %s407 = sphi 0, %s407
      %s409 = sphi 0, %s407
      %s410 = sphi 0, %s409
      %s424 = sphi 0, %s410
      %s428 = sphi 0, %s428
      %s430 = sphi 0, %s428
      %s431 = sphi 0, %s430
      %s445 = sphi 0, %s431
      %s449 = sphi 0, %s449
      %s451 = sphi 0, %s449
      %s452 = sphi 0, %s451
      %s466 = sphi 0, %s452
      %s470 = sphi 0, %s470
      %s472 = sphi 0, %s470
      %s473 = sphi 0, %s472
      %s487 = sphi 0, %s473
      %s491 = sphi 0, %s491
      %s493 = sphi 0, %s491
      %s494 = sphi 0, %s493
      %s508 = sphi 0, %s494
      %s512 = sphi 0, %s512
      %s514 = sphi 0, %s512
      %s515 = sphi 0, %s514
      %s529 = sphi 0, %s515
      %s533 = sphi 0, %s533
      %s535 = sphi 0, %s533
      %s536 = sphi 0, %s535
      %s550 = sphi 0, %s536
      %s556 = sphi 0, %s558
      %s559 = sphi 0, %s556
      %s560 = sphi 0, %s559
      %s576 = sphi 0, %s560
    $region4: #{transformer_decoder_first_layer.1} parent=1 // loop_header_branch
      %36 = sbr.rel (%p34) target = $region8
    $region5: #{transformer_decoder_first_layer.1} parent=1 // loop_body
      %s38 = ssub.s32 %s33, 1
      %s39 = ssub.s32 %s33, 2
      %s40 = sadd.s32 %s33, 1
      %s41 = ssub.s32 %s33, %s40
      %p42 = scmp.eq.s32.totalorder %s41, 0
      %s44 = sadd.s32 %s43, 1
      %s45 = scalar_select %p42, %s43, %s44
      %p48 = pneg %p42
      %p49 = scmp.eq.s32.totalorder %s33, 1
      %p50 = por %p48, %p49
      %p51 = scmp.ne.s32.totalorder %s43, %s46
      %p52 = scmp.eq.s32.totalorder %s33, 0
      %p53 = por %p51, %p52
      %p54 = scmp.ne.s32.totalorder %s43, %s46
      %p55 = scmp.eq.s32.totalorder %s38, 1
      %p56 = por %p54, %p55
      %p57 = scmp.ne.s32.totalorder %s46, %s47
      %p58 = scmp.eq.s32.totalorder %s38, 0
      %p59 = por %p57, %p58
      %p60 = scmp.ne.s32.totalorder %s46, %s47
      %p61 = scmp.eq.s32.totalorder %s39, 1
      %p62 = por %p60, %p61
      %p64 = scmp.ne.s32.totalorder %s47, %s63
      %p65 = scmp.eq.s32.totalorder %s39, 0
      %p66 = por %p64, %p65
      %s67 = ssub.s32 %s33, %s40
      %p68 = scmp.eq.s32.totalorder %s67, 0
      %s70 = sadd.s32 %s69, 1
      %s71 = scalar_select %p68, %s69, %s70
      %p74 = pneg %p68
      %p75 = scmp.eq.s32.totalorder %s33, 1
      %p76 = por %p74, %p75
      %p77 = scmp.ne.s32.totalorder %s69, %s72
      %p78 = scmp.eq.s32.totalorder %s33, 0
      %p79 = por %p77, %p78
      %p80 = scmp.ne.s32.totalorder %s69, %s72
      %p81 = scmp.eq.s32.totalorder %s38, 1
      %p82 = por %p80, %p81
      %p83 = scmp.ne.s32.totalorder %s72, %s73
      %p84 = scmp.eq.s32.totalorder %s38, 0
      %p85 = por %p83, %p84
      %p86 = scmp.ne.s32.totalorder %s72, %s73
      %p87 = scmp.eq.s32.totalorder %s39, 1
      %p88 = por %p86, %p87
      %p90 = scmp.ne.s32.totalorder %s73, %s89
      %p91 = scmp.eq.s32.totalorder %s39, 0
      %p92 = por %p90, %p91
      %s93 = ssub.s32 %s33, %s40
      %p94 = scmp.eq.s32.totalorder %s93, 0
      %s96 = sadd.s32 %s95, 1
      %s97 = scalar_select %p94, %s95, %s96
      %p100 = pneg %p94
      %p101 = scmp.eq.s32.totalorder %s33, 1
      %p102 = por %p100, %p101
      %p103 = scmp.ne.s32.totalorder %s95, %s98
      %p104 = scmp.eq.s32.totalorder %s33, 0
      %p105 = por %p103, %p104
      %p106 = scmp.ne.s32.totalorder %s95, %s98
      %p107 = scmp.eq.s32.totalorder %s38, 1
      %p108 = por %p106, %p107
      %p109 = scmp.ne.s32.totalorder %s98, %s99
      %p110 = scmp.eq.s32.totalorder %s38, 0
      %p111 = por %p109, %p110
      %p112 = scmp.ne.s32.totalorder %s98, %s99
      %p113 = scmp.eq.s32.totalorder %s39, 1
      %p114 = por %p112, %p113
      %p116 = scmp.ne.s32.totalorder %s99, %s115
      %p117 = scmp.eq.s32.totalorder %s39, 0
      %p118 = por %p116, %p117
      %s119 = ssub.s32 %s33, %s40
      %p120 = scmp.eq.s32.totalorder %s119, 0
      %s122 = sadd.s32 %s121, 1
      %s123 = scalar_select %p120, %s121, %s122
      %p126 = pneg %p120
      %p127 = scmp.eq.s32.totalorder %s33, 1
      %p128 = por %p126, %p127
      %p129 = scmp.ne.s32.totalorder %s121, %s124
      %p130 = scmp.eq.s32.totalorder %s33, 0
      %p131 = por %p129, %p130
      %p132 = scmp.ne.s32.totalorder %s121, %s124
      %p133 = scmp.eq.s32.totalorder %s38, 1
      %p134 = por %p132, %p133
      %p135 = scmp.ne.s32.totalorder %s124, %s125
      %p136 = scmp.eq.s32.totalorder %s38, 0
      %p137 = por %p135, %p136
      %p138 = scmp.ne.s32.totalorder %s124, %s125
      %p139 = scmp.eq.s32.totalorder %s39, 1
      %p140 = por %p138, %p139
      %p142 = scmp.ne.s32.totalorder %s125, %s141
      %p143 = scmp.eq.s32.totalorder %s39, 0
      %p144 = por %p142, %p143
      %s145 = ssub.s32 %s33, %s40
      %p146 = scmp.eq.s32.totalorder %s145, 0
      %s148 = sadd.s32 %s147, 1
      %s149 = scalar_select %p146, %s147, %s148
      %p152 = pneg %p146
      %p153 = scmp.eq.s32.totalorder %s33, 1
      %p154 = por %p152, %p153
      %p155 = scmp.ne.s32.totalorder %s147, %s150
      %p156 = scmp.eq.s32.totalorder %s33, 0
      %p157 = por %p155, %p156
      %p158 = scmp.ne.s32.totalorder %s147, %s150
      %p159 = scmp.eq.s32.totalorder %s38, 1
      %p160 = por %p158, %p159
      %p161 = scmp.ne.s32.totalorder %s150, %s151
      %p162 = scmp.eq.s32.totalorder %s38, 0
      %p163 = por %p161, %p162
      %p164 = scmp.ne.s32.totalorder %s150, %s151
      %p165 = scmp.eq.s32.totalorder %s39, 1
      %p166 = por %p164, %p165
      %p168 = scmp.ne.s32.totalorder %s151, %s167
      %p169 = scmp.eq.s32.totalorder %s39, 0
      %p170 = por %p168, %p169
      %s171 = ssub.s32 %s33, %s40
      %p172 = scmp.eq.s32.totalorder %s171, 0
      %s174 = sadd.s32 %s173, 1
      %s175 = scalar_select %p172, %s173, %s174
      %p178 = pneg %p172
      %p179 = scmp.eq.s32.totalorder %s33, 1
      %p180 = por %p178, %p179
      %p181 = scmp.ne.s32.totalorder %s173, %s176
      %p182 = scmp.eq.s32.totalorder %s33, 0
      %p183 = por %p181, %p182
      %p184 = scmp.ne.s32.totalorder %s173, %s176
      %p185 = scmp.eq.s32.totalorder %s38, 1
      %p186 = por %p184, %p185
      %p187 = scmp.ne.s32.totalorder %s176, %s177
      %p188 = scmp.eq.s32.totalorder %s38, 0
      %p189 = por %p187, %p188
      %p190 = scmp.ne.s32.totalorder %s176, %s177
      %p191 = scmp.eq.s32.totalorder %s39, 1
      %p192 = por %p190, %p191
      %p194 = scmp.ne.s32.totalorder %s177, %s193
      %p195 = scmp.eq.s32.totalorder %s39, 0
      %p196 = por %p194, %p195
      %s198 = sadd.s32 %s197, 1
      %p201 = scmp.eq.s32.totalorder %s33, 1
      %p202 = scmp.ne.s32.totalorder %s197, %s199
      %p203 = scmp.eq.s32.totalorder %s33, 0
      %p204 = por %p202, %p203
      %p205 = scmp.ne.s32.totalorder %s197, %s199
      %p206 = scmp.eq.s32.totalorder %s38, 1
      %p207 = por %p205, %p206
      %p208 = scmp.ne.s32.totalorder %s199, %s200
      %p209 = scmp.eq.s32.totalorder %s38, 0
      %p210 = por %p208, %p209
      %p211 = scmp.ne.s32.totalorder %s199, %s200
      %p212 = scmp.eq.s32.totalorder %s39, 1
      %p213 = por %p211, %p212
      %p215 = scmp.ne.s32.totalorder %s200, %s214
      %p216 = scmp.eq.s32.totalorder %s39, 0
      %p217 = por %p215, %p216
      %s219 = sadd.s32 %s218, 1
      %p222 = scmp.eq.s32.totalorder %s33, 1
      %p223 = scmp.ne.s32.totalorder %s218, %s220
      %p224 = scmp.eq.s32.totalorder %s33, 0
      %p225 = por %p223, %p224
      %p226 = scmp.ne.s32.totalorder %s218, %s220
      %p227 = scmp.eq.s32.totalorder %s38, 1
      %p228 = por %p226, %p227
      %p229 = scmp.ne.s32.totalorder %s220, %s221
      %p230 = scmp.eq.s32.totalorder %s38, 0
      %p231 = por %p229, %p230
      %p232 = scmp.ne.s32.totalorder %s220, %s221
      %p233 = scmp.eq.s32.totalorder %s39, 1
      %p234 = por %p232, %p233
      %p236 = scmp.ne.s32.totalorder %s221, %s235
      %p237 = scmp.eq.s32.totalorder %s39, 0
      %p238 = por %p236, %p237
      %s240 = sadd.s32 %s239, 1
      %p243 = scmp.eq.s32.totalorder %s33, 1
      %p244 = scmp.ne.s32.totalorder %s239, %s241
      %p245 = scmp.eq.s32.totalorder %s33, 0
      %p246 = por %p244, %p245
      %p247 = scmp.ne.s32.totalorder %s239, %s241
      %p248 = scmp.eq.s32.totalorder %s38, 1
      %p249 = por %p247, %p248
      %p250 = scmp.ne.s32.totalorder %s241, %s242
      %p251 = scmp.eq.s32.totalorder %s38, 0
      %p252 = por %p250, %p251
      %p253 = scmp.ne.s32.totalorder %s241, %s242
      %p254 = scmp.eq.s32.totalorder %s39, 1
      %p255 = por %p253, %p254
      %p257 = scmp.ne.s32.totalorder %s242, %s256
      %p258 = scmp.eq.s32.totalorder %s39, 0
      %p259 = por %p257, %p258
      %s261 = sadd.s32 %s260, 1
      %p264 = scmp.eq.s32.totalorder %s33, 1
      %p265 = scmp.ne.s32.totalorder %s260, %s262
      %p266 = scmp.eq.s32.totalorder %s33, 0
      %p267 = por %p265, %p266
      %p268 = scmp.ne.s32.totalorder %s260, %s262
      %p269 = scmp.eq.s32.totalorder %s38, 1
      %p270 = por %p268, %p269
      %p271 = scmp.ne.s32.totalorder %s262, %s263
      %p272 = scmp.eq.s32.totalorder %s38, 0
      %p273 = por %p271, %p272
      %p274 = scmp.ne.s32.totalorder %s262, %s263
      %p275 = scmp.eq.s32.totalorder %s39, 1
      %p276 = por %p274, %p275
      %p278 = scmp.ne.s32.totalorder %s263, %s277
      %p279 = scmp.eq.s32.totalorder %s39, 0
      %p280 = por %p278, %p279
      %s282 = sadd.s32 %s281, 1
      %p285 = scmp.eq.s32.totalorder %s33, 1
      %p286 = scmp.ne.s32.totalorder %s281, %s283
      %p287 = scmp.eq.s32.totalorder %s33, 0
      %p288 = por %p286, %p287
      %p289 = scmp.ne.s32.totalorder %s281, %s283
      %p290 = scmp.eq.s32.totalorder %s38, 1
      %p291 = por %p289, %p290
      %p292 = scmp.ne.s32.totalorder %s283, %s284
      %p293 = scmp.eq.s32.totalorder %s38, 0
      %p294 = por %p292, %p293
      %p295 = scmp.ne.s32.totalorder %s283, %s284
      %p296 = scmp.eq.s32.totalorder %s39, 1
      %p297 = por %p295, %p296
      %p299 = scmp.ne.s32.totalorder %s284, %s298
      %p300 = scmp.eq.s32.totalorder %s39, 0
      %p301 = por %p299, %p300
      %s303 = sadd.s32 %s302, 1
      %p306 = scmp.eq.s32.totalorder %s33, 1
      %p307 = scmp.ne.s32.totalorder %s302, %s304
      %p308 = scmp.eq.s32.totalorder %s33, 0
      %p309 = por %p307, %p308
      %p310 = scmp.ne.s32.totalorder %s302, %s304
      %p311 = scmp.eq.s32.totalorder %s38, 1
      %p312 = por %p310, %p311
      %p313 = scmp.ne.s32.totalorder %s304, %s305
      %p314 = scmp.eq.s32.totalorder %s38, 0
      %p315 = por %p313, %p314
      %p316 = scmp.ne.s32.totalorder %s304, %s305
      %p317 = scmp.eq.s32.totalorder %s39, 1
      %p318 = por %p316, %p317
      %p320 = scmp.ne.s32.totalorder %s305, %s319
      %p321 = scmp.eq.s32.totalorder %s39, 0
      %p322 = por %p320, %p321
      %s324 = sadd.s32 %s323, 1
      %p327 = scmp.eq.s32.totalorder %s33, 1
      %p328 = scmp.ne.s32.totalorder %s323, %s325
      %p329 = scmp.eq.s32.totalorder %s33, 0
      %p330 = por %p328, %p329
      %p331 = scmp.ne.s32.totalorder %s323, %s325
      %p332 = scmp.eq.s32.totalorder %s38, 1
      %p333 = por %p331, %p332
      %p334 = scmp.ne.s32.totalorder %s325, %s326
      %p335 = scmp.eq.s32.totalorder %s38, 0
      %p336 = por %p334, %p335
      %p337 = scmp.ne.s32.totalorder %s325, %s326
      %p338 = scmp.eq.s32.totalorder %s39, 1
      %p339 = por %p337, %p338
      %p341 = scmp.ne.s32.totalorder %s326, %s340
      %p342 = scmp.eq.s32.totalorder %s39, 0
      %p343 = por %p341, %p342
      %s345 = sadd.s32 %s344, 1
      %p348 = scmp.eq.s32.totalorder %s33, 1
      %p349 = scmp.ne.s32.totalorder %s344, %s346
      %p350 = scmp.eq.s32.totalorder %s33, 0
      %p351 = por %p349, %p350
      %p352 = scmp.ne.s32.totalorder %s344, %s346
      %p353 = scmp.eq.s32.totalorder %s38, 1
      %p354 = por %p352, %p353
      %p355 = scmp.ne.s32.totalorder %s346, %s347
      %p356 = scmp.eq.s32.totalorder %s38, 0
      %p357 = por %p355, %p356
      %p358 = scmp.ne.s32.totalorder %s346, %s347
      %p359 = scmp.eq.s32.totalorder %s39, 1
      %p360 = por %p358, %p359
      %p362 = scmp.ne.s32.totalorder %s347, %s361
      %p363 = scmp.eq.s32.totalorder %s39, 0
      %p364 = por %p362, %p363
      %s366 = sadd.s32 %s365, 1
      %p369 = scmp.eq.s32.totalorder %s33, 1
      %p370 = scmp.ne.s32.totalorder %s365, %s367
      %p371 = scmp.eq.s32.totalorder %s33, 0
      %p372 = por %p370, %p371
      %p373 = scmp.ne.s32.totalorder %s365, %s367
      %p374 = scmp.eq.s32.totalorder %s38, 1
      %p375 = por %p373, %p374
      %p376 = scmp.ne.s32.totalorder %s367, %s368
      %p377 = scmp.eq.s32.totalorder %s38, 0
      %p378 = por %p376, %p377
      %p379 = scmp.ne.s32.totalorder %s367, %s368
      %p380 = scmp.eq.s32.totalorder %s39, 1
      %p381 = por %p379, %p380
      %p383 = scmp.ne.s32.totalorder %s368, %s382
      %p384 = scmp.eq.s32.totalorder %s39, 0
      %p385 = por %p383, %p384
      %s387 = sadd.s32 %s386, 1
      %p390 = scmp.eq.s32.totalorder %s33, 1
      %p391 = scmp.ne.s32.totalorder %s386, %s388
      %p392 = scmp.eq.s32.totalorder %s33, 0
      %p393 = por %p391, %p392
      %p394 = scmp.ne.s32.totalorder %s386, %s388
      %p395 = scmp.eq.s32.totalorder %s38, 1
      %p396 = por %p394, %p395
      %p397 = scmp.ne.s32.totalorder %s388, %s389
      %p398 = scmp.eq.s32.totalorder %s38, 0
      %p399 = por %p397, %p398
      %p400 = scmp.ne.s32.totalorder %s388, %s389
      %p401 = scmp.eq.s32.totalorder %s39, 1
      %p402 = por %p400, %p401
      %p404 = scmp.ne.s32.totalorder %s389, %s403
      %p405 = scmp.eq.s32.totalorder %s39, 0
      %p406 = por %p404, %p405
      %s408 = sadd.s32 %s407, 1
      %p411 = scmp.eq.s32.totalorder %s33, 1
      %p412 = scmp.ne.s32.totalorder %s407, %s409
      %p413 = scmp.eq.s32.totalorder %s33, 0
      %p414 = por %p412, %p413
      %p415 = scmp.ne.s32.totalorder %s407, %s409
      %p416 = scmp.eq.s32.totalorder %s38, 1
      %p417 = por %p415, %p416
      %p418 = scmp.ne.s32.totalorder %s409, %s410
      %p419 = scmp.eq.s32.totalorder %s38, 0
      %p420 = por %p418, %p419
      %p421 = scmp.ne.s32.totalorder %s409, %s410
      %p422 = scmp.eq.s32.totalorder %s39, 1
      %p423 = por %p421, %p422
      %p425 = scmp.ne.s32.totalorder %s410, %s424
      %p426 = scmp.eq.s32.totalorder %s39, 0
      %p427 = por %p425, %p426
      %s429 = sadd.s32 %s428, 1
      %p432 = scmp.eq.s32.totalorder %s33, 1
      %p433 = scmp.ne.s32.totalorder %s428, %s430
      %p434 = scmp.eq.s32.totalorder %s33, 0
      %p435 = por %p433, %p434
      %p436 = scmp.ne.s32.totalorder %s428, %s430
      %p437 = scmp.eq.s32.totalorder %s38, 1
      %p438 = por %p436, %p437
      %p439 = scmp.ne.s32.totalorder %s430, %s431
      %p440 = scmp.eq.s32.totalorder %s38, 0
      %p441 = por %p439, %p440
      %p442 = scmp.ne.s32.totalorder %s430, %s431
      %p443 = scmp.eq.s32.totalorder %s39, 1
      %p444 = por %p442, %p443
      %p446 = scmp.ne.s32.totalorder %s431, %s445
      %p447 = scmp.eq.s32.totalorder %s39, 0
      %p448 = por %p446, %p447
      %s450 = sadd.s32 %s449, 1
      %p453 = scmp.eq.s32.totalorder %s33, 1
      %p454 = scmp.ne.s32.totalorder %s449, %s451
      %p455 = scmp.eq.s32.totalorder %s33, 0
      %p456 = por %p454, %p455
      %p457 = scmp.ne.s32.totalorder %s449, %s451
      %p458 = scmp.eq.s32.totalorder %s38, 1
      %p459 = por %p457, %p458
      %p460 = scmp.ne.s32.totalorder %s451, %s452
      %p461 = scmp.eq.s32.totalorder %s38, 0
      %p462 = por %p460, %p461
      %p463 = scmp.ne.s32.totalorder %s451, %s452
      %p464 = scmp.eq.s32.totalorder %s39, 1
      %p465 = por %p463, %p464
      %p467 = scmp.ne.s32.totalorder %s452, %s466
      %p468 = scmp.eq.s32.totalorder %s39, 0
      %p469 = por %p467, %p468
      %s471 = sadd.s32 %s470, 1
      %p474 = scmp.eq.s32.totalorder %s33, 1
      %p475 = scmp.ne.s32.totalorder %s470, %s472
      %p476 = scmp.eq.s32.totalorder %s33, 0
      %p477 = por %p475, %p476
      %p478 = scmp.ne.s32.totalorder %s470, %s472
      %p479 = scmp.eq.s32.totalorder %s38, 1
      %p480 = por %p478, %p479
      %p481 = scmp.ne.s32.totalorder %s472, %s473
      %p482 = scmp.eq.s32.totalorder %s38, 0
      %p483 = por %p481, %p482
      %p484 = scmp.ne.s32.totalorder %s472, %s473
      %p485 = scmp.eq.s32.totalorder %s39, 1
      %p486 = por %p484, %p485
      %p488 = scmp.ne.s32.totalorder %s473, %s487
      %p489 = scmp.eq.s32.totalorder %s39, 0
      %p490 = por %p488, %p489
      %s492 = sadd.s32 %s491, 1
      %p495 = scmp.eq.s32.totalorder %s33, 1
      %p496 = scmp.ne.s32.totalorder %s491, %s493
      %p497 = scmp.eq.s32.totalorder %s33, 0
      %p498 = por %p496, %p497
      %p499 = scmp.ne.s32.totalorder %s491, %s493
      %p500 = scmp.eq.s32.totalorder %s38, 1
      %p501 = por %p499, %p500
      %p502 = scmp.ne.s32.totalorder %s493, %s494
      %p503 = scmp.eq.s32.totalorder %s38, 0
      %p504 = por %p502, %p503
      %p505 = scmp.ne.s32.totalorder %s493, %s494
      %p506 = scmp.eq.s32.totalorder %s39, 1
      %p507 = por %p505, %p506
      %p509 = scmp.ne.s32.totalorder %s494, %s508
      %p510 = scmp.eq.s32.totalorder %s39, 0
      %p511 = por %p509, %p510
      %s513 = sadd.s32 %s512, 1
      %p516 = scmp.eq.s32.totalorder %s33, 1
      %p517 = scmp.ne.s32.totalorder %s512, %s514
      %p518 = scmp.eq.s32.totalorder %s33, 0
      %p519 = por %p517, %p518
      %p520 = scmp.ne.s32.totalorder %s512, %s514
      %p521 = scmp.eq.s32.totalorder %s38, 1
      %p522 = por %p520, %p521
      %p523 = scmp.ne.s32.totalorder %s514, %s515
      %p524 = scmp.eq.s32.totalorder %s38, 0
      %p525 = por %p523, %p524
      %p526 = scmp.ne.s32.totalorder %s514, %s515
      %p527 = scmp.eq.s32.totalorder %s39, 1
      %p528 = por %p526, %p527
      %p530 = scmp.ne.s32.totalorder %s515, %s529
      %p531 = scmp.eq.s32.totalorder %s39, 0
      %p532 = por %p530, %p531
      %s534 = sadd.s32 %s533, 1
      %p537 = scmp.eq.s32.totalorder %s33, 1
      %p538 = scmp.ne.s32.totalorder %s533, %s535
      %p539 = scmp.eq.s32.totalorder %s33, 0
      %p540 = por %p538, %p539
      %p541 = scmp.ne.s32.totalorder %s533, %s535
      %p542 = scmp.eq.s32.totalorder %s38, 1
      %p543 = por %p541, %p542
      %p544 = scmp.ne.s32.totalorder %s535, %s536
      %p545 = scmp.eq.s32.totalorder %s38, 0
      %p546 = por %p544, %p545
      %p547 = scmp.ne.s32.totalorder %s535, %s536
      %p548 = scmp.eq.s32.totalorder %s39, 1
      %p549 = por %p547, %p548
      %p551 = scmp.ne.s32.totalorder %s536, %s550
      %p552 = scmp.eq.s32.totalorder %s39, 0
      %p553 = por %p551, %p552
      %s554 = ssub.s32 %s33, %s40
      %p555 = scmp.eq.s32.totalorder %s554, 0
      %s557 = sadd.s32 %s556, 1
      %s558 = scalar_select %p555, %s556, %s557
      %p561 = pneg %p555
      %p562 = scmp.eq.s32.totalorder %s33, 1
      %p563 = por %p561, %p562
      %p564 = scmp.ne.s32.totalorder %s556, %s559
      %p565 = scmp.eq.s32.totalorder %s33, 0
      %p566 = por %p564, %p565
      %p567 = scmp.ne.s32.totalorder %s556, %s559
      %p568 = scmp.eq.s32.totalorder %s38, 1
      %p569 = por %p567, %p568
      %p570 = scmp.ne.s32.totalorder %s559, %s560
      %p571 = scmp.eq.s32.totalorder %s38, 0
      %p572 = por %p570, %p571
      %p573 = scmp.ne.s32.totalorder %s559, %s560
      %p574 = scmp.eq.s32.totalorder %s39, 1
      %p575 = por %p573, %p574
      %p577 = scmp.ne.s32.totalorder %s560, %s576
      %p578 = scmp.eq.s32.totalorder %s39, 0
      %p579 = por %p577, %p578
      %p580 = scmp.le.s32.totalorder 1, %s33
      %p581 = scmp.lt.s32.totalorder %s33, 3
      %p582 = pnand %p580, %p581
      %p583 = pneg %p582
      // Predicated region
      $region9: #{transformer_decoder_first_layer.1} parent=5 // pred_check
        _
      $region10: #{transformer_decoder_first_layer.1} parent=5 // pred_check_branch
        %585 = sbr.rel (%p582) target = $region12
      $region11: #{transformer_decoder_first_layer.1} parent=5 // pred_region
        %s586 = ssub.s32 %s33, 1
        // Predicated region
        $region13: #{transformer_decoder_first_layer.1} parent=11 // pred_check
          %p587 = pneg %p210
        $region14: #{transformer_decoder_first_layer.1} parent=11 // pred_check_branch
          %589 = sbr.rel (%p587) target = $region16
        $region15: #{transformer_decoder_first_layer.1} parent=11 // pred_region
          _
        $region16: #{transformer_decoder_first_layer.1} parent=11 // pred_fallthru
          _
        // Predicated region
        $region17: #{transformer_decoder_first_layer.1} parent=11 // pred_check
          %p590 = pneg %p231
        $region18: #{transformer_decoder_first_layer.1} parent=11 // pred_check_branch
          %592 = sbr.rel (%p590) target = $region20
        $region19: #{transformer_decoder_first_layer.1} parent=11 // pred_region
          %s594 = ssub.s32 16, 16
          %595 = vsyncadd [#allocation3], %s594
          %s597 = sshll.u32 [#allocation2], 4
          %s598 = int_to_ptr.vmem [resolvable:$true] %s597
          %600 = dma.hbm_to_vmem [thread:$0]  %s7, 16, %s598, [#allocation3]
        $region20: #{transformer_decoder_first_layer.1} parent=11 // pred_fallthru
          _
        // Predicated region
        $region21: #{transformer_decoder_first_layer.1} parent=11 // pred_check
          %p601 = pneg %p252
        $region22: #{transformer_decoder_first_layer.1} parent=11 // pred_check_branch
          %603 = sbr.rel (%p601) target = $region24
        $region23: #{transformer_decoder_first_layer.1} parent=11 // pred_region
          _
        $region24: #{transformer_decoder_first_layer.1} parent=11 // pred_fallthru
          _
        // Predicated region
        $region25: #{transformer_decoder_first_layer.1} parent=11 // pred_check
          %p604 = pneg %p273
        $region26: #{transformer_decoder_first_layer.1} parent=11 // pred_check_branch
          %606 = sbr.rel (%p604) target = $region28
        $region27: #{transformer_decoder_first_layer.1} parent=11 // pred_region
          %s608 = ssub.s32 16, 16
          %609 = vsyncadd [#allocation5], %s608
          %s611 = sshll.u32 [#allocation4], 4
          %s612 = int_to_ptr.vmem [resolvable:$true] %s611
          %614 = dma.hbm_to_vmem [thread:$0]  %s9, 16, %s612, [#allocation5]
        $region28: #{transformer_decoder_first_layer.1} parent=11 // pred_fallthru
          _
        // Predicated region
        $region29: #{transformer_decoder_first_layer.1} parent=11 // pred_check
          %p615 = pneg %p294
        $region30: #{transformer_decoder_first_layer.1} parent=11 // pred_check_branch
          %617 = sbr.rel (%p615) target = $region32
        $region31: #{transformer_decoder_first_layer.1} parent=11 // pred_region
          _
        $region32: #{transformer_decoder_first_layer.1} parent=11 // pred_fallthru
          _
        // Predicated region
        $region33: #{transformer_decoder_first_layer.1} parent=11 // pred_check
          %p618 = pneg %p315
        $region34: #{transformer_decoder_first_layer.1} parent=11 // pred_check_branch
          %620 = sbr.rel (%p618) target = $region36
        $region35: #{transformer_decoder_first_layer.1} parent=11 // pred_region
          %s622 = ssub.s32 16, 16
          %623 = vsyncadd [#allocation5], %s622
          %s625 = sshll.u32 [#allocation6], 4
          %s626 = int_to_ptr.vmem [resolvable:$true] %s625
          %628 = dma.hbm_to_vmem [thread:$0]  %s11, 16, %s626, [#allocation5]
        $region36: #{transformer_decoder_first_layer.1} parent=11 // pred_fallthru
          _
        // Predicated region
        $region37: #{transformer_decoder_first_layer.1} parent=11 // pred_check
          %p629 = pneg %p336
        $region38: #{transformer_decoder_first_layer.1} parent=11 // pred_check_branch
          %631 = sbr.rel (%p629) target = $region40
        $region39: #{transformer_decoder_first_layer.1} parent=11 // pred_region
          _
        $region40: #{transformer_decoder_first_layer.1} parent=11 // pred_fallthru
          _
        // Predicated region
        $region41: #{transformer_decoder_first_layer.1} parent=11 // pred_check
          %p632 = pneg %p357
        $region42: #{transformer_decoder_first_layer.1} parent=11 // pred_check_branch
          %634 = sbr.rel (%p632) target = $region44
        $region43: #{transformer_decoder_first_layer.1} parent=11 // pred_region
          %s636 = ssub.s32 16, 16
          %637 = vsyncadd [#allocation8], %s636
          %s639 = sshll.u32 [#allocation7], 4
          %s640 = int_to_ptr.vmem [resolvable:$true] %s639
          %642 = dma.hbm_to_vmem [thread:$0]  %s13, 16, %s640, [#allocation8]
        $region44: #{transformer_decoder_first_layer.1} parent=11 // pred_fallthru
          _
        // Predicated region
        $region45: #{transformer_decoder_first_layer.1} parent=11 // pred_check
          %p643 = pneg %p378
        $region46: #{transformer_decoder_first_layer.1} parent=11 // pred_check_branch
          %645 = sbr.rel (%p643) target = $region48
        $region47: #{transformer_decoder_first_layer.1} parent=11 // pred_region
          _
        $region48: #{transformer_decoder_first_layer.1} parent=11 // pred_fallthru
          _
        // Predicated region
        $region49: #{transformer_decoder_first_layer.1} parent=11 // pred_check
          %p646 = pneg %p399
        $region50: #{transformer_decoder_first_layer.1} parent=11 // pred_check_branch
          %648 = sbr.rel (%p646) target = $region52
        $region51: #{transformer_decoder_first_layer.1} parent=11 // pred_region
          %s650 = ssub.s32 16, 16
          %651 = vsyncadd [#allocation8], %s650
          %s653 = sshll.u32 [#allocation9], 4
          %s654 = int_to_ptr.vmem [resolvable:$true] %s653
          %656 = dma.hbm_to_vmem [thread:$0]  %s15, 16, %s654, [#allocation8]
        $region52: #{transformer_decoder_first_layer.1} parent=11 // pred_fallthru
          _
        // Predicated region
        $region53: #{transformer_decoder_first_layer.1} parent=11 // pred_check
          %p657 = pneg %p420
        $region54: #{transformer_decoder_first_layer.1} parent=11 // pred_check_branch
          %659 = sbr.rel (%p657) target = $region56
        $region55: #{transformer_decoder_first_layer.1} parent=11 // pred_region
          _
        $region56: #{transformer_decoder_first_layer.1} parent=11 // pred_fallthru
          _
        // Predicated region
        $region57: #{transformer_decoder_first_layer.1} parent=11 // pred_check
          %p660 = pneg %p441
        $region58: #{transformer_decoder_first_layer.1} parent=11 // pred_check_branch
          %662 = sbr.rel (%p660) target = $region60
        $region59: #{transformer_decoder_first_layer.1} parent=11 // pred_region
          %s664 = ssub.s32 144, 144
          %665 = vsyncadd [#allocation11], %s664
          %s666 = sshll.u32 [#allocation10], 4
          %s667 = int_to_ptr.vmem [resolvable:$true] %s666
          %672 = dma.hbm_to_vmem [thread:$0]  %s17, 144, %s667, [#allocation11], 16, 16, 1
        $region60: #{transformer_decoder_first_layer.1} parent=11 // pred_fallthru
          _
        // Predicated region
        $region61: #{transformer_decoder_first_layer.1} parent=11 // pred_check
          %p673 = pneg %p462
        $region62: #{transformer_decoder_first_layer.1} parent=11 // pred_check_branch
          %675 = sbr.rel (%p673) target = $region64
        $region63: #{transformer_decoder_first_layer.1} parent=11 // pred_region
          %s677 = ssub.s32 128, 128
          %678 = vsyncadd [#allocation11], %s677
          %s679 = sshll.u32 [#allocation12], 4
          %s680 = int_to_ptr.vmem [resolvable:$true] %s679
          %685 = dma.hbm_to_vmem [thread:$0]  %s18, 128, %s680, [#allocation11], 16, 16, 1
        $region64: #{transformer_decoder_first_layer.1} parent=11 // pred_fallthru
          _
        // Predicated region
        $region65: #{transformer_decoder_first_layer.1} parent=11 // pred_check
          %p686 = pneg %p483
        $region66: #{transformer_decoder_first_layer.1} parent=11 // pred_check_branch
          %688 = sbr.rel (%p686) target = $region68
        $region67: #{transformer_decoder_first_layer.1} parent=11 // pred_region
          _
        $region68: #{transformer_decoder_first_layer.1} parent=11 // pred_fallthru
          _
        // Predicated region
        $region69: #{transformer_decoder_first_layer.1} parent=11 // pred_check
          %p689 = pneg %p504
        $region70: #{transformer_decoder_first_layer.1} parent=11 // pred_check_branch
          %691 = sbr.rel (%p689) target = $region72
        $region71: #{transformer_decoder_first_layer.1} parent=11 // pred_region
          _
        $region72: #{transformer_decoder_first_layer.1} parent=11 // pred_fallthru
          _
        // Predicated region
        $region73: #{transformer_decoder_first_layer.1} parent=11 // pred_check
          %p692 = pneg %p525
        $region74: #{transformer_decoder_first_layer.1} parent=11 // pred_check_branch
          %694 = sbr.rel (%p692) target = $region76
        $region75: #{transformer_decoder_first_layer.1} parent=11 // pred_region
          _
        $region76: #{transformer_decoder_first_layer.1} parent=11 // pred_fallthru
          _
        // Predicated region
        $region77: #{transformer_decoder_first_layer.1} parent=11 // pred_check
          %p695 = pneg %p546
        $region78: #{transformer_decoder_first_layer.1} parent=11 // pred_check_branch
          %697 = sbr.rel (%p695) target = $region80
        $region79: #{transformer_decoder_first_layer.1} parent=11 // pred_region
          _
        $region80: #{transformer_decoder_first_layer.1} parent=11 // pred_fallthru
          _
      $region12: #{transformer_decoder_first_layer.1} parent=5 // pred_fallthru
        _
      %p698 = scmp.lt.s32.totalorder %s33, 2
      // Predicated region
      $region81: #{transformer_decoder_first_layer.1} parent=5 // pred_check
        %p699 = pneg %p698
      $region82: #{transformer_decoder_first_layer.1} parent=5 // pred_check_branch
        %701 = sbr.rel (%p699) target = $region84
      $region83: #{transformer_decoder_first_layer.1} parent=5 // pred_region
        // Predicated region
        $region85: #{transformer_decoder_first_layer.1} parent=83 // pred_check
          %p702 = pneg %p53
        $region86: #{transformer_decoder_first_layer.1} parent=83 // pred_check_branch
          %704 = sbr.rel (%p702) target = $region88
        $region87: #{transformer_decoder_first_layer.1} parent=83 // pred_region
          %p705 = scmp.lt.s32.totalorder %s33, 1
          %s706 = scalar_select %p705, %s33, 1
          %s707 = smul.addr %s706, 8
          %s708 = scalar_lea.vmem %s0, %s707
        $region88: #{transformer_decoder_first_layer.1} parent=83 // pred_fallthru
          _
        // Predicated region
        $region89: #{transformer_decoder_first_layer.1} parent=83 // pred_check
          %p709 = pneg %p79
        $region90: #{transformer_decoder_first_layer.1} parent=83 // pred_check_branch
          %711 = sbr.rel (%p709) target = $region92
        $region91: #{transformer_decoder_first_layer.1} parent=83 // pred_region
          %p712 = scmp.lt.s32.totalorder %s33, 1
          %s713 = scalar_select %p712, %s33, 1
          %s714 = smul.addr %s713, 2
          %s715 = smul.addr %s714, 8
          %s716 = scalar_lea.vmem %s1, %s715
        $region92: #{transformer_decoder_first_layer.1} parent=83 // pred_fallthru
          _
        // Predicated region
        $region93: #{transformer_decoder_first_layer.1} parent=83 // pred_check
          %p717 = pneg %p105
        $region94: #{transformer_decoder_first_layer.1} parent=83 // pred_check_branch
          %719 = sbr.rel (%p717) target = $region96
        $region95: #{transformer_decoder_first_layer.1} parent=83 // pred_region
          %p720 = scmp.lt.s32.totalorder %s33, 1
          %s721 = scalar_select %p720, %s33, 1
          %s722 = smul.addr %s721, 2
          %s723 = smul.addr %s722, 8
          %s724 = scalar_lea.vmem %s2, %s723
        $region96: #{transformer_decoder_first_layer.1} parent=83 // pred_fallthru
          _
        // Predicated region
        $region97: #{transformer_decoder_first_layer.1} parent=83 // pred_check
          %p725 = pneg %p131
        $region98: #{transformer_decoder_first_layer.1} parent=83 // pred_check_branch
          %727 = sbr.rel (%p725) target = $region100
        $region99: #{transformer_decoder_first_layer.1} parent=83 // pred_region
          %p728 = scmp.lt.s32.totalorder %s33, 1
          %s729 = scalar_select %p728, %s33, 1
          %s730 = smul.addr %s729, 8
          %s731 = scalar_lea.vmem %s3, %s730
        $region100: #{transformer_decoder_first_layer.1} parent=83 // pred_fallthru
          _
        // Predicated region
        $region101: #{transformer_decoder_first_layer.1} parent=83 // pred_check
          %p732 = pneg %p157
        $region102: #{transformer_decoder_first_layer.1} parent=83 // pred_check_branch
          %734 = sbr.rel (%p732) target = $region104
        $region103: #{transformer_decoder_first_layer.1} parent=83 // pred_region
          %p735 = scmp.lt.s32.totalorder %s33, 1
          %s736 = scalar_select %p735, %s33, 1
          %s737 = smul.addr %s736, 8
          %s738 = scalar_lea.vmem %s4, %s737
        $region104: #{transformer_decoder_first_layer.1} parent=83 // pred_fallthru
          _
        // Predicated region
        $region105: #{transformer_decoder_first_layer.1} parent=83 // pred_check
          %p739 = pneg %p183
        $region106: #{transformer_decoder_first_layer.1} parent=83 // pred_check_branch
          %741 = sbr.rel (%p739) target = $region108
        $region107: #{transformer_decoder_first_layer.1} parent=83 // pred_region
          %p742 = scmp.lt.s32.totalorder %s33, 1
          %s743 = scalar_select %p742, %s33, 1
          %s744 = smul.addr %s743, 8
          %s745 = scalar_lea.vmem %s5, %s744
        $region108: #{transformer_decoder_first_layer.1} parent=83 // pred_fallthru
          _
      $region84: #{transformer_decoder_first_layer.1} parent=5 // pred_fallthru
        _
      %p746 = scmp.le.s32.totalorder 1, %s33
      %p747 = scmp.lt.s32.totalorder %s33, 3
      %p748 = pnand %p746, %p747
      %p749 = pneg %p748
      // Predicated region
      $region109: #{transformer_decoder_first_layer.1} parent=5 // pred_check
        _
      $region110: #{transformer_decoder_first_layer.1} parent=5 // pred_check_branch
        %751 = sbr.rel (%p748) target = $region112
      $region111: #{transformer_decoder_first_layer.1} parent=5 // pred_region
        %s752 = ssub.s32 %s33, 1
        // Predicated region
        $region113: #{transformer_decoder_first_layer.1} parent=111 // pred_check
          %p753 = pneg %p231
        $region114: #{transformer_decoder_first_layer.1} parent=111 // pred_check_branch
          %755 = sbr.rel (%p753) target = $region116
        $region115: #{transformer_decoder_first_layer.1} parent=111 // pred_region
          %756 = dma.done [#allocation3], 16
        $region116: #{transformer_decoder_first_layer.1} parent=111 // pred_fallthru
          _
        // Predicated region
        $region117: #{transformer_decoder_first_layer.1} parent=111 // pred_check
          %p757 = pneg %p273
        $region118: #{transformer_decoder_first_layer.1} parent=111 // pred_check_branch
          %759 = sbr.rel (%p757) target = $region120
        $region119: #{transformer_decoder_first_layer.1} parent=111 // pred_region
          %760 = dma.done [#allocation5], 16
        $region120: #{transformer_decoder_first_layer.1} parent=111 // pred_fallthru
          _
        // Predicated region
        $region121: #{transformer_decoder_first_layer.1} parent=111 // pred_check
          %p761 = pneg %p315
        $region122: #{transformer_decoder_first_layer.1} parent=111 // pred_check_branch
          %763 = sbr.rel (%p761) target = $region124
        $region123: #{transformer_decoder_first_layer.1} parent=111 // pred_region
          %764 = dma.done [#allocation5], 16
        $region124: #{transformer_decoder_first_layer.1} parent=111 // pred_fallthru
          _
        // Predicated region
        $region125: #{transformer_decoder_first_layer.1} parent=111 // pred_check
          %p765 = pneg %p357
        $region126: #{transformer_decoder_first_layer.1} parent=111 // pred_check_branch
          %767 = sbr.rel (%p765) target = $region128
        $region127: #{transformer_decoder_first_layer.1} parent=111 // pred_region
          %768 = dma.done [#allocation8], 16
        $region128: #{transformer_decoder_first_layer.1} parent=111 // pred_fallthru
          _
        // Predicated region
        $region129: #{transformer_decoder_first_layer.1} parent=111 // pred_check
          %p769 = pneg %p399
        $region130: #{transformer_decoder_first_layer.1} parent=111 // pred_check_branch
          %771 = sbr.rel (%p769) target = $region132
        $region131: #{transformer_decoder_first_layer.1} parent=111 // pred_region
          %772 = dma.done [#allocation8], 16
        $region132: #{transformer_decoder_first_layer.1} parent=111 // pred_fallthru
          _
        // Predicated region
        $region133: #{transformer_decoder_first_layer.1} parent=111 // pred_check
          %p773 = pneg %p441
        $region134: #{transformer_decoder_first_layer.1} parent=111 // pred_check_branch
          %775 = sbr.rel (%p773) target = $region136
        $region135: #{transformer_decoder_first_layer.1} parent=111 // pred_region
          %776 = dma.done [#allocation11], 144
        $region136: #{transformer_decoder_first_layer.1} parent=111 // pred_fallthru
          _
        // Predicated region
        $region137: #{transformer_decoder_first_layer.1} parent=111 // pred_check
          %p777 = pneg %p462
        $region138: #{transformer_decoder_first_layer.1} parent=111 // pred_check_branch
          %779 = sbr.rel (%p777) target = $region140
        $region139: #{transformer_decoder_first_layer.1} parent=111 // pred_region
          %780 = dma.done [#allocation11], 128
        $region140: #{transformer_decoder_first_layer.1} parent=111 // pred_fallthru
          _
        %p781 = scmp.lt.s32.totalorder %s38, 1
        %s782 = scalar_select %p781, %s38, 1
        %s783 = smul.addr %s782, 8
        %s784 = scalar_lea.vmem %s0, %s783
        %p785 = pneg %p59
        %p786 = pneg %p56
        %p787 = scmp.lt.s32.totalorder %s38, 1
        %s788 = scalar_select %p787, %s38, 1
        %s789 = smul.addr %s788, 2
        %s790 = smul.addr %s789, 8
        %s791 = scalar_lea.vmem %s1, %s790
        %p792 = pneg %p85
        %p793 = pneg %p82
        %p794 = scmp.lt.s32.totalorder %s38, 1
        %s795 = scalar_select %p794, %s38, 1
        %s796 = smul.addr %s795, 2
        %s797 = smul.addr %s796, 8
        %s798 = scalar_lea.vmem %s2, %s797
        %p799 = pneg %p111
        %p800 = pneg %p108
        %p801 = scmp.lt.s32.totalorder %s38, 1
        %s802 = scalar_select %p801, %s38, 1
        %s803 = smul.addr %s802, 8
        %s804 = scalar_lea.vmem %s3, %s803
        %p805 = pneg %p137
        %p806 = pneg %p134
        %p807 = scmp.lt.s32.totalorder %s38, 1
        %s808 = scalar_select %p807, %s38, 1
        %s809 = smul.addr %s808, 8
        %s810 = scalar_lea.vmem %s4, %s809
        %p811 = pneg %p163
        %p812 = pneg %p160
        %p813 = scmp.lt.s32.totalorder %s38, 1
        %s814 = scalar_select %p813, %s38, 1
        %s815 = smul.addr %s814, 8
        %s816 = scalar_lea.vmem %s5, %s815
        %p817 = pneg %p189
        %p818 = pneg %p186
        %p819 = pneg %p210
        %p820 = pneg %p207
        %p821 = pneg %p231
        %p822 = pneg %p228
        %p823 = pneg %p252
        %p824 = pneg %p249
        %p825 = pneg %p273
        %p826 = pneg %p270
        %p827 = pneg %p294
        %p828 = pneg %p291
        %p829 = pneg %p315
        %p830 = pneg %p312
        %p831 = pneg %p336
        %p832 = pneg %p333
        %p833 = pneg %p357
        %p834 = pneg %p354
        %p835 = pneg %p378
        %p836 = pneg %p375
        %p837 = pneg %p399
        %p838 = pneg %p396
        %p839 = pneg %p420
        %p840 = pneg %p417
        %p841 = pneg %p441
        %p842 = pneg %p438
        %p843 = pneg %p462
        %p844 = pneg %p459
        %p845 = pneg %p483
        %p846 = pneg %p480
        %p847 = pneg %p504
        %p848 = pneg %p501
        %p849 = pneg %p525
        %p850 = pneg %p522
        %p851 = pneg %p546
        %p852 = pneg %p543
        %p853 = pneg %p572
        %p854 = pneg %p569
        %p855 = scmp.lt.s32.totalorder %s38, 1
        %s856 = scalar_select %p855, %s38, 1
        %s857 = smul.addr %s856, 8
        %s858 = scalar_lea.vmem %s23, %s857
        %p859 = scmp.lt.s32.totalorder %s38, 1
        %s860 = scalar_select %p859, %s38, 1
        %s861 = smul.addr %s860, 8
        %s862 = scalar_lea.vmem %s0, %s861
        %p863 = scmp.lt.s32.totalorder %s38, 1
        %s864 = scalar_select %p863, %s38, 1
        %s865 = smul.addr %s864, 2
        %s866 = smul.addr %s865, 8
        %s867 = scalar_lea.vmem %s1, %s866
        %p868 = scmp.lt.s32.totalorder %s38, 1
        %s869 = scalar_select %p868, %s38, 1
        %s870 = smul.addr %s869, 2
        %s871 = smul.addr %s870, 8
        %s872 = scalar_lea.vmem %s2, %s871
        %p873 = scmp.lt.s32.totalorder %s38, 1
        %s874 = scalar_select %p873, %s38, 1
        %s875 = smul.addr %s874, 8
        %s876 = scalar_lea.vmem %s3, %s875
        %p877 = scmp.lt.s32.totalorder %s38, 1
        %s878 = scalar_select %p877, %s38, 1
        %s879 = smul.addr %s878, 8
        %s880 = scalar_lea.vmem %s4, %s879
        %p881 = scmp.lt.s32.totalorder %s38, 1
        %s882 = scalar_select %p881, %s38, 1
        %s883 = smul.addr %s882, 8
        %s884 = scalar_lea.vmem %s5, %s883
        %p885 = scmp.lt.s32.totalorder %s38, 1
        %s886 = scalar_select %p885, %s38, 1
        %s887 = smul.addr %s886, 8
        %s888 = scalar_lea.vmem %s23, %s887
        %v890 = vld [vmem:[%s862] sm:$0xff]
        %v891 = vld [vmem:[%s876] sm:$0xff]
        %v892 = vld [vmem:[%s6] sm:$0xf]
        %v893 = vld [vmem:[%s6 + $0x4] sm:$0xf]
        %v894 = vld [vmem:[%s6 + $0x8] sm:$0xf]
        %v895 = vld [vmem:[%s6 + $0xc] sm:$0xf]
        %v896 = vld [vmem:[#allocation2] sm:$0x1]
        %v897 = vpack.c.bf16 %v890, %v890
        %v899 = vlaneseq
        %v900 = vshrl.u32 %v899, 7
        %v901 = vsub.s32 0, %v900
        %v902 = vrot.slane %v896, %v901
        %v908 = vunpack.c.l.b16 %v892
        %v909 = vunpack.c.l.b16 %v893
        %v910 = vunpack.c.l.b16 %v894
        %v911 = vunpack.c.l.b16 %v895
        %v912 = vpack.c.b16 %v909, %v908
        %v913 = vpack.c.b16 %v911, %v910
        %vm916 = vcmask 261120
        %v918 = vsel %vm916, %v897, 0
        %920 = vmatprep.subr.bf16.mxu0 0
        %921 = vmatpush1.bf16.msra.mxu0 %v912
        %922 = vmatprep.subr.bf16.mxu0 0
        %923 = vmatpush1.bf16.msra.mxu0 %v913
        %924 = vmatprep.subr.bf16.mxu0 0
        %925 = vmatpush1.bf16.msra.mxu0 0
        %926 = vmatprep.subr.bf16.mxu0 0
        %927 = vmatpush1.bf16.msra.mxu0 0
        %928 = vmatprep.subr.bf16.mxu0 0
        %929 = vmatpush1.bf16.msra.mxu0 0
        %930 = vmatprep.subr.bf16.mxu0 0
        %931 = vmatpush1.bf16.msra.mxu0 0
        %932 = vmatprep.subr.bf16.mxu0 0
        %933 = vmatpush1.bf16.msra.mxu0 0
        %934 = vmatprep.subr.bf16.mxu0 0
        %935 = vmatpush1.bf16.msra.mxu0 0
        %936 = vmatprep.subr.bf16.mxu0 0
        %937 = vmatpush1.bf16.msra.mxu0 0
        %938 = vmatprep.subr.bf16.mxu0 0
        %939 = vmatpush1.bf16.msra.mxu0 0
        %940 = vmatprep.subr.bf16.mxu0 0
        %941 = vmatpush1.bf16.msra.mxu0 0
        %942 = vmatprep.subr.bf16.mxu0 0
        %943 = vmatpush1.bf16.msra.mxu0 0
        %944 = vmatprep.subr.bf16.mxu0 0
        %945 = vmatpush1.bf16.msra.mxu0 0
        %946 = vmatprep.subr.bf16.mxu0 0
        %947 = vmatpush1.bf16.msra.mxu0 0
        %948 = vmatprep.subr.bf16.mxu0 0
        %949 = vmatpush1.bf16.msra.mxu0 0
        %950 = vmatprep.subr.bf16.mxu0 0
        %951 = vmatpush1.bf16.msra.mxu0 0
        %952 = vmatprep.mubr.bf16.mxu0 0
        %953 = vmatmul.mubr.bf16.gmra.mrb[0].mxu0 %v918
        %v954 = vpop.f32.mrb[0].mxu0
        %v955 = vadd.f32 %v902, %v954
        %v956 = vpop.f32.mrb[0].mxu0
        %v957 = vpop.f32.mrb[0].mxu0
        %v958 = vpop.f32.mrb[0].mxu0
        %959 = vdwg.mxu0
        %v960 = vld [vmem:[%s8] sm:$0xf]
        %v961 = vld [vmem:[%s8 + $0x4] sm:$0xf]
        %v962 = vld [vmem:[%s8 + $0x8] sm:$0xf]
        %v963 = vld [vmem:[%s8 + $0xc] sm:$0xf]
        %v964 = vld [vmem:[#allocation4] sm:$0x1]
        %v965 = vpack.c.bf16 %v891, %v891
        %v967 = vlaneseq
        %v968 = vshrl.u32 %v967, 7
        %v969 = vsub.s32 0, %v968
        %v970 = vrot.slane %v964, %v969
        %v976 = vunpack.c.l.b16 %v960
        %v977 = vunpack.c.l.b16 %v961
        %v978 = vunpack.c.l.b16 %v962
        %v979 = vunpack.c.l.b16 %v963
        %v980 = vpack.c.b16 %v977, %v976
        %v981 = vpack.c.b16 %v979, %v978
        %v985 = vsel %vm916, %v965, 0
        %987 = vmatprep.subr.bf16.mxu0 0
        %988 = vmatpush1.bf16.msra.mxu0 %v980
        %989 = vmatprep.subr.bf16.mxu0 0
        %990 = vmatpush1.bf16.msra.mxu0 %v981
        %991 = vmatprep.subr.bf16.mxu0 0
        %992 = vmatpush1.bf16.msra.mxu0 0
        %993 = vmatprep.subr.bf16.mxu0 0
        %994 = vmatpush1.bf16.msra.mxu0 0
        %995 = vmatprep.subr.bf16.mxu0 0
        %996 = vmatpush1.bf16.msra.mxu0 0
        %997 = vmatprep.subr.bf16.mxu0 0
        %998 = vmatpush1.bf16.msra.mxu0 0
        %999 = vmatprep.subr.bf16.mxu0 0
        %1000 = vmatpush1.bf16.msra.mxu0 0
        %1001 = vmatprep.subr.bf16.mxu0 0
        %1002 = vmatpush1.bf16.msra.mxu0 0
        %1003 = vmatprep.subr.bf16.mxu0 0
        %1004 = vmatpush1.bf16.msra.mxu0 0
        %1005 = vmatprep.subr.bf16.mxu0 0
        %1006 = vmatpush1.bf16.msra.mxu0 0
        %1007 = vmatprep.subr.bf16.mxu0 0
        %1008 = vmatpush1.bf16.msra.mxu0 0
        %1009 = vmatprep.subr.bf16.mxu0 0
        %1010 = vmatpush1.bf16.msra.mxu0 0
        %1011 = vmatprep.subr.bf16.mxu0 0
        %1012 = vmatpush1.bf16.msra.mxu0 0
        %1013 = vmatprep.subr.bf16.mxu0 0
        %1014 = vmatpush1.bf16.msra.mxu0 0
        %1015 = vmatprep.subr.bf16.mxu0 0
        %1016 = vmatpush1.bf16.msra.mxu0 0
        %1017 = vmatprep.subr.bf16.mxu0 0
        %1018 = vmatpush1.bf16.msra.mxu0 0
        %1019 = vmatprep.mubr.bf16.mxu0 0
        %1020 = vmatmul.mubr.bf16.gmra.mrb[0].mxu0 %v985
        %v1021 = vpop.f32.mrb[0].mxu0
        %v1022 = vadd.f32 %v970, %v1021
        %v1023 = vpop.f32.mrb[0].mxu0
        %v1024 = vpop.f32.mrb[0].mxu0
        %v1025 = vpop.f32.mrb[0].mxu0
        %1026 = vdwg.mxu0
        %v1027 = vadd.f32 %v955, %v1022
        %v1028 = vld [vmem:[%s16] sm:$0xf]
        %v1029 = vld [vmem:[%s16 + $0x4] sm:$0xf]
        %v1030 = vld [vmem:[%s16 + $0x8] sm:$0xf]
        %v1031 = vld [vmem:[%s16 + $0xc] sm:$0xf]
        %v1032 = vld [vmem:[#allocation10] sm:$0x1]
        %v1033 = vmul.f32 %v1027, 0.35355338
        %v1034 = vpack.c.bf16 %v1033, %v1033
        %v1035 = vpack.c.bf16 %v1027, %v1027
        %1037 = vrot.lane.b32.xlu0 %v1035, 96
        %v1038 = vpop.permute.xlu0 %1037
        %vm1039 = vcmask 64512
        %v1041 = vsel %vm1039, %v1034, 0
        %v1044 = vsel %vm1039, %v1038, 0
        %1046 = vmatprep.subr.bf16.mxu0 0
        %1047 = vmatpush1.bf16.xpose.msra.mxu0 %v1044
        %1048 = vmatprep.subr.bf16.mxu0 0
        %1049 = vmatpush1.bf16.xpose.msra.mxu0 0
        %1050 = vmatprep.subr.bf16.mxu0 0
        %1051 = vmatpush1.bf16.xpose.msra.mxu0 0
        %1052 = vmatprep.subr.bf16.mxu0 0
        %1053 = vmatpush1.bf16.xpose.msra.mxu0 0
        %1054 = vmatprep.subr.bf16.mxu0 0
        %1055 = vmatpush1.bf16.xpose.msra.mxu0 0
        %1056 = vmatprep.subr.bf16.mxu0 0
        %1057 = vmatpush1.bf16.xpose.msra.mxu0 0
        %1058 = vmatprep.subr.bf16.mxu0 0
        %1059 = vmatpush1.bf16.xpose.msra.mxu0 0
        %1060 = vmatprep.subr.bf16.mxu0 0
        %1061 = vmatpush1.bf16.xpose.msra.mxu0 0
        %1062 = vmatprep.subr.bf16.mxu0 0
        %1063 = vmatpush1.bf16.xpose.msra.mxu0 0
        %1064 = vmatprep.subr.bf16.mxu0 0
        %1065 = vmatpush1.bf16.xpose.msra.mxu0 0
        %1066 = vmatprep.subr.bf16.mxu0 0
        %1067 = vmatpush1.bf16.xpose.msra.mxu0 0
        %1068 = vmatprep.subr.bf16.mxu0 0
        %1069 = vmatpush1.bf16.xpose.msra.mxu0 0
        %1070 = vmatprep.subr.bf16.mxu0 0
        %1071 = vmatpush1.bf16.xpose.msra.mxu0 0
        %1072 = vmatprep.subr.bf16.mxu0 0
        %1073 = vmatpush1.bf16.xpose.msra.mxu0 0
        %1074 = vmatprep.subr.bf16.mxu0 0
        %1075 = vmatpush1.bf16.xpose.msra.mxu0 0
        %1076 = vmatprep.subr.bf16.mxu0 0
        %1077 = vmatpush1.bf16.xpose.msra.mxu0 0
        %1078 = vmatprep.mubr.bf16.mxu0 0
        %1079 = vmatmul.mubr.bf16.gmra.mrb[0].mxu0 %v1041
        %v1080 = vpop.f32.mrb[0].mxu0
        %v1081 = vadd.f32 0.0, %v1080
        %v1082 = vpop.f32.mrb[0].mxu0
        %v1083 = vpop.f32.mrb[0].mxu0
        %v1084 = vpop.f32.mrb[0].mxu0
        %1085 = vdwg.mxu0
        %v1086 = vsel %vm1039, %v1081, -inf
        %1087 = vmax.xlane.f32.xlu0 %v1086
        %v1088 = vpop.xlane.xlu0 %1087
        %v1089 = vsub.f32 %v1081, %v1088
        %v1090 = vmul.f32 %v1089, 1.442695
        %v1091 = vpow.pop %v1090
        %v1092 = vsel %vm1039, %v1091, 0.0
        %1093 = vadd.xlane.f32.xlu0 %v1092
        %v1094 = vpop.xlane.xlu0 %1093
        %v1095 = vrcp.pop %v1094
        %v1096 = vmul.f32 %v1091, %v1095
        %v1097 = vpack.c.bf16 %v955, %v955
        %v1098 = vpack.c.bf16 %v1096, %v1096
        %1100 = vrot.lane.b32.xlu0 %v1097, 64
        %v1101 = vpop.permute.xlu0 %1100
        %v1103 = vsel %vm1039, %v1098, 0
        %vm1105 = vcmask 1043456
        %v1107 = vsel %vm1105, %v1101, 0
        %1109 = vmatprep.subr.bf16.mxu0 0
        %1110 = vmatpush1.bf16.msra.mxu0 %v1107
        %1111 = vmatprep.subr.bf16.mxu0 0
        %1112 = vmatpush1.bf16.msra.mxu0 0
        %1113 = vmatprep.subr.bf16.mxu0 0
        %1114 = vmatpush1.bf16.msra.mxu0 0
        %1115 = vmatprep.subr.bf16.mxu0 0
        %1116 = vmatpush1.bf16.msra.mxu0 0
        %1117 = vmatprep.subr.bf16.mxu0 0
        %1118 = vmatpush1.bf16.msra.mxu0 0
        %1119 = vmatprep.subr.bf16.mxu0 0
        %1120 = vmatpush1.bf16.msra.mxu0 0
        %1121 = vmatprep.subr.bf16.mxu0 0
        %1122 = vmatpush1.bf16.msra.mxu0 0
        %1123 = vmatprep.subr.bf16.mxu0 0
        %1124 = vmatpush1.bf16.msra.mxu0 0
        %1125 = vmatprep.subr.bf16.mxu0 0
        %1126 = vmatpush1.bf16.msra.mxu0 0
        %1127 = vmatprep.subr.bf16.mxu0 0
        %1128 = vmatpush1.bf16.msra.mxu0 0
        %1129 = vmatprep.subr.bf16.mxu0 0
        %1130 = vmatpush1.bf16.msra.mxu0 0
        %1131 = vmatprep.subr.bf16.mxu0 0
        %1132 = vmatpush1.bf16.msra.mxu0 0
        %1133 = vmatprep.subr.bf16.mxu0 0
        %1134 = vmatpush1.bf16.msra.mxu0 0
        %1135 = vmatprep.subr.bf16.mxu0 0
        %1136 = vmatpush1.bf16.msra.mxu0 0
        %1137 = vmatprep.subr.bf16.mxu0 0
        %1138 = vmatpush1.bf16.msra.mxu0 0
        %1139 = vmatprep.subr.bf16.mxu0 0
        %1140 = vmatpush1.bf16.msra.mxu0 0
        %1141 = vmatprep.mubr.bf16.mxu0 0
        %1142 = vmatmul.mubr.bf16.gmra.mrb[0].mxu0 %v1103
        %v1143 = vpop.f32.mrb[0].mxu0
        %v1144 = vadd.f32 0.0, %v1143
        %v1145 = vpop.f32.mrb[0].mxu0
        %v1146 = vpop.f32.mrb[0].mxu0
        %v1147 = vpop.f32.mrb[0].mxu0
        %1148 = vdwg.mxu0
        %v1149 = vpack.c.bf16 %v1144, %v1144
        %1151 = vrot.lane.b32.xlu0 %v1034, 120
        %v1152 = vpop.permute.xlu0 %1151
        %1153 = vrot.lane.b32.xlu0 %v1035, 88
        %v1154 = vpop.permute.xlu0 %1153
        %v1156 = vsel %vm1039, %v1152, 0
        %v1159 = vsel %vm1039, %v1154, 0
        %1161 = vmatprep.subr.bf16.mxu0 0
        %1162 = vmatpush1.bf16.xpose.msra.mxu0 %v1159
        %1163 = vmatprep.subr.bf16.mxu0 0
        %1164 = vmatpush1.bf16.xpose.msra.mxu0 0
        %1165 = vmatprep.subr.bf16.mxu0 0
        %1166 = vmatpush1.bf16.xpose.msra.mxu0 0
        %1167 = vmatprep.subr.bf16.mxu0 0
        %1168 = vmatpush1.bf16.xpose.msra.mxu0 0
        %1169 = vmatprep.subr.bf16.mxu0 0
        %1170 = vmatpush1.bf16.xpose.msra.mxu0 0
        %1171 = vmatprep.subr.bf16.mxu0 0
        %1172 = vmatpush1.bf16.xpose.msra.mxu0 0
        %1173 = vmatprep.subr.bf16.mxu0 0
        %1174 = vmatpush1.bf16.xpose.msra.mxu0 0
        %1175 = vmatprep.subr.bf16.mxu0 0
        %1176 = vmatpush1.bf16.xpose.msra.mxu0 0
        %1177 = vmatprep.subr.bf16.mxu0 0
        %1178 = vmatpush1.bf16.xpose.msra.mxu0 0
        %1179 = vmatprep.subr.bf16.mxu0 0
        %1180 = vmatpush1.bf16.xpose.msra.mxu0 0
        %1181 = vmatprep.subr.bf16.mxu0 0
        %1182 = vmatpush1.bf16.xpose.msra.mxu0 0
        %1183 = vmatprep.subr.bf16.mxu0 0
        %1184 = vmatpush1.bf16.xpose.msra.mxu0 0
        %1185 = vmatprep.subr.bf16.mxu0 0
        %1186 = vmatpush1.bf16.xpose.msra.mxu0 0
        %1187 = vmatprep.subr.bf16.mxu0 0
        %1188 = vmatpush1.bf16.xpose.msra.mxu0 0
        %1189 = vmatprep.subr.bf16.mxu0 0
        %1190 = vmatpush1.bf16.xpose.msra.mxu0 0
        %1191 = vmatprep.subr.bf16.mxu0 0
        %1192 = vmatpush1.bf16.xpose.msra.mxu0 0
        %1193 = vmatprep.mubr.bf16.mxu0 0
        %1194 = vmatmul.mubr.bf16.gmra.mrb[0].mxu0 %v1156
        %v1195 = vpop.f32.mrb[0].mxu0
        %v1196 = vadd.f32 0.0, %v1195
        %v1197 = vpop.f32.mrb[0].mxu0
        %v1198 = vpop.f32.mrb[0].mxu0
        %v1199 = vpop.f32.mrb[0].mxu0
        %1200 = vdwg.mxu0
        %v1201 = vsel %vm1039, %v1196, -inf
        %1202 = vmax.xlane.f32.xlu0 %v1201
        %v1203 = vpop.xlane.xlu0 %1202
        %v1204 = vsub.f32 %v1196, %v1203
        %v1205 = vmul.f32 %v1204, 1.442695
        %v1206 = vpow.pop %v1205
        %v1207 = vsel %vm1039, %v1206, 0.0
        %1208 = vadd.xlane.f32.xlu0 %v1207
        %v1209 = vpop.xlane.xlu0 %1208
        %v1210 = vrcp.pop %v1209
        %v1211 = vmul.f32 %v1206, %v1210
        %v1212 = vpack.c.bf16 %v1211, %v1211
        %1213 = vrot.lane.b32.xlu0 %v1097, 56
        %v1214 = vpop.permute.xlu0 %1213
        %v1216 = vsel %vm1039, %v1212, 0
        %v1219 = vsel %vm1105, %v1214, 0
        %1221 = vmatprep.subr.bf16.mxu0 0
        %1222 = vmatpush1.bf16.msra.mxu0 %v1219
        %1223 = vmatprep.subr.bf16.mxu0 0
        %1224 = vmatpush1.bf16.msra.mxu0 0
        %1225 = vmatprep.subr.bf16.mxu0 0
        %1226 = vmatpush1.bf16.msra.mxu0 0
        %1227 = vmatprep.subr.bf16.mxu0 0
        %1228 = vmatpush1.bf16.msra.mxu0 0
        %1229 = vmatprep.subr.bf16.mxu0 0
        %1230 = vmatpush1.bf16.msra.mxu0 0
        %1231 = vmatprep.subr.bf16.mxu0 0
        %1232 = vmatpush1.bf16.msra.mxu0 0
        %1233 = vmatprep.subr.bf16.mxu0 0
        %1234 = vmatpush1.bf16.msra.mxu0 0
        %1235 = vmatprep.subr.bf16.mxu0 0
        %1236 = vmatpush1.bf16.msra.mxu0 0
        %1237 = vmatprep.subr.bf16.mxu0 0
        %1238 = vmatpush1.bf16.msra.mxu0 0
        %1239 = vmatprep.subr.bf16.mxu0 0
        %1240 = vmatpush1.bf16.msra.mxu0 0
        %1241 = vmatprep.subr.bf16.mxu0 0
        %1242 = vmatpush1.bf16.msra.mxu0 0
        %1243 = vmatprep.subr.bf16.mxu0 0
        %1244 = vmatpush1.bf16.msra.mxu0 0
        %1245 = vmatprep.subr.bf16.mxu0 0
        %1246 = vmatpush1.bf16.msra.mxu0 0
        %1247 = vmatprep.subr.bf16.mxu0 0
        %1248 = vmatpush1.bf16.msra.mxu0 0
        %1249 = vmatprep.subr.bf16.mxu0 0
        %1250 = vmatpush1.bf16.msra.mxu0 0
        %1251 = vmatprep.subr.bf16.mxu0 0
        %1252 = vmatpush1.bf16.msra.mxu0 0
        %1253 = vmatprep.mubr.bf16.mxu0 0
        %1254 = vmatmul.mubr.bf16.gmra.mrb[0].mxu0 %v1216
        %v1255 = vpop.f32.mrb[0].mxu0
        %v1256 = vadd.f32 0.0, %v1255
        %v1257 = vpop.f32.mrb[0].mxu0
        %v1258 = vpop.f32.mrb[0].mxu0
        %v1259 = vpop.f32.mrb[0].mxu0
        %1260 = vdwg.mxu0
        %v1261 = vpack.c.bf16 %v1256, %v1256
        %v1263 = vsel %vm1039, %v1261, 0
        %v1266 = vsel %vm1105, %v1029, 0
        %1268 = vmatprep.subr.bf16.mxu0 0
        %1269 = vmatpush1.bf16.msra.mxu0 %v1266
        %1270 = vmatprep.subr.bf16.mxu0 0
        %1271 = vmatpush1.bf16.msra.mxu0 0
        %1272 = vmatprep.subr.bf16.mxu0 0
        %1273 = vmatpush1.bf16.msra.mxu0 0
        %1274 = vmatprep.subr.bf16.mxu0 0
        %1275 = vmatpush1.bf16.msra.mxu0 0
        %1276 = vmatprep.subr.bf16.mxu0 0
        %1277 = vmatpush1.bf16.msra.mxu0 0
        %1278 = vmatprep.subr.bf16.mxu0 0
        %1279 = vmatpush1.bf16.msra.mxu0 0
        %1280 = vmatprep.subr.bf16.mxu0 0
        %1281 = vmatpush1.bf16.msra.mxu0 0
        %1282 = vmatprep.subr.bf16.mxu0 0
        %1283 = vmatpush1.bf16.msra.mxu0 0
        %1284 = vmatprep.subr.bf16.mxu0 0
        %1285 = vmatpush1.bf16.msra.mxu0 0
        %1286 = vmatprep.subr.bf16.mxu0 0
        %1287 = vmatpush1.bf16.msra.mxu0 0
        %1288 = vmatprep.subr.bf16.mxu0 0
        %1289 = vmatpush1.bf16.msra.mxu0 0
        %1290 = vmatprep.subr.bf16.mxu0 0
        %1291 = vmatpush1.bf16.msra.mxu0 0
        %1292 = vmatprep.subr.bf16.mxu0 0
        %1293 = vmatpush1.bf16.msra.mxu0 0
        %1294 = vmatprep.subr.bf16.mxu0 0
        %1295 = vmatpush1.bf16.msra.mxu0 0
        %1296 = vmatprep.subr.bf16.mxu0 0
        %1297 = vmatpush1.bf16.msra.mxu0 0
        %1298 = vmatprep.subr.bf16.mxu0 0
        %1299 = vmatpush1.bf16.msra.mxu0 0
        %1300 = vmatprep.mubr.bf16.mxu0 0
        %1301 = vmatmul.mubr.bf16.gmra.mrb[0].mxu0 %v1263
        %v1302 = vpop.f32.mrb[0].mxu0
        %v1303 = vadd.f32 0.0, %v1302
        %v1304 = vpop.f32.mrb[0].mxu0
        %v1305 = vpop.f32.mrb[0].mxu0
        %v1306 = vpop.f32.mrb[0].mxu0
        %1307 = vdwg.mxu0
        %v1309 = vsel %vm1039, %v1149, 0
        %v1312 = vsel %vm1105, %v1028, 0
        %1314 = vmatprep.subr.bf16.mxu0 0
        %1315 = vmatpush1.bf16.msra.mxu0 %v1312
        %1316 = vmatprep.subr.bf16.mxu0 0
        %1317 = vmatpush1.bf16.msra.mxu0 0
        %1318 = vmatprep.subr.bf16.mxu0 0
        %1319 = vmatpush1.bf16.msra.mxu0 0
        %1320 = vmatprep.subr.bf16.mxu0 0
        %1321 = vmatpush1.bf16.msra.mxu0 0
        %1322 = vmatprep.subr.bf16.mxu0 0
        %1323 = vmatpush1.bf16.msra.mxu0 0
        %1324 = vmatprep.subr.bf16.mxu0 0
        %1325 = vmatpush1.bf16.msra.mxu0 0
        %1326 = vmatprep.subr.bf16.mxu0 0
        %1327 = vmatpush1.bf16.msra.mxu0 0
        %1328 = vmatprep.subr.bf16.mxu0 0
        %1329 = vmatpush1.bf16.msra.mxu0 0
        %1330 = vmatprep.subr.bf16.mxu0 0
        %1331 = vmatpush1.bf16.msra.mxu0 0
        %1332 = vmatprep.subr.bf16.mxu0 0
        %1333 = vmatpush1.bf16.msra.mxu0 0
        %1334 = vmatprep.subr.bf16.mxu0 0
        %1335 = vmatpush1.bf16.msra.mxu0 0
        %1336 = vmatprep.subr.bf16.mxu0 0
        %1337 = vmatpush1.bf16.msra.mxu0 0
        %1338 = vmatprep.subr.bf16.mxu0 0
        %1339 = vmatpush1.bf16.msra.mxu0 0
        %1340 = vmatprep.subr.bf16.mxu0 0
        %1341 = vmatpush1.bf16.msra.mxu0 0
        %1342 = vmatprep.subr.bf16.mxu0 0
        %1343 = vmatpush1.bf16.msra.mxu0 0
        %1344 = vmatprep.subr.bf16.mxu0 0
        %1345 = vmatpush1.bf16.msra.mxu0 0
        %1346 = vmatprep.mubr.bf16.mxu0 0
        %1347 = vmatmul.mubr.bf16.gmra.mrb[0].mxu0 %v1309
        %v1348 = vpop.f32.mrb[0].mxu0
        %v1349 = vadd.f32 %v1303, %v1348
        %v1350 = vpop.f32.mrb[0].mxu0
        %v1351 = vpop.f32.mrb[0].mxu0
        %v1352 = vpop.f32.mrb[0].mxu0
        %1353 = vdwg.mxu0
        %1354 = vrot.lane.b32.xlu0 %v1034, 112
        %v1355 = vpop.permute.xlu0 %1354
        %1356 = vrot.lane.b32.xlu0 %v1035, 80
        %v1357 = vpop.permute.xlu0 %1356
        %v1359 = vsel %vm1039, %v1355, 0
        %v1362 = vsel %vm1039, %v1357, 0
        %1364 = vmatprep.subr.bf16.mxu0 0
        %1365 = vmatpush1.bf16.xpose.msra.mxu0 %v1362
        %1366 = vmatprep.subr.bf16.mxu0 0
        %1367 = vmatpush1.bf16.xpose.msra.mxu0 0
        %1368 = vmatprep.subr.bf16.mxu0 0
        %1369 = vmatpush1.bf16.xpose.msra.mxu0 0
        %1370 = vmatprep.subr.bf16.mxu0 0
        %1371 = vmatpush1.bf16.xpose.msra.mxu0 0
        %1372 = vmatprep.subr.bf16.mxu0 0
        %1373 = vmatpush1.bf16.xpose.msra.mxu0 0
        %1374 = vmatprep.subr.bf16.mxu0 0
        %1375 = vmatpush1.bf16.xpose.msra.mxu0 0
        %1376 = vmatprep.subr.bf16.mxu0 0
        %1377 = vmatpush1.bf16.xpose.msra.mxu0 0
        %1378 = vmatprep.subr.bf16.mxu0 0
        %1379 = vmatpush1.bf16.xpose.msra.mxu0 0
        %1380 = vmatprep.subr.bf16.mxu0 0
        %1381 = vmatpush1.bf16.xpose.msra.mxu0 0
        %1382 = vmatprep.subr.bf16.mxu0 0
        %1383 = vmatpush1.bf16.xpose.msra.mxu0 0
        %1384 = vmatprep.subr.bf16.mxu0 0
        %1385 = vmatpush1.bf16.xpose.msra.mxu0 0
        %1386 = vmatprep.subr.bf16.mxu0 0
        %1387 = vmatpush1.bf16.xpose.msra.mxu0 0
        %1388 = vmatprep.subr.bf16.mxu0 0
        %1389 = vmatpush1.bf16.xpose.msra.mxu0 0
        %1390 = vmatprep.subr.bf16.mxu0 0
        %1391 = vmatpush1.bf16.xpose.msra.mxu0 0
        %1392 = vmatprep.subr.bf16.mxu0 0
        %1393 = vmatpush1.bf16.xpose.msra.mxu0 0
        %1394 = vmatprep.subr.bf16.mxu0 0
        %1395 = vmatpush1.bf16.xpose.msra.mxu0 0
        %1396 = vmatprep.mubr.bf16.mxu0 0
        %1397 = vmatmul.mubr.bf16.gmra.mrb[0].mxu0 %v1359
        %v1398 = vpop.f32.mrb[0].mxu0
        %v1399 = vadd.f32 0.0, %v1398
        %v1400 = vpop.f32.mrb[0].mxu0
        %v1401 = vpop.f32.mrb[0].mxu0
        %v1402 = vpop.f32.mrb[0].mxu0
        %1403 = vdwg.mxu0
        %v1404 = vsel %vm1039, %v1399, -inf
        %1405 = vmax.xlane.f32.xlu0 %v1404
        %v1406 = vpop.xlane.xlu0 %1405
        %v1407 = vsub.f32 %v1399, %v1406
        %v1408 = vmul.f32 %v1407, 1.442695
        %v1409 = vpow.pop %v1408
        %v1410 = vsel %vm1039, %v1409, 0.0
        %1411 = vadd.xlane.f32.xlu0 %v1410
        %v1412 = vpop.xlane.xlu0 %1411
        %v1413 = vrcp.pop %v1412
        %v1414 = vmul.f32 %v1409, %v1413
        %v1415 = vpack.c.bf16 %v1414, %v1414
        %1416 = vrot.lane.b32.xlu0 %v1097, 48
        %v1417 = vpop.permute.xlu0 %1416
        %v1419 = vsel %vm1039, %v1415, 0
        %v1422 = vsel %vm1105, %v1417, 0
        %1424 = vmatprep.subr.bf16.mxu0 0
        %1425 = vmatpush1.bf16.msra.mxu0 %v1422
        %1426 = vmatprep.subr.bf16.mxu0 0
        %1427 = vmatpush1.bf16.msra.mxu0 0
        %1428 = vmatprep.subr.bf16.mxu0 0
        %1429 = vmatpush1.bf16.msra.mxu0 0
        %1430 = vmatprep.subr.bf16.mxu0 0
        %1431 = vmatpush1.bf16.msra.mxu0 0
        %1432 = vmatprep.subr.bf16.mxu0 0
        %1433 = vmatpush1.bf16.msra.mxu0 0
        %1434 = vmatprep.subr.bf16.mxu0 0
        %1435 = vmatpush1.bf16.msra.mxu0 0
        %1436 = vmatprep.subr.bf16.mxu0 0
        %1437 = vmatpush1.bf16.msra.mxu0 0
        %1438 = vmatprep.subr.bf16.mxu0 0
        %1439 = vmatpush1.bf16.msra.mxu0 0
        %1440 = vmatprep.subr.bf16.mxu0 0
        %1441 = vmatpush1.bf16.msra.mxu0 0
        %1442 = vmatprep.subr.bf16.mxu0 0
        %1443 = vmatpush1.bf16.msra.mxu0 0
        %1444 = vmatprep.subr.bf16.mxu0 0
        %1445 = vmatpush1.bf16.msra.mxu0 0
        %1446 = vmatprep.subr.bf16.mxu0 0
        %1447 = vmatpush1.bf16.msra.mxu0 0
        %1448 = vmatprep.subr.bf16.mxu0 0
        %1449 = vmatpush1.bf16.msra.mxu0 0
        %1450 = vmatprep.subr.bf16.mxu0 0
        %1451 = vmatpush1.bf16.msra.mxu0 0
        %1452 = vmatprep.subr.bf16.mxu0 0
        %1453 = vmatpush1.bf16.msra.mxu0 0
        %1454 = vmatprep.subr.bf16.mxu0 0
        %1455 = vmatpush1.bf16.msra.mxu0 0
        %1456 = vmatprep.mubr.bf16.mxu0 0
        %1457 = vmatmul.mubr.bf16.gmra.mrb[0].mxu0 %v1419
        %v1458 = vpop.f32.mrb[0].mxu0
        %v1459 = vadd.f32 0.0, %v1458
        %v1460 = vpop.f32.mrb[0].mxu0
        %v1461 = vpop.f32.mrb[0].mxu0
        %v1462 = vpop.f32.mrb[0].mxu0
        %1463 = vdwg.mxu0
        %v1464 = vpack.c.bf16 %v1459, %v1459
        %v1466 = vsel %vm1039, %v1464, 0
        %v1469 = vsel %vm1105, %v1030, 0
        %1471 = vmatprep.subr.bf16.mxu0 0
        %1472 = vmatpush1.bf16.msra.mxu0 %v1469
        %1473 = vmatprep.subr.bf16.mxu0 0
        %1474 = vmatpush1.bf16.msra.mxu0 0
        %1475 = vmatprep.subr.bf16.mxu0 0
        %1476 = vmatpush1.bf16.msra.mxu0 0
        %1477 = vmatprep.subr.bf16.mxu0 0
        %1478 = vmatpush1.bf16.msra.mxu0 0
        %1479 = vmatprep.subr.bf16.mxu0 0
        %1480 = vmatpush1.bf16.msra.mxu0 0
        %1481 = vmatprep.subr.bf16.mxu0 0
        %1482 = vmatpush1.bf16.msra.mxu0 0
        %1483 = vmatprep.subr.bf16.mxu0 0
        %1484 = vmatpush1.bf16.msra.mxu0 0
        %1485 = vmatprep.subr.bf16.mxu0 0
        %1486 = vmatpush1.bf16.msra.mxu0 0
        %1487 = vmatprep.subr.bf16.mxu0 0
        %1488 = vmatpush1.bf16.msra.mxu0 0
        %1489 = vmatprep.subr.bf16.mxu0 0
        %1490 = vmatpush1.bf16.msra.mxu0 0
        %1491 = vmatprep.subr.bf16.mxu0 0
        %1492 = vmatpush1.bf16.msra.mxu0 0
        %1493 = vmatprep.subr.bf16.mxu0 0
        %1494 = vmatpush1.bf16.msra.mxu0 0
        %1495 = vmatprep.subr.bf16.mxu0 0
        %1496 = vmatpush1.bf16.msra.mxu0 0
        %1497 = vmatprep.subr.bf16.mxu0 0
        %1498 = vmatpush1.bf16.msra.mxu0 0
        %1499 = vmatprep.subr.bf16.mxu0 0
        %1500 = vmatpush1.bf16.msra.mxu0 0
        %1501 = vmatprep.subr.bf16.mxu0 0
        %1502 = vmatpush1.bf16.msra.mxu0 0
        %1503 = vmatprep.mubr.bf16.mxu0 0
        %1504 = vmatmul.mubr.bf16.gmra.mrb[0].mxu0 %v1466
        %v1505 = vpop.f32.mrb[0].mxu0
        %v1506 = vadd.f32 0.0, %v1505
        %v1507 = vpop.f32.mrb[0].mxu0
        %v1508 = vpop.f32.mrb[0].mxu0
        %v1509 = vpop.f32.mrb[0].mxu0
        %1510 = vdwg.mxu0
        %v1511 = vadd.f32 %v1349, %v1506
        %1512 = vrot.lane.b32.xlu0 %v1034, 104
        %v1513 = vpop.permute.xlu0 %1512
        %1514 = vrot.lane.b32.xlu0 %v1035, 72
        %v1515 = vpop.permute.xlu0 %1514
        %v1517 = vsel %vm1039, %v1513, 0
        %v1520 = vsel %vm1039, %v1515, 0
        %1522 = vmatprep.subr.bf16.mxu0 0
        %1523 = vmatpush1.bf16.xpose.msra.mxu0 %v1520
        %1524 = vmatprep.subr.bf16.mxu0 0
        %1525 = vmatpush1.bf16.xpose.msra.mxu0 0
        %1526 = vmatprep.subr.bf16.mxu0 0
        %1527 = vmatpush1.bf16.xpose.msra.mxu0 0
        %1528 = vmatprep.subr.bf16.mxu0 0
        %1529 = vmatpush1.bf16.xpose.msra.mxu0 0
        %1530 = vmatprep.subr.bf16.mxu0 0
        %1531 = vmatpush1.bf16.xpose.msra.mxu0 0
        %1532 = vmatprep.subr.bf16.mxu0 0
        %1533 = vmatpush1.bf16.xpose.msra.mxu0 0
        %1534 = vmatprep.subr.bf16.mxu0 0
        %1535 = vmatpush1.bf16.xpose.msra.mxu0 0
        %1536 = vmatprep.subr.bf16.mxu0 0
        %1537 = vmatpush1.bf16.xpose.msra.mxu0 0
        %1538 = vmatprep.subr.bf16.mxu0 0
        %1539 = vmatpush1.bf16.xpose.msra.mxu0 0
        %1540 = vmatprep.subr.bf16.mxu0 0
        %1541 = vmatpush1.bf16.xpose.msra.mxu0 0
        %1542 = vmatprep.subr.bf16.mxu0 0
        %1543 = vmatpush1.bf16.xpose.msra.mxu0 0
        %1544 = vmatprep.subr.bf16.mxu0 0
        %1545 = vmatpush1.bf16.xpose.msra.mxu0 0
        %1546 = vmatprep.subr.bf16.mxu0 0
        %1547 = vmatpush1.bf16.xpose.msra.mxu0 0
        %1548 = vmatprep.subr.bf16.mxu0 0
        %1549 = vmatpush1.bf16.xpose.msra.mxu0 0
        %1550 = vmatprep.subr.bf16.mxu0 0
        %1551 = vmatpush1.bf16.xpose.msra.mxu0 0
        %1552 = vmatprep.subr.bf16.mxu0 0
        %1553 = vmatpush1.bf16.xpose.msra.mxu0 0
        %1554 = vmatprep.mubr.bf16.mxu0 0
        %1555 = vmatmul.mubr.bf16.gmra.mrb[0].mxu0 %v1517
        %v1556 = vpop.f32.mrb[0].mxu0
        %v1557 = vadd.f32 0.0, %v1556
        %v1558 = vpop.f32.mrb[0].mxu0
        %v1559 = vpop.f32.mrb[0].mxu0
        %v1560 = vpop.f32.mrb[0].mxu0
        %1561 = vdwg.mxu0
        %v1562 = vsel %vm1039, %v1557, -inf
        %1563 = vmax.xlane.f32.xlu0 %v1562
        %v1564 = vpop.xlane.xlu0 %1563
        %v1565 = vsub.f32 %v1557, %v1564
        %v1566 = vmul.f32 %v1565, 1.442695
        %v1567 = vpow.pop %v1566
        %v1568 = vsel %vm1039, %v1567, 0.0
        %1569 = vadd.xlane.f32.xlu0 %v1568
        %v1570 = vpop.xlane.xlu0 %1569
        %v1571 = vrcp.pop %v1570
        %v1572 = vmul.f32 %v1567, %v1571
        %v1573 = vpack.c.bf16 %v1572, %v1572
        %1574 = vrot.lane.b32.xlu0 %v1097, 40
        %v1575 = vpop.permute.xlu0 %1574
        %v1577 = vsel %vm1039, %v1573, 0
        %v1580 = vsel %vm1105, %v1575, 0
        %1582 = vmatprep.subr.bf16.mxu0 0
        %1583 = vmatpush1.bf16.msra.mxu0 %v1580
        %1584 = vmatprep.subr.bf16.mxu0 0
        %1585 = vmatpush1.bf16.msra.mxu0 0
        %1586 = vmatprep.subr.bf16.mxu0 0
        %1587 = vmatpush1.bf16.msra.mxu0 0
        %1588 = vmatprep.subr.bf16.mxu0 0
        %1589 = vmatpush1.bf16.msra.mxu0 0
        %1590 = vmatprep.subr.bf16.mxu0 0
        %1591 = vmatpush1.bf16.msra.mxu0 0
        %1592 = vmatprep.subr.bf16.mxu0 0
        %1593 = vmatpush1.bf16.msra.mxu0 0
        %1594 = vmatprep.subr.bf16.mxu0 0
        %1595 = vmatpush1.bf16.msra.mxu0 0
        %1596 = vmatprep.subr.bf16.mxu0 0
        %1597 = vmatpush1.bf16.msra.mxu0 0
        %1598 = vmatprep.subr.bf16.mxu0 0
        %1599 = vmatpush1.bf16.msra.mxu0 0
        %1600 = vmatprep.subr.bf16.mxu0 0
        %1601 = vmatpush1.bf16.msra.mxu0 0
        %1602 = vmatprep.subr.bf16.mxu0 0
        %1603 = vmatpush1.bf16.msra.mxu0 0
        %1604 = vmatprep.subr.bf16.mxu0 0
        %1605 = vmatpush1.bf16.msra.mxu0 0
        %1606 = vmatprep.subr.bf16.mxu0 0
        %1607 = vmatpush1.bf16.msra.mxu0 0
        %1608 = vmatprep.subr.bf16.mxu0 0
        %1609 = vmatpush1.bf16.msra.mxu0 0
        %1610 = vmatprep.subr.bf16.mxu0 0
        %1611 = vmatpush1.bf16.msra.mxu0 0
        %1612 = vmatprep.subr.bf16.mxu0 0
        %1613 = vmatpush1.bf16.msra.mxu0 0
        %1614 = vmatprep.mubr.bf16.mxu0 0
        %1615 = vmatmul.mubr.bf16.gmra.mrb[0].mxu0 %v1577
        %v1616 = vpop.f32.mrb[0].mxu0
        %v1617 = vadd.f32 0.0, %v1616
        %v1618 = vpop.f32.mrb[0].mxu0
        %v1619 = vpop.f32.mrb[0].mxu0
        %v1620 = vpop.f32.mrb[0].mxu0
        %1621 = vdwg.mxu0
        %v1622 = vpack.c.bf16 %v1617, %v1617
        %v1624 = vsel %vm1039, %v1622, 0
        %v1627 = vsel %vm1105, %v1031, 0
        %1629 = vmatprep.subr.bf16.mxu0 0
        %1630 = vmatpush1.bf16.msra.mxu0 %v1627
        %1631 = vmatprep.subr.bf16.mxu0 0
        %1632 = vmatpush1.bf16.msra.mxu0 0
        %1633 = vmatprep.subr.bf16.mxu0 0
        %1634 = vmatpush1.bf16.msra.mxu0 0
        %1635 = vmatprep.subr.bf16.mxu0 0
        %1636 = vmatpush1.bf16.msra.mxu0 0
        %1637 = vmatprep.subr.bf16.mxu0 0
        %1638 = vmatpush1.bf16.msra.mxu0 0
        %1639 = vmatprep.subr.bf16.mxu0 0
        %1640 = vmatpush1.bf16.msra.mxu0 0
        %1641 = vmatprep.subr.bf16.mxu0 0
        %1642 = vmatpush1.bf16.msra.mxu0 0
        %1643 = vmatprep.subr.bf16.mxu0 0
        %1644 = vmatpush1.bf16.msra.mxu0 0
        %1645 = vmatprep.subr.bf16.mxu0 0
        %1646 = vmatpush1.bf16.msra.mxu0 0
        %1647 = vmatprep.subr.bf16.mxu0 0
        %1648 = vmatpush1.bf16.msra.mxu0 0
        %1649 = vmatprep.subr.bf16.mxu0 0
        %1650 = vmatpush1.bf16.msra.mxu0 0
        %1651 = vmatprep.subr.bf16.mxu0 0
        %1652 = vmatpush1.bf16.msra.mxu0 0
        %1653 = vmatprep.subr.bf16.mxu0 0
        %1654 = vmatpush1.bf16.msra.mxu0 0
        %1655 = vmatprep.subr.bf16.mxu0 0
        %1656 = vmatpush1.bf16.msra.mxu0 0
        %1657 = vmatprep.subr.bf16.mxu0 0
        %1658 = vmatpush1.bf16.msra.mxu0 0
        %1659 = vmatprep.subr.bf16.mxu0 0
        %1660 = vmatpush1.bf16.msra.mxu0 0
        %1661 = vmatprep.mubr.bf16.mxu0 0
        %1662 = vmatmul.mubr.bf16.gmra.mrb[0].mxu0 %v1624
        %v1663 = vpop.f32.mrb[0].mxu0
        %v1664 = vadd.f32 0.0, %v1663
        %v1665 = vpop.f32.mrb[0].mxu0
        %v1666 = vpop.f32.mrb[0].mxu0
        %v1667 = vpop.f32.mrb[0].mxu0
        %1668 = vdwg.mxu0
        %v1669 = vadd.f32 %v1511, %v1664
        %v1671 = vlaneseq
        %v1672 = vshrl.u32 %v1671, 7
        %v1673 = vsub.s32 0, %v1672
        %v1674 = vrot.slane %v1032, %v1673
        %v1676 = vadd.f32 %v1669, %v1674
        %v1677 = vadd.f32 %v890, %v1676
        %v1678 = vsel %vm916, %v1677, 0.0
        %1679 = vadd.xlane.f32.xlu0 %v1678
        %v1680 = vpop.xlane.xlu0 %1679
        %v1681 = vrcp.pop 32.0
        %v1682 = vmul.f32 %v1680, %v1681
        %v1683 = vsub.f32 %v1677, %v1682
        %v1684 = vmul.f32 %v1683, %v1683
        %v1685 = vsel %vm916, %v1684, 0.0
        %1686 = vadd.xlane.f32.xlu0 %v1685
        %v1687 = vpop.xlane.xlu0 %1686
        %v1688 = vmul.f32 %v1687, %v1681
        %v1689 = vadd.f32 %v1688, 1e-05
        %v1690 = vrsqrt.pop %v1689
        %v1691 = vmul.f32 %v1683, %v1690
        %v1692 = vld [vmem:[#allocation12] sm:$0x1]
        %v1694 = vlaneseq
        %v1695 = vshrl.u32 %v1694, 7
        %v1696 = vsub.s32 0, %v1695
        %v1697 = vrot.slane %v1692, %v1696
        %v1699 = vmul.f32 %v1691, %v1697
        %s1700 = scalar_lea.vmem [#allocation12], 1
        %v1701 = vld [vmem:[%s1700] sm:$0x1]
        %v1703 = vlaneseq
        %v1704 = vshrl.u32 %v1703, 7
        %v1705 = vsub.s32 0, %v1704
        %v1706 = vrot.slane %v1701, %v1705
        %v1708 = vadd.f32 %v1699, %v1706
        %s1709 = scalar_lea.vmem %s16, 16
        %v1710 = vld [vmem:[%s1709] sm:$0xf]
        %v1711 = vld [vmem:[%s1709 + $0x4] sm:$0xf]
        %v1712 = vld [vmem:[%s1709 + $0x8] sm:$0xf]
        %v1713 = vld [vmem:[%s1709 + $0xc] sm:$0xf]
        %s1714 = scalar_lea.vmem [#allocation10], 1
        %v1715 = vld [vmem:[%s1714] sm:$0x1]
        %v1716 = vpack.c.bf16 %v1708, %v1708
        %v1718 = vlaneseq
        %v1719 = vshrl.u32 %v1718, 7
        %v1720 = vsub.s32 0, %v1719
        %v1721 = vrot.slane %v1715, %v1720
        %v1727 = vunpack.c.l.b16 %v1710
        %v1728 = vunpack.c.l.b16 %v1711
        %v1729 = vunpack.c.l.b16 %v1712
        %v1730 = vunpack.c.l.b16 %v1713
        %v1731 = vpack.c.b16 %v1728, %v1727
        %v1732 = vpack.c.b16 %v1730, %v1729
        %v1736 = vsel %vm916, %v1716, 0
        %1738 = vmatprep.subr.bf16.mxu0 0
        %1739 = vmatpush1.bf16.msra.mxu0 %v1731
        %1740 = vmatprep.subr.bf16.mxu0 0
        %1741 = vmatpush1.bf16.msra.mxu0 %v1732
        %1742 = vmatprep.subr.bf16.mxu0 0
        %1743 = vmatpush1.bf16.msra.mxu0 0
        %1744 = vmatprep.subr.bf16.mxu0 0
        %1745 = vmatpush1.bf16.msra.mxu0 0
        %1746 = vmatprep.subr.bf16.mxu0 0
        %1747 = vmatpush1.bf16.msra.mxu0 0
        %1748 = vmatprep.subr.bf16.mxu0 0
        %1749 = vmatpush1.bf16.msra.mxu0 0
        %1750 = vmatprep.subr.bf16.mxu0 0
        %1751 = vmatpush1.bf16.msra.mxu0 0
        %1752 = vmatprep.subr.bf16.mxu0 0
        %1753 = vmatpush1.bf16.msra.mxu0 0
        %1754 = vmatprep.subr.bf16.mxu0 0
        %1755 = vmatpush1.bf16.msra.mxu0 0
        %1756 = vmatprep.subr.bf16.mxu0 0
        %1757 = vmatpush1.bf16.msra.mxu0 0
        %1758 = vmatprep.subr.bf16.mxu0 0
        %1759 = vmatpush1.bf16.msra.mxu0 0
        %1760 = vmatprep.subr.bf16.mxu0 0
        %1761 = vmatpush1.bf16.msra.mxu0 0
        %1762 = vmatprep.subr.bf16.mxu0 0
        %1763 = vmatpush1.bf16.msra.mxu0 0
        %1764 = vmatprep.subr.bf16.mxu0 0
        %1765 = vmatpush1.bf16.msra.mxu0 0
        %1766 = vmatprep.subr.bf16.mxu0 0
        %1767 = vmatpush1.bf16.msra.mxu0 0
        %1768 = vmatprep.subr.bf16.mxu0 0
        %1769 = vmatpush1.bf16.msra.mxu0 0
        %1770 = vmatprep.mubr.bf16.mxu0 0
        %1771 = vmatmul.mubr.bf16.gmra.mrb[0].mxu0 %v1736
        %v1772 = vpop.f32.mrb[0].mxu0
        %v1773 = vadd.f32 %v1721, %v1772
        %v1774 = vpop.f32.mrb[0].mxu0
        %v1775 = vpop.f32.mrb[0].mxu0
        %v1776 = vpop.f32.mrb[0].mxu0
        %1777 = vdwg.mxu0
        %v1778 = vld [vmem:[%s884] sm:$0xff]
        %v1779 = vld [vmem:[%s10] sm:$0xf]
        %v1780 = vld [vmem:[%s10 + $0x4] sm:$0xf]
        %v1781 = vld [vmem:[%s10 + $0x8] sm:$0xf]
        %v1782 = vld [vmem:[%s10 + $0xc] sm:$0xf]
        %v1783 = vld [vmem:[#allocation6] sm:$0x1]
        %v1784 = vpack.c.bf16 %v1778, %v1778
        %v1786 = vlaneseq
        %v1787 = vshrl.u32 %v1786, 7
        %v1788 = vsub.s32 0, %v1787
        %v1789 = vrot.slane %v1783, %v1788
        %v1795 = vunpack.c.l.b16 %v1779
        %v1796 = vunpack.c.l.b16 %v1780
        %v1797 = vunpack.c.l.b16 %v1781
        %v1798 = vunpack.c.l.b16 %v1782
        %v1799 = vpack.c.b16 %v1796, %v1795
        %v1800 = vpack.c.b16 %v1798, %v1797
        %v1804 = vsel %vm916, %v1784, 0
        %1806 = vmatprep.subr.bf16.mxu0 0
        %1807 = vmatpush1.bf16.msra.mxu0 %v1799
        %1808 = vmatprep.subr.bf16.mxu0 0
        %1809 = vmatpush1.bf16.msra.mxu0 %v1800
        %1810 = vmatprep.subr.bf16.mxu0 0
        %1811 = vmatpush1.bf16.msra.mxu0 0
        %1812 = vmatprep.subr.bf16.mxu0 0
        %1813 = vmatpush1.bf16.msra.mxu0 0
        %1814 = vmatprep.subr.bf16.mxu0 0
        %1815 = vmatpush1.bf16.msra.mxu0 0
        %1816 = vmatprep.subr.bf16.mxu0 0
        %1817 = vmatpush1.bf16.msra.mxu0 0
        %1818 = vmatprep.subr.bf16.mxu0 0
        %1819 = vmatpush1.bf16.msra.mxu0 0
        %1820 = vmatprep.subr.bf16.mxu0 0
        %1821 = vmatpush1.bf16.msra.mxu0 0
        %1822 = vmatprep.subr.bf16.mxu0 0
        %1823 = vmatpush1.bf16.msra.mxu0 0
        %1824 = vmatprep.subr.bf16.mxu0 0
        %1825 = vmatpush1.bf16.msra.mxu0 0
        %1826 = vmatprep.subr.bf16.mxu0 0
        %1827 = vmatpush1.bf16.msra.mxu0 0
        %1828 = vmatprep.subr.bf16.mxu0 0
        %1829 = vmatpush1.bf16.msra.mxu0 0
        %1830 = vmatprep.subr.bf16.mxu0 0
        %1831 = vmatpush1.bf16.msra.mxu0 0
        %1832 = vmatprep.subr.bf16.mxu0 0
        %1833 = vmatpush1.bf16.msra.mxu0 0
        %1834 = vmatprep.subr.bf16.mxu0 0
        %1835 = vmatpush1.bf16.msra.mxu0 0
        %1836 = vmatprep.subr.bf16.mxu0 0
        %1837 = vmatpush1.bf16.msra.mxu0 0
        %1838 = vmatprep.mubr.bf16.mxu0 0
        %1839 = vmatmul.mubr.bf16.gmra.mrb[0].mxu0 %v1804
        %v1840 = vpop.f32.mrb[0].mxu0
        %v1841 = vadd.f32 %v1789, %v1840
        %v1842 = vpop.f32.mrb[0].mxu0
        %v1843 = vpop.f32.mrb[0].mxu0
        %v1844 = vpop.f32.mrb[0].mxu0
        %1845 = vdwg.mxu0
        %s1846 = scalar_lea.vmem %s16, 32
        %v1847 = vld [vmem:[%s1846] sm:$0xf]
        %v1848 = vld [vmem:[%s1846 + $0x4] sm:$0xf]
        %v1849 = vld [vmem:[%s1846 + $0x8] sm:$0xf]
        %v1850 = vld [vmem:[%s1846 + $0xc] sm:$0xf]
        %s1851 = scalar_lea.vmem [#allocation10], 2
        %v1852 = vld [vmem:[%s1851] sm:$0x1]
        %v1853 = vmul.f32 %v1773, 0.17677669
        %v1854 = vpack.c.bf16 %v1853, %v1853
        %v1855 = vpack.c.bf16 %v1841, %v1841
        %v1857 = vsel %vm916, %v1854, 0
        %v1860 = vsel %vm916, %v1855, 0
        %1862 = vmatprep.subr.bf16.mxu0 0
        %1863 = vmatpush1.bf16.xpose.msra.mxu0 %v1860
        %1864 = vmatprep.subr.bf16.mxu0 0
        %1865 = vmatpush1.bf16.xpose.msra.mxu0 0
        %1866 = vmatprep.subr.bf16.mxu0 0
        %1867 = vmatpush1.bf16.xpose.msra.mxu0 0
        %1868 = vmatprep.subr.bf16.mxu0 0
        %1869 = vmatpush1.bf16.xpose.msra.mxu0 0
        %1870 = vmatprep.subr.bf16.mxu0 0
        %1871 = vmatpush1.bf16.xpose.msra.mxu0 0
        %1872 = vmatprep.subr.bf16.mxu0 0
        %1873 = vmatpush1.bf16.xpose.msra.mxu0 0
        %1874 = vmatprep.subr.bf16.mxu0 0
        %1875 = vmatpush1.bf16.xpose.msra.mxu0 0
        %1876 = vmatprep.subr.bf16.mxu0 0
        %1877 = vmatpush1.bf16.xpose.msra.mxu0 0
        %1878 = vmatprep.subr.bf16.mxu0 0
        %1879 = vmatpush1.bf16.xpose.msra.mxu0 0
        %1880 = vmatprep.subr.bf16.mxu0 0
        %1881 = vmatpush1.bf16.xpose.msra.mxu0 0
        %1882 = vmatprep.subr.bf16.mxu0 0
        %1883 = vmatpush1.bf16.xpose.msra.mxu0 0
        %1884 = vmatprep.subr.bf16.mxu0 0
        %1885 = vmatpush1.bf16.xpose.msra.mxu0 0
        %1886 = vmatprep.subr.bf16.mxu0 0
        %1887 = vmatpush1.bf16.xpose.msra.mxu0 0
        %1888 = vmatprep.subr.bf16.mxu0 0
        %1889 = vmatpush1.bf16.xpose.msra.mxu0 0
        %1890 = vmatprep.subr.bf16.mxu0 0
        %1891 = vmatpush1.bf16.xpose.msra.mxu0 0
        %1892 = vmatprep.subr.bf16.mxu0 0
        %1893 = vmatpush1.bf16.xpose.msra.mxu0 0
        %1894 = vmatprep.mubr.bf16.mxu0 0
        %1895 = vmatmul.mubr.bf16.gmra.mrb[0].mxu0 %v1857
        %v1896 = vpop.f32.mrb[0].mxu0
        %v1897 = vadd.f32 0.0, %v1896
        %v1898 = vpop.f32.mrb[0].mxu0
        %v1899 = vpop.f32.mrb[0].mxu0
        %v1900 = vpop.f32.mrb[0].mxu0
        %1901 = vdwg.mxu0
        %v1902 = vsel %vm1039, %v1897, -inf
        %1903 = vmax.xlane.f32.xlu0 %v1902
        %v1904 = vpop.xlane.xlu0 %1903
        %v1905 = vsub.f32 %v1897, %v1904
        %v1906 = vmul.f32 %v1905, 1.442695
        %v1907 = vpow.pop %v1906
        %v1908 = vsel %vm1039, %v1907, 0.0
        %1909 = vadd.xlane.f32.xlu0 %v1908
        %v1910 = vpop.xlane.xlu0 %1909
        %v1911 = vrcp.pop %v1910
        %v1912 = vmul.f32 %v1907, %v1911
        %v1913 = vpack.c.bf16 %v1912, %v1912
        %1915 = vrot.lane.b32.xlu0 %v1855, 96
        %v1916 = vpop.permute.xlu0 %1915
        %v1918 = vsel %vm1039, %v1913, 0
        %v1921 = vsel %vm1105, %v1916, 0
        %1923 = vmatprep.subr.bf16.mxu0 0
        %1924 = vmatpush1.bf16.msra.mxu0 %v1921
        %1925 = vmatprep.subr.bf16.mxu0 0
        %1926 = vmatpush1.bf16.msra.mxu0 0
        %1927 = vmatprep.subr.bf16.mxu0 0
        %1928 = vmatpush1.bf16.msra.mxu0 0
        %1929 = vmatprep.subr.bf16.mxu0 0
        %1930 = vmatpush1.bf16.msra.mxu0 0
        %1931 = vmatprep.subr.bf16.mxu0 0
        %1932 = vmatpush1.bf16.msra.mxu0 0
        %1933 = vmatprep.subr.bf16.mxu0 0
        %1934 = vmatpush1.bf16.msra.mxu0 0
        %1935 = vmatprep.subr.bf16.mxu0 0
        %1936 = vmatpush1.bf16.msra.mxu0 0
        %1937 = vmatprep.subr.bf16.mxu0 0
        %1938 = vmatpush1.bf16.msra.mxu0 0
        %1939 = vmatprep.subr.bf16.mxu0 0
        %1940 = vmatpush1.bf16.msra.mxu0 0
        %1941 = vmatprep.subr.bf16.mxu0 0
        %1942 = vmatpush1.bf16.msra.mxu0 0
        %1943 = vmatprep.subr.bf16.mxu0 0
        %1944 = vmatpush1.bf16.msra.mxu0 0
        %1945 = vmatprep.subr.bf16.mxu0 0
        %1946 = vmatpush1.bf16.msra.mxu0 0
        %1947 = vmatprep.subr.bf16.mxu0 0
        %1948 = vmatpush1.bf16.msra.mxu0 0
        %1949 = vmatprep.subr.bf16.mxu0 0
        %1950 = vmatpush1.bf16.msra.mxu0 0
        %1951 = vmatprep.subr.bf16.mxu0 0
        %1952 = vmatpush1.bf16.msra.mxu0 0
        %1953 = vmatprep.subr.bf16.mxu0 0
        %1954 = vmatpush1.bf16.msra.mxu0 0
        %1955 = vmatprep.mubr.bf16.mxu0 0
        %1956 = vmatmul.mubr.bf16.gmra.mrb[0].mxu0 %v1918
        %v1957 = vpop.f32.mrb[0].mxu0
        %v1958 = vadd.f32 0.0, %v1957
        %v1959 = vpop.f32.mrb[0].mxu0
        %v1960 = vpop.f32.mrb[0].mxu0
        %v1961 = vpop.f32.mrb[0].mxu0
        %1962 = vdwg.mxu0
        %v1963 = vpack.c.bf16 %v1958, %v1958
        %v1965 = vlaneseq
        %v1966 = vshrl.u32 %v1965, 7
        %v1967 = vsub.s32 0, %v1966
        %v1968 = vrot.slane %v1852, %v1967
        %v1974 = vunpack.c.l.b16 %v1847
        %v1975 = vunpack.c.l.b16 %v1848
        %v1976 = vunpack.c.l.b16 %v1849
        %v1977 = vunpack.c.l.b16 %v1850
        %v1978 = vpack.c.b16 %v1975, %v1974
        %v1979 = vpack.c.b16 %v1977, %v1976
        %v1983 = vsel %vm916, %v1963, 0
        %1985 = vmatprep.subr.bf16.mxu0 0
        %1986 = vmatpush1.bf16.msra.mxu0 %v1978
        %1987 = vmatprep.subr.bf16.mxu0 0
        %1988 = vmatpush1.bf16.msra.mxu0 %v1979
        %1989 = vmatprep.subr.bf16.mxu0 0
        %1990 = vmatpush1.bf16.msra.mxu0 0
        %1991 = vmatprep.subr.bf16.mxu0 0
        %1992 = vmatpush1.bf16.msra.mxu0 0
        %1993 = vmatprep.subr.bf16.mxu0 0
        %1994 = vmatpush1.bf16.msra.mxu0 0
        %1995 = vmatprep.subr.bf16.mxu0 0
        %1996 = vmatpush1.bf16.msra.mxu0 0
        %1997 = vmatprep.subr.bf16.mxu0 0
        %1998 = vmatpush1.bf16.msra.mxu0 0
        %1999 = vmatprep.subr.bf16.mxu0 0
        %2000 = vmatpush1.bf16.msra.mxu0 0
        %2001 = vmatprep.subr.bf16.mxu0 0
        %2002 = vmatpush1.bf16.msra.mxu0 0
        %2003 = vmatprep.subr.bf16.mxu0 0
        %2004 = vmatpush1.bf16.msra.mxu0 0
        %2005 = vmatprep.subr.bf16.mxu0 0
        %2006 = vmatpush1.bf16.msra.mxu0 0
        %2007 = vmatprep.subr.bf16.mxu0 0
        %2008 = vmatpush1.bf16.msra.mxu0 0
        %2009 = vmatprep.subr.bf16.mxu0 0
        %2010 = vmatpush1.bf16.msra.mxu0 0
        %2011 = vmatprep.subr.bf16.mxu0 0
        %2012 = vmatpush1.bf16.msra.mxu0 0
        %2013 = vmatprep.subr.bf16.mxu0 0
        %2014 = vmatpush1.bf16.msra.mxu0 0
        %2015 = vmatprep.subr.bf16.mxu0 0
        %2016 = vmatpush1.bf16.msra.mxu0 0
        %2017 = vmatprep.mubr.bf16.mxu0 0
        %2018 = vmatmul.mubr.bf16.gmra.mrb[0].mxu0 %v1983
        %v2019 = vpop.f32.mrb[0].mxu0
        %v2020 = vadd.f32 %v1968, %v2019
        %v2021 = vpop.f32.mrb[0].mxu0
        %v2022 = vpop.f32.mrb[0].mxu0
        %v2023 = vpop.f32.mrb[0].mxu0
        %2024 = vdwg.mxu0
        %v2025 = vmul.f32 %v1708, %v2020
        %v2026 = vsub.f32 0.0, %v2025
        %v2027 = vmul.f32 %v2026, 1.442695
        %v2028 = vpow.pop %v2027
        %v2029 = vadd.f32 %v2028, 1.0
        %v2030 = vrcp.pop %v2029
        %v2031 = vadd.f32 %v1708, %v2020
        %v2032 = vld [vmem:[%s12] sm:$0xf]
        %v2033 = vld [vmem:[%s12 + $0x4] sm:$0xf]
        %v2034 = vld [vmem:[%s12 + $0x8] sm:$0xf]
        %v2035 = vld [vmem:[%s12 + $0xc] sm:$0xf]
        %v2036 = vld [vmem:[#allocation7] sm:$0x1]
        %v2037 = vpack.c.bf16 %v2031, %v2031
        %v2039 = vlaneseq
        %v2040 = vshrl.u32 %v2039, 7
        %v2041 = vsub.s32 0, %v2040
        %v2042 = vrot.slane %v2036, %v2041
        %v2048 = vunpack.c.l.b16 %v2032
        %v2049 = vunpack.c.l.b16 %v2033
        %v2050 = vunpack.c.l.b16 %v2034
        %v2051 = vunpack.c.l.b16 %v2035
        %v2052 = vpack.c.b16 %v2049, %v2048
        %v2053 = vpack.c.b16 %v2051, %v2050
        %v2057 = vsel %vm916, %v2037, 0
        %2059 = vmatprep.subr.bf16.mxu0 0
        %2060 = vmatpush1.bf16.msra.mxu0 %v2052
        %2061 = vmatprep.subr.bf16.mxu0 0
        %2062 = vmatpush1.bf16.msra.mxu0 %v2053
        %2063 = vmatprep.subr.bf16.mxu0 0
        %2064 = vmatpush1.bf16.msra.mxu0 0
        %2065 = vmatprep.subr.bf16.mxu0 0
        %2066 = vmatpush1.bf16.msra.mxu0 0
        %2067 = vmatprep.subr.bf16.mxu0 0
        %2068 = vmatpush1.bf16.msra.mxu0 0
        %2069 = vmatprep.subr.bf16.mxu0 0
        %2070 = vmatpush1.bf16.msra.mxu0 0
        %2071 = vmatprep.subr.bf16.mxu0 0
        %2072 = vmatpush1.bf16.msra.mxu0 0
        %2073 = vmatprep.subr.bf16.mxu0 0
        %2074 = vmatpush1.bf16.msra.mxu0 0
        %2075 = vmatprep.subr.bf16.mxu0 0
        %2076 = vmatpush1.bf16.msra.mxu0 0
        %2077 = vmatprep.subr.bf16.mxu0 0
        %2078 = vmatpush1.bf16.msra.mxu0 0
        %2079 = vmatprep.subr.bf16.mxu0 0
        %2080 = vmatpush1.bf16.msra.mxu0 0
        %2081 = vmatprep.subr.bf16.mxu0 0
        %2082 = vmatpush1.bf16.msra.mxu0 0
        %2083 = vmatprep.subr.bf16.mxu0 0
        %2084 = vmatpush1.bf16.msra.mxu0 0
        %2085 = vmatprep.subr.bf16.mxu0 0
        %2086 = vmatpush1.bf16.msra.mxu0 0
        %2087 = vmatprep.subr.bf16.mxu0 0
        %2088 = vmatpush1.bf16.msra.mxu0 0
        %2089 = vmatprep.subr.bf16.mxu0 0
        %2090 = vmatpush1.bf16.msra.mxu0 0
        %2091 = vmatprep.mubr.bf16.mxu0 0
        %2092 = vmatmul.mubr.bf16.gmra.mrb[0].mxu0 %v2057
        %v2093 = vpop.f32.mrb[0].mxu0
        %v2094 = vadd.f32 %v2042, %v2093
        %v2095 = vpop.f32.mrb[0].mxu0
        %v2096 = vpop.f32.mrb[0].mxu0
        %v2097 = vpop.f32.mrb[0].mxu0
        %2098 = vdwg.mxu0
        %s2099 = scalar_lea.vmem %s16, 48
        %v2100 = vld [vmem:[%s2099] sm:$0xf]
        %v2101 = vld [vmem:[%s2099 + $0x4] sm:$0xf]
        %v2102 = vld [vmem:[%s2099 + $0x8] sm:$0xf]
        %v2103 = vld [vmem:[%s2099 + $0xc] sm:$0xf]
        %s2104 = scalar_lea.vmem [#allocation10], 3
        %v2105 = vld [vmem:[%s2104] sm:$0x1]
        %v2106 = vmul.f32 %v2094, 0.17677669
        %v2107 = vpack.c.bf16 %v2106, %v2106
        %v2108 = vpack.c.bf16 %v2094, %v2094
        %2110 = vrot.lane.b32.xlu0 %v2108, 96
        %v2111 = vpop.permute.xlu0 %2110
        %v2113 = vsel %vm916, %v2107, 0
        %v2116 = vsel %vm916, %v2111, 0
        %2118 = vmatprep.subr.bf16.mxu0 0
        %2119 = vmatpush1.bf16.xpose.msra.mxu0 %v2116
        %2120 = vmatprep.subr.bf16.mxu0 0
        %2121 = vmatpush1.bf16.xpose.msra.mxu0 0
        %2122 = vmatprep.subr.bf16.mxu0 0
        %2123 = vmatpush1.bf16.xpose.msra.mxu0 0
        %2124 = vmatprep.subr.bf16.mxu0 0
        %2125 = vmatpush1.bf16.xpose.msra.mxu0 0
        %2126 = vmatprep.subr.bf16.mxu0 0
        %2127 = vmatpush1.bf16.xpose.msra.mxu0 0
        %2128 = vmatprep.subr.bf16.mxu0 0
        %2129 = vmatpush1.bf16.xpose.msra.mxu0 0
        %2130 = vmatprep.subr.bf16.mxu0 0
        %2131 = vmatpush1.bf16.xpose.msra.mxu0 0
        %2132 = vmatprep.subr.bf16.mxu0 0
        %2133 = vmatpush1.bf16.xpose.msra.mxu0 0
        %2134 = vmatprep.subr.bf16.mxu0 0
        %2135 = vmatpush1.bf16.xpose.msra.mxu0 0
        %2136 = vmatprep.subr.bf16.mxu0 0
        %2137 = vmatpush1.bf16.xpose.msra.mxu0 0
        %2138 = vmatprep.subr.bf16.mxu0 0
        %2139 = vmatpush1.bf16.xpose.msra.mxu0 0
        %2140 = vmatprep.subr.bf16.mxu0 0
        %2141 = vmatpush1.bf16.xpose.msra.mxu0 0
        %2142 = vmatprep.subr.bf16.mxu0 0
        %2143 = vmatpush1.bf16.xpose.msra.mxu0 0
        %2144 = vmatprep.subr.bf16.mxu0 0
        %2145 = vmatpush1.bf16.xpose.msra.mxu0 0
        %2146 = vmatprep.subr.bf16.mxu0 0
        %2147 = vmatpush1.bf16.xpose.msra.mxu0 0
        %2148 = vmatprep.subr.bf16.mxu0 0
        %2149 = vmatpush1.bf16.xpose.msra.mxu0 0
        %2150 = vmatprep.mubr.bf16.mxu0 0
        %2151 = vmatmul.mubr.bf16.gmra.mrb[0].mxu0 %v2113
        %v2152 = vpop.f32.mrb[0].mxu0
        %v2153 = vadd.f32 0.0, %v2152
        %v2154 = vpop.f32.mrb[0].mxu0
        %v2155 = vpop.f32.mrb[0].mxu0
        %v2156 = vpop.f32.mrb[0].mxu0
        %2157 = vdwg.mxu0
        %v2158 = vsel %vm1039, %v2153, -inf
        %2159 = vmax.xlane.f32.xlu0 %v2158
        %v2160 = vpop.xlane.xlu0 %2159
        %v2161 = vsub.f32 %v2153, %v2160
        %v2162 = vmul.f32 %v2161, 1.442695
        %v2163 = vpow.pop %v2162
        %v2164 = vsel %vm1039, %v2163, 0.0
        %2165 = vadd.xlane.f32.xlu0 %v2164
        %v2166 = vpop.xlane.xlu0 %2165
        %v2167 = vrcp.pop %v2166
        %v2168 = vmul.f32 %v2163, %v2167
        %v2169 = vpack.c.bf16 %v2168, %v2168
        %2170 = vrot.lane.b32.xlu0 %v2108, 64
        %v2171 = vpop.permute.xlu0 %2170
        %v2173 = vsel %vm1039, %v2169, 0
        %v2176 = vsel %vm1105, %v2171, 0
        %2178 = vmatprep.subr.bf16.mxu0 0
        %2179 = vmatpush1.bf16.msra.mxu0 %v2176
        %2180 = vmatprep.subr.bf16.mxu0 0
        %2181 = vmatpush1.bf16.msra.mxu0 0
        %2182 = vmatprep.subr.bf16.mxu0 0
        %2183 = vmatpush1.bf16.msra.mxu0 0
        %2184 = vmatprep.subr.bf16.mxu0 0
        %2185 = vmatpush1.bf16.msra.mxu0 0
        %2186 = vmatprep.subr.bf16.mxu0 0
        %2187 = vmatpush1.bf16.msra.mxu0 0
        %2188 = vmatprep.subr.bf16.mxu0 0
        %2189 = vmatpush1.bf16.msra.mxu0 0
        %2190 = vmatprep.subr.bf16.mxu0 0
        %2191 = vmatpush1.bf16.msra.mxu0 0
        %2192 = vmatprep.subr.bf16.mxu0 0
        %2193 = vmatpush1.bf16.msra.mxu0 0
        %2194 = vmatprep.subr.bf16.mxu0 0
        %2195 = vmatpush1.bf16.msra.mxu0 0
        %2196 = vmatprep.subr.bf16.mxu0 0
        %2197 = vmatpush1.bf16.msra.mxu0 0
        %2198 = vmatprep.subr.bf16.mxu0 0
        %2199 = vmatpush1.bf16.msra.mxu0 0
        %2200 = vmatprep.subr.bf16.mxu0 0
        %2201 = vmatpush1.bf16.msra.mxu0 0
        %2202 = vmatprep.subr.bf16.mxu0 0
        %2203 = vmatpush1.bf16.msra.mxu0 0
        %2204 = vmatprep.subr.bf16.mxu0 0
        %2205 = vmatpush1.bf16.msra.mxu0 0
        %2206 = vmatprep.subr.bf16.mxu0 0
        %2207 = vmatpush1.bf16.msra.mxu0 0
        %2208 = vmatprep.subr.bf16.mxu0 0
        %2209 = vmatpush1.bf16.msra.mxu0 0
        %2210 = vmatprep.mubr.bf16.mxu0 0
        %2211 = vmatmul.mubr.bf16.gmra.mrb[0].mxu0 %v2173
        %v2212 = vpop.f32.mrb[0].mxu0
        %v2213 = vadd.f32 0.0, %v2212
        %v2214 = vpop.f32.mrb[0].mxu0
        %v2215 = vpop.f32.mrb[0].mxu0
        %v2216 = vpop.f32.mrb[0].mxu0
        %2217 = vdwg.mxu0
        %v2218 = vpack.c.bf16 %v2213, %v2213
        %v2220 = vlaneseq
        %v2221 = vshrl.u32 %v2220, 7
        %v2222 = vsub.s32 0, %v2221
        %v2223 = vrot.slane %v2105, %v2222
        %v2229 = vunpack.c.l.b16 %v2100
        %v2230 = vunpack.c.l.b16 %v2101
        %v2231 = vunpack.c.l.b16 %v2102
        %v2232 = vunpack.c.l.b16 %v2103
        %v2233 = vpack.c.b16 %v2230, %v2229
        %v2234 = vpack.c.b16 %v2232, %v2231
        %v2238 = vsel %vm916, %v2218, 0
        %2240 = vmatprep.subr.bf16.mxu0 0
        %2241 = vmatpush1.bf16.msra.mxu0 %v2233
        %2242 = vmatprep.subr.bf16.mxu0 0
        %2243 = vmatpush1.bf16.msra.mxu0 %v2234
        %2244 = vmatprep.subr.bf16.mxu0 0
        %2245 = vmatpush1.bf16.msra.mxu0 0
        %2246 = vmatprep.subr.bf16.mxu0 0
        %2247 = vmatpush1.bf16.msra.mxu0 0
        %2248 = vmatprep.subr.bf16.mxu0 0
        %2249 = vmatpush1.bf16.msra.mxu0 0
        %2250 = vmatprep.subr.bf16.mxu0 0
        %2251 = vmatpush1.bf16.msra.mxu0 0
        %2252 = vmatprep.subr.bf16.mxu0 0
        %2253 = vmatpush1.bf16.msra.mxu0 0
        %2254 = vmatprep.subr.bf16.mxu0 0
        %2255 = vmatpush1.bf16.msra.mxu0 0
        %2256 = vmatprep.subr.bf16.mxu0 0
        %2257 = vmatpush1.bf16.msra.mxu0 0
        %2258 = vmatprep.subr.bf16.mxu0 0
        %2259 = vmatpush1.bf16.msra.mxu0 0
        %2260 = vmatprep.subr.bf16.mxu0 0
        %2261 = vmatpush1.bf16.msra.mxu0 0
        %2262 = vmatprep.subr.bf16.mxu0 0
        %2263 = vmatpush1.bf16.msra.mxu0 0
        %2264 = vmatprep.subr.bf16.mxu0 0
        %2265 = vmatpush1.bf16.msra.mxu0 0
        %2266 = vmatprep.subr.bf16.mxu0 0
        %2267 = vmatpush1.bf16.msra.mxu0 0
        %2268 = vmatprep.subr.bf16.mxu0 0
        %2269 = vmatpush1.bf16.msra.mxu0 0
        %2270 = vmatprep.subr.bf16.mxu0 0
        %2271 = vmatpush1.bf16.msra.mxu0 0
        %2272 = vmatprep.mubr.bf16.mxu0 0
        %2273 = vmatmul.mubr.bf16.gmra.mrb[0].mxu0 %v2238
        %v2274 = vpop.f32.mrb[0].mxu0
        %v2275 = vadd.f32 %v2223, %v2274
        %v2276 = vpop.f32.mrb[0].mxu0
        %v2277 = vpop.f32.mrb[0].mxu0
        %v2278 = vpop.f32.mrb[0].mxu0
        %2279 = vdwg.mxu0
        %v2280 = vmul.f32 %v2030, %v2275
        %s2281 = scalar_lea.vmem %s16, 64
        %v2282 = vld [vmem:[%s2281] sm:$0xf]
        %v2283 = vld [vmem:[%s2281 + $0x4] sm:$0xf]
        %v2284 = vld [vmem:[%s2281 + $0x8] sm:$0xf]
        %v2285 = vld [vmem:[%s2281 + $0xc] sm:$0xf]
        %s2286 = scalar_lea.vmem [#allocation10], 4
        %v2287 = vld [vmem:[%s2286] sm:$0x1]
        %v2288 = vpack.c.bf16 %v2280, %v2280
        %v2290 = vlaneseq
        %v2291 = vshrl.u32 %v2290, 7
        %v2292 = vsub.s32 0, %v2291
        %v2293 = vrot.slane %v2287, %v2292
        %v2299 = vunpack.c.l.b16 %v2282
        %v2300 = vunpack.c.l.b16 %v2283
        %v2301 = vunpack.c.l.b16 %v2284
        %v2302 = vunpack.c.l.b16 %v2285
        %v2303 = vpack.c.b16 %v2300, %v2299
        %v2304 = vpack.c.b16 %v2302, %v2301
        %v2308 = vsel %vm916, %v2288, 0
        %2310 = vmatprep.subr.bf16.mxu0 0
        %2311 = vmatpush1.bf16.msra.mxu0 %v2303
        %2312 = vmatprep.subr.bf16.mxu0 0
        %2313 = vmatpush1.bf16.msra.mxu0 %v2304
        %2314 = vmatprep.subr.bf16.mxu0 0
        %2315 = vmatpush1.bf16.msra.mxu0 0
        %2316 = vmatprep.subr.bf16.mxu0 0
        %2317 = vmatpush1.bf16.msra.mxu0 0
        %2318 = vmatprep.subr.bf16.mxu0 0
        %2319 = vmatpush1.bf16.msra.mxu0 0
        %2320 = vmatprep.subr.bf16.mxu0 0
        %2321 = vmatpush1.bf16.msra.mxu0 0
        %2322 = vmatprep.subr.bf16.mxu0 0
        %2323 = vmatpush1.bf16.msra.mxu0 0
        %2324 = vmatprep.subr.bf16.mxu0 0
        %2325 = vmatpush1.bf16.msra.mxu0 0
        %2326 = vmatprep.subr.bf16.mxu0 0
        %2327 = vmatpush1.bf16.msra.mxu0 0
        %2328 = vmatprep.subr.bf16.mxu0 0
        %2329 = vmatpush1.bf16.msra.mxu0 0
        %2330 = vmatprep.subr.bf16.mxu0 0
        %2331 = vmatpush1.bf16.msra.mxu0 0
        %2332 = vmatprep.subr.bf16.mxu0 0
        %2333 = vmatpush1.bf16.msra.mxu0 0
        %2334 = vmatprep.subr.bf16.mxu0 0
        %2335 = vmatpush1.bf16.msra.mxu0 0
        %2336 = vmatprep.subr.bf16.mxu0 0
        %2337 = vmatpush1.bf16.msra.mxu0 0
        %2338 = vmatprep.subr.bf16.mxu0 0
        %2339 = vmatpush1.bf16.msra.mxu0 0
        %2340 = vmatprep.subr.bf16.mxu0 0
        %2341 = vmatpush1.bf16.msra.mxu0 0
        %2342 = vmatprep.mubr.bf16.mxu0 0
        %2343 = vmatmul.mubr.bf16.gmra.mrb[0].mxu0 %v2308
        %v2344 = vpop.f32.mrb[0].mxu0
        %v2345 = vadd.f32 %v2293, %v2344
        %v2346 = vpop.f32.mrb[0].mxu0
        %v2347 = vpop.f32.mrb[0].mxu0
        %v2348 = vpop.f32.mrb[0].mxu0
        %2349 = vdwg.mxu0
        %v2350 = vmax.f32 %v2345, 0.0
        %v2351 = vadd.f32 %v2350, %v1708
        %v2352 = vsel %vm916, %v2351, 0.0
        %2353 = vadd.xlane.f32.xlu0 %v2352
        %v2354 = vpop.xlane.xlu0 %2353
        %v2355 = vmul.f32 %v2354, %v1681
        %v2356 = vsub.f32 %v2351, %v2355
        %v2357 = vmul.f32 %v2356, %v2356
        %v2358 = vsel %vm916, %v2357, 0.0
        %2359 = vadd.xlane.f32.xlu0 %v2358
        %v2360 = vpop.xlane.xlu0 %2359
        %v2361 = vmul.f32 %v2360, %v1681
        %v2362 = vadd.f32 %v2361, 1e-05
        %v2363 = vrsqrt.pop %v2362
        %v2364 = vmul.f32 %v2356, %v2363
        %s2365 = scalar_lea.vmem [#allocation12], 2
        %v2366 = vld [vmem:[%s2365] sm:$0x1]
        %v2368 = vlaneseq
        %v2369 = vshrl.u32 %v2368, 7
        %v2370 = vsub.s32 0, %v2369
        %v2371 = vrot.slane %v2366, %v2370
        %v2373 = vmul.f32 %v2364, %v2371
        %s2374 = scalar_lea.vmem [#allocation12], 3
        %v2375 = vld [vmem:[%s2374] sm:$0x1]
        %v2377 = vlaneseq
        %v2378 = vshrl.u32 %v2377, 7
        %v2379 = vsub.s32 0, %v2378
        %v2380 = vrot.slane %v2375, %v2379
        %v2382 = vadd.f32 %v2373, %v2380
        %v2383 = vld [vmem:[%s867] sm:$0xff]
        %v2384 = vld [vmem:[%s867 + $0x8] sm:$0xff]
        %v2385 = vld [vmem:[%s14] sm:$0xf]
        %v2386 = vld [vmem:[%s14 + $0x4] sm:$0xf]
        %v2387 = vld [vmem:[%s14 + $0x8] sm:$0xf]
        %v2388 = vld [vmem:[%s14 + $0xc] sm:$0xf]
        %v2389 = vld [vmem:[#allocation9] sm:$0x1]
        %v2390 = vpack.c.bf16 %v2384, %v2383
        %v2392 = vlaneseq
        %v2393 = vshrl.u32 %v2392, 7
        %v2394 = vsub.s32 0, %v2393
        %v2395 = vrot.slane %v2389, %v2394
        %v2401 = vunpack.c.l.b16 %v2385
        %v2402 = vunpack.c.l.b16 %v2386
        %v2403 = vunpack.c.l.b16 %v2387
        %v2404 = vunpack.c.l.b16 %v2388
        %v2405 = vpack.c.b16 %v2402, %v2401
        %v2406 = vpack.c.b16 %v2404, %v2403
        %v2410 = vsel %vm916, %v2390, 0
        %2412 = vmatprep.subr.bf16.mxu0 0
        %2413 = vmatpush1.bf16.msra.mxu0 %v2405
        %2414 = vmatprep.subr.bf16.mxu0 0
        %2415 = vmatpush1.bf16.msra.mxu0 %v2406
        %2416 = vmatprep.subr.bf16.mxu0 0
        %2417 = vmatpush1.bf16.msra.mxu0 0
        %2418 = vmatprep.subr.bf16.mxu0 0
        %2419 = vmatpush1.bf16.msra.mxu0 0
        %2420 = vmatprep.subr.bf16.mxu0 0
        %2421 = vmatpush1.bf16.msra.mxu0 0
        %2422 = vmatprep.subr.bf16.mxu0 0
        %2423 = vmatpush1.bf16.msra.mxu0 0
        %2424 = vmatprep.subr.bf16.mxu0 0
        %2425 = vmatpush1.bf16.msra.mxu0 0
        %2426 = vmatprep.subr.bf16.mxu0 0
        %2427 = vmatpush1.bf16.msra.mxu0 0
        %2428 = vmatprep.subr.bf16.mxu0 0
        %2429 = vmatpush1.bf16.msra.mxu0 0
        %2430 = vmatprep.subr.bf16.mxu0 0
        %2431 = vmatpush1.bf16.msra.mxu0 0
        %2432 = vmatprep.subr.bf16.mxu0 0
        %2433 = vmatpush1.bf16.msra.mxu0 0
        %2434 = vmatprep.subr.bf16.mxu0 0
        %2435 = vmatpush1.bf16.msra.mxu0 0
        %2436 = vmatprep.subr.bf16.mxu0 0
        %2437 = vmatpush1.bf16.msra.mxu0 0
        %2438 = vmatprep.subr.bf16.mxu0 0
        %2439 = vmatpush1.bf16.msra.mxu0 0
        %2440 = vmatprep.subr.bf16.mxu0 0
        %2441 = vmatpush1.bf16.msra.mxu0 0
        %2442 = vmatprep.subr.bf16.mxu0 0
        %2443 = vmatpush1.bf16.msra.mxu0 0
        %2444 = vmatprep.mubr.bf16.mxu0 0
        %2445 = vmatmul.mubr.bf16.gmra.mrb[0].mxu0 %v2410
        %v2446 = vpop.f32.mrb[0].mxu0
        %v2447 = vadd.f32 %v2395, %v2446
        %v2448 = vpop.f32.mrb[0].mxu0
        %v2449 = vpop.f32.mrb[0].mxu0
        %v2450 = vadd.f32 %v2395, %v2449
        %v2451 = vpop.f32.mrb[0].mxu0
        %2452 = vdwg.mxu0
        %v2453 = vld [vmem:[%s872] sm:$0xff]
        %v2454 = vld [vmem:[%s872 + $0x8] sm:$0xff]
        %s2455 = scalar_lea.vmem %s16, 96
        %v2456 = vld [vmem:[%s2455] sm:$0xf]
        %v2457 = vld [vmem:[%s2455 + $0x4] sm:$0xf]
        %v2458 = vld [vmem:[%s2455 + $0x8] sm:$0xf]
        %v2459 = vld [vmem:[%s2455 + $0xc] sm:$0xf]
        %s2460 = scalar_lea.vmem [#allocation10], 6
        %v2461 = vld [vmem:[%s2460] sm:$0x1]
        %v2462 = vpack.c.bf16 %v2454, %v2453
        %v2464 = vlaneseq
        %v2465 = vshrl.u32 %v2464, 7
        %v2466 = vsub.s32 0, %v2465
        %v2467 = vrot.slane %v2461, %v2466
        %v2473 = vunpack.c.l.b16 %v2456
        %v2474 = vunpack.c.l.b16 %v2457
        %v2475 = vunpack.c.l.b16 %v2458
        %v2476 = vunpack.c.l.b16 %v2459
        %v2477 = vpack.c.b16 %v2474, %v2473
        %v2478 = vpack.c.b16 %v2476, %v2475
        %v2482 = vsel %vm916, %v2462, 0
        %2484 = vmatprep.subr.bf16.mxu0 0
        %2485 = vmatpush1.bf16.msra.mxu0 %v2477
        %2486 = vmatprep.subr.bf16.mxu0 0
        %2487 = vmatpush1.bf16.msra.mxu0 %v2478
        %2488 = vmatprep.subr.bf16.mxu0 0
        %2489 = vmatpush1.bf16.msra.mxu0 0
        %2490 = vmatprep.subr.bf16.mxu0 0
        %2491 = vmatpush1.bf16.msra.mxu0 0
        %2492 = vmatprep.subr.bf16.mxu0 0
        %2493 = vmatpush1.bf16.msra.mxu0 0
        %2494 = vmatprep.subr.bf16.mxu0 0
        %2495 = vmatpush1.bf16.msra.mxu0 0
        %2496 = vmatprep.subr.bf16.mxu0 0
        %2497 = vmatpush1.bf16.msra.mxu0 0
        %2498 = vmatprep.subr.bf16.mxu0 0
        %2499 = vmatpush1.bf16.msra.mxu0 0
        %2500 = vmatprep.subr.bf16.mxu0 0
        %2501 = vmatpush1.bf16.msra.mxu0 0
        %2502 = vmatprep.subr.bf16.mxu0 0
        %2503 = vmatpush1.bf16.msra.mxu0 0
        %2504 = vmatprep.subr.bf16.mxu0 0
        %2505 = vmatpush1.bf16.msra.mxu0 0
        %2506 = vmatprep.subr.bf16.mxu0 0
        %2507 = vmatpush1.bf16.msra.mxu0 0
        %2508 = vmatprep.subr.bf16.mxu0 0
        %2509 = vmatpush1.bf16.msra.mxu0 0
        %2510 = vmatprep.subr.bf16.mxu0 0
        %2511 = vmatpush1.bf16.msra.mxu0 0
        %2512 = vmatprep.subr.bf16.mxu0 0
        %2513 = vmatpush1.bf16.msra.mxu0 0
        %2514 = vmatprep.subr.bf16.mxu0 0
        %2515 = vmatpush1.bf16.msra.mxu0 0
        %2516 = vmatprep.mubr.bf16.mxu0 0
        %2517 = vmatmul.mubr.bf16.gmra.mrb[0].mxu0 %v2482
        %v2518 = vpop.f32.mrb[0].mxu0
        %v2519 = vadd.f32 %v2467, %v2518
        %v2520 = vpop.f32.mrb[0].mxu0
        %v2521 = vpop.f32.mrb[0].mxu0
        %v2522 = vadd.f32 %v2467, %v2521
        %v2523 = vpop.f32.mrb[0].mxu0
        %2524 = vdwg.mxu0
        %s2525 = scalar_lea.vmem %s16, 80
        %v2526 = vld [vmem:[%s2525] sm:$0xf]
        %v2527 = vld [vmem:[%s2525 + $0x4] sm:$0xf]
        %v2528 = vld [vmem:[%s2525 + $0x8] sm:$0xf]
        %v2529 = vld [vmem:[%s2525 + $0xc] sm:$0xf]
        %s2530 = scalar_lea.vmem [#allocation10], 5
        %v2531 = vld [vmem:[%s2530] sm:$0x1]
        %v2532 = vpack.c.bf16 %v2382, %v2382
        %v2534 = vlaneseq
        %v2535 = vshrl.u32 %v2534, 7
        %v2536 = vsub.s32 0, %v2535
        %v2537 = vrot.slane %v2531, %v2536
        %v2543 = vunpack.c.l.b16 %v2526
        %v2544 = vunpack.c.l.b16 %v2527
        %v2545 = vunpack.c.l.b16 %v2528
        %v2546 = vunpack.c.l.b16 %v2529
        %v2547 = vpack.c.b16 %v2544, %v2543
        %v2548 = vpack.c.b16 %v2546, %v2545
        %v2552 = vsel %vm916, %v2532, 0
        %2554 = vmatprep.subr.bf16.mxu0 0
        %2555 = vmatpush1.bf16.msra.mxu0 %v2547
        %2556 = vmatprep.subr.bf16.mxu0 0
        %2557 = vmatpush1.bf16.msra.mxu0 %v2548
        %2558 = vmatprep.subr.bf16.mxu0 0
        %2559 = vmatpush1.bf16.msra.mxu0 0
        %2560 = vmatprep.subr.bf16.mxu0 0
        %2561 = vmatpush1.bf16.msra.mxu0 0
        %2562 = vmatprep.subr.bf16.mxu0 0
        %2563 = vmatpush1.bf16.msra.mxu0 0
        %2564 = vmatprep.subr.bf16.mxu0 0
        %2565 = vmatpush1.bf16.msra.mxu0 0
        %2566 = vmatprep.subr.bf16.mxu0 0
        %2567 = vmatpush1.bf16.msra.mxu0 0
        %2568 = vmatprep.subr.bf16.mxu0 0
        %2569 = vmatpush1.bf16.msra.mxu0 0
        %2570 = vmatprep.subr.bf16.mxu0 0
        %2571 = vmatpush1.bf16.msra.mxu0 0
        %2572 = vmatprep.subr.bf16.mxu0 0
        %2573 = vmatpush1.bf16.msra.mxu0 0
        %2574 = vmatprep.subr.bf16.mxu0 0
        %2575 = vmatpush1.bf16.msra.mxu0 0
        %2576 = vmatprep.subr.bf16.mxu0 0
        %2577 = vmatpush1.bf16.msra.mxu0 0
        %2578 = vmatprep.subr.bf16.mxu0 0
        %2579 = vmatpush1.bf16.msra.mxu0 0
        %2580 = vmatprep.subr.bf16.mxu0 0
        %2581 = vmatpush1.bf16.msra.mxu0 0
        %2582 = vmatprep.subr.bf16.mxu0 0
        %2583 = vmatpush1.bf16.msra.mxu0 0
        %2584 = vmatprep.subr.bf16.mxu0 0
        %2585 = vmatpush1.bf16.msra.mxu0 0
        %2586 = vmatprep.mubr.bf16.mxu0 0
        %2587 = vmatmul.mubr.bf16.gmra.mrb[0].mxu0 %v2552
        %v2588 = vpop.f32.mrb[0].mxu0
        %v2589 = vadd.f32 %v2537, %v2588
        %v2590 = vpop.f32.mrb[0].mxu0
        %v2591 = vpop.f32.mrb[0].mxu0
        %v2592 = vpop.f32.mrb[0].mxu0
        %2593 = vdwg.mxu0
        %2595 = vrot.lane.b32.xlu0 %v1022, 64
        %v2596 = vpop.permute.xlu0 %2595
        %v2598 = vadd.f32 %v2589, %v2596
        %v2599 = vld [vmem:[%s880] sm:$0xff]
        %s2600 = scalar_lea.vmem %s16, 112
        %v2601 = vld [vmem:[%s2600] sm:$0xf]
        %v2602 = vld [vmem:[%s2600 + $0x4] sm:$0xf]
        %v2603 = vld [vmem:[%s2600 + $0x8] sm:$0xf]
        %v2604 = vld [vmem:[%s2600 + $0xc] sm:$0xf]
        %s2605 = scalar_lea.vmem [#allocation10], 7
        %v2606 = vld [vmem:[%s2605] sm:$0x1]
        %v2607 = vpack.c.bf16 %v2599, %v2599
        %v2609 = vlaneseq
        %v2610 = vshrl.u32 %v2609, 7
        %v2611 = vsub.s32 0, %v2610
        %v2612 = vrot.slane %v2606, %v2611
        %v2618 = vunpack.c.l.b16 %v2601
        %v2619 = vunpack.c.l.b16 %v2602
        %v2620 = vunpack.c.l.b16 %v2603
        %v2621 = vunpack.c.l.b16 %v2604
        %v2622 = vpack.c.b16 %v2619, %v2618
        %v2623 = vpack.c.b16 %v2621, %v2620
        %v2627 = vsel %vm916, %v2607, 0
        %2629 = vmatprep.subr.bf16.mxu0 0
        %2630 = vmatpush1.bf16.msra.mxu0 %v2622
        %2631 = vmatprep.subr.bf16.mxu0 0
        %2632 = vmatpush1.bf16.msra.mxu0 %v2623
        %2633 = vmatprep.subr.bf16.mxu0 0
        %2634 = vmatpush1.bf16.msra.mxu0 0
        %2635 = vmatprep.subr.bf16.mxu0 0
        %2636 = vmatpush1.bf16.msra.mxu0 0
        %2637 = vmatprep.subr.bf16.mxu0 0
        %2638 = vmatpush1.bf16.msra.mxu0 0
        %2639 = vmatprep.subr.bf16.mxu0 0
        %2640 = vmatpush1.bf16.msra.mxu0 0
        %2641 = vmatprep.subr.bf16.mxu0 0
        %2642 = vmatpush1.bf16.msra.mxu0 0
        %2643 = vmatprep.subr.bf16.mxu0 0
        %2644 = vmatpush1.bf16.msra.mxu0 0
        %2645 = vmatprep.subr.bf16.mxu0 0
        %2646 = vmatpush1.bf16.msra.mxu0 0
        %2647 = vmatprep.subr.bf16.mxu0 0
        %2648 = vmatpush1.bf16.msra.mxu0 0
        %2649 = vmatprep.subr.bf16.mxu0 0
        %2650 = vmatpush1.bf16.msra.mxu0 0
        %2651 = vmatprep.subr.bf16.mxu0 0
        %2652 = vmatpush1.bf16.msra.mxu0 0
        %2653 = vmatprep.subr.bf16.mxu0 0
        %2654 = vmatpush1.bf16.msra.mxu0 0
        %2655 = vmatprep.subr.bf16.mxu0 0
        %2656 = vmatpush1.bf16.msra.mxu0 0
        %2657 = vmatprep.subr.bf16.mxu0 0
        %2658 = vmatpush1.bf16.msra.mxu0 0
        %2659 = vmatprep.subr.bf16.mxu0 0
        %2660 = vmatpush1.bf16.msra.mxu0 0
        %2661 = vmatprep.mubr.bf16.mxu0 0
        %2662 = vmatmul.mubr.bf16.gmra.mrb[0].mxu0 %v2627
        %v2663 = vpop.f32.mrb[0].mxu0
        %v2664 = vadd.f32 %v2612, %v2663
        %v2665 = vpop.f32.mrb[0].mxu0
        %v2666 = vpop.f32.mrb[0].mxu0
        %v2667 = vpop.f32.mrb[0].mxu0
        %2668 = vdwg.mxu0
        %v2669 = vadd.f32 %v2447, %v2519
        %v2670 = vadd.f32 %v2450, %v2522
        %s2671 = scalar_lea.vmem %s16, 128
        %v2672 = vld [vmem:[%s2671] sm:$0xf]
        %v2673 = vld [vmem:[%s2671 + $0x4] sm:$0xf]
        %v2674 = vld [vmem:[%s2671 + $0x8] sm:$0xf]
        %v2675 = vld [vmem:[%s2671 + $0xc] sm:$0xf]
        %s2676 = scalar_lea.vmem [#allocation10], 8
        %v2677 = vld [vmem:[%s2676] sm:$0x1]
        %v2678 = vmul.f32 %v2598, 0.25
        %v2679 = vmul.f32 %v2664, 0.25
        %v2680 = vpack.c.bf16 %v2678, %v2678
        %v2681 = vpack.c.bf16 %v2670, %v2669
        %v2682 = vpack.c.bf16 %v2679, %v2679
        %v2683 = vpack.c.bf16 %v2522, %v2519
        %v2685 = vsel %vm1039, %v2682, 0
        %v2688 = vsel %vm1039, %v2683, 0
        %2690 = vmatprep.subr.bf16.mxu0 0
        %2691 = vmatpush1.bf16.xpose.msra.mxu0 %v2688
        %2692 = vmatprep.subr.bf16.mxu0 0
        %2693 = vmatpush1.bf16.xpose.msra.mxu0 0
        %2694 = vmatprep.subr.bf16.mxu0 0
        %2695 = vmatpush1.bf16.xpose.msra.mxu0 0
        %2696 = vmatprep.subr.bf16.mxu0 0
        %2697 = vmatpush1.bf16.xpose.msra.mxu0 0
        %2698 = vmatprep.subr.bf16.mxu0 0
        %2699 = vmatpush1.bf16.xpose.msra.mxu0 0
        %2700 = vmatprep.subr.bf16.mxu0 0
        %2701 = vmatpush1.bf16.xpose.msra.mxu0 0
        %2702 = vmatprep.subr.bf16.mxu0 0
        %2703 = vmatpush1.bf16.xpose.msra.mxu0 0
        %2704 = vmatprep.subr.bf16.mxu0 0
        %2705 = vmatpush1.bf16.xpose.msra.mxu0 0
        %2706 = vmatprep.subr.bf16.mxu0 0
        %2707 = vmatpush1.bf16.xpose.msra.mxu0 0
        %2708 = vmatprep.subr.bf16.mxu0 0
        %2709 = vmatpush1.bf16.xpose.msra.mxu0 0
        %2710 = vmatprep.subr.bf16.mxu0 0
        %2711 = vmatpush1.bf16.xpose.msra.mxu0 0
        %2712 = vmatprep.subr.bf16.mxu0 0
        %2713 = vmatpush1.bf16.xpose.msra.mxu0 0
        %2714 = vmatprep.subr.bf16.mxu0 0
        %2715 = vmatpush1.bf16.xpose.msra.mxu0 0
        %2716 = vmatprep.subr.bf16.mxu0 0
        %2717 = vmatpush1.bf16.xpose.msra.mxu0 0
        %2718 = vmatprep.subr.bf16.mxu0 0
        %2719 = vmatpush1.bf16.xpose.msra.mxu0 0
        %2720 = vmatprep.subr.bf16.mxu0 0
        %2721 = vmatpush1.bf16.xpose.msra.mxu0 0
        %2722 = vmatprep.mubr.bf16.mxu0 0
        %2723 = vmatmul.mubr.bf16.gmra.mrb[0].mxu0 %v2685
        %v2724 = vpop.f32.mrb[0].mxu0
        %v2725 = vadd.f32 0.0, %v2724
        %v2726 = vpop.f32.mrb[0].mxu0
        %v2727 = vpop.f32.mrb[0].mxu0
        %v2728 = vpop.f32.mrb[0].mxu0
        %2729 = vdwg.mxu0
        %v2731 = vsel %vm1039, %v2680, 0
        %v2734 = vsel %vm1039, %v2681, 0
        %2736 = vmatprep.subr.bf16.mxu0 0
        %2737 = vmatpush1.bf16.xpose.msra.mxu0 %v2734
        %2738 = vmatprep.subr.bf16.mxu0 0
        %2739 = vmatpush1.bf16.xpose.msra.mxu0 0
        %2740 = vmatprep.subr.bf16.mxu0 0
        %2741 = vmatpush1.bf16.xpose.msra.mxu0 0
        %2742 = vmatprep.subr.bf16.mxu0 0
        %2743 = vmatpush1.bf16.xpose.msra.mxu0 0
        %2744 = vmatprep.subr.bf16.mxu0 0
        %2745 = vmatpush1.bf16.xpose.msra.mxu0 0
        %2746 = vmatprep.subr.bf16.mxu0 0
        %2747 = vmatpush1.bf16.xpose.msra.mxu0 0
        %2748 = vmatprep.subr.bf16.mxu0 0
        %2749 = vmatpush1.bf16.xpose.msra.mxu0 0
        %2750 = vmatprep.subr.bf16.mxu0 0
        %2751 = vmatpush1.bf16.xpose.msra.mxu0 0
        %2752 = vmatprep.subr.bf16.mxu0 0
        %2753 = vmatpush1.bf16.xpose.msra.mxu0 0
        %2754 = vmatprep.subr.bf16.mxu0 0
        %2755 = vmatpush1.bf16.xpose.msra.mxu0 0
        %2756 = vmatprep.subr.bf16.mxu0 0
        %2757 = vmatpush1.bf16.xpose.msra.mxu0 0
        %2758 = vmatprep.subr.bf16.mxu0 0
        %2759 = vmatpush1.bf16.xpose.msra.mxu0 0
        %2760 = vmatprep.subr.bf16.mxu0 0
        %2761 = vmatpush1.bf16.xpose.msra.mxu0 0
        %2762 = vmatprep.subr.bf16.mxu0 0
        %2763 = vmatpush1.bf16.xpose.msra.mxu0 0
        %2764 = vmatprep.subr.bf16.mxu0 0
        %2765 = vmatpush1.bf16.xpose.msra.mxu0 0
        %2766 = vmatprep.subr.bf16.mxu0 0
        %2767 = vmatpush1.bf16.xpose.msra.mxu0 0
        %2768 = vmatprep.mubr.bf16.mxu0 0
        %2769 = vmatmul.mubr.bf16.gmra.mrb[0].mxu0 %v2731
        %v2770 = vpop.f32.mrb[0].mxu0
        %v2771 = vadd.f32 %v2725, %v2770
        %v2772 = vpop.f32.mrb[0].mxu0
        %v2773 = vpop.f32.mrb[0].mxu0
        %v2774 = vpop.f32.mrb[0].mxu0
        %2775 = vdwg.mxu0
        %vm2776 = vcmask 130048
        %v2777 = vsel %vm2776, %v2771, -inf
        %2778 = vmax.xlane.f32.xlu0 %v2777
        %v2779 = vpop.xlane.xlu0 %2778
        %v2780 = vsub.f32 %v2771, %v2779
        %v2781 = vmul.f32 %v2780, 1.442695
        %v2782 = vpow.pop %v2781
        %v2783 = vsel %vm2776, %v2782, 0.0
        %2784 = vadd.xlane.f32.xlu0 %v2783
        %v2785 = vpop.xlane.xlu0 %2784
        %v2786 = vrcp.pop %v2785
        %v2787 = vmul.f32 %v2782, %v2786
        %v2788 = vpack.c.bf16 %v2450, %v2447
        %v2789 = vpack.c.bf16 %v2787, %v2787
        %2791 = vrot.lane.b32.xlu0 %v2788, 96
        %v2792 = vpop.permute.xlu0 %2791
        %v2795 = vsel %vm2776, %v2789, 0
        %2797 = vmatprep.subr.bf16.mxu0 0
        %2798 = vmatpush1.bf16.msra.mxu0 %v2792
        %2799 = vmatprep.subr.bf16.mxu0 0
        %2800 = vmatpush1.bf16.msra.mxu0 0
        %2801 = vmatprep.subr.bf16.mxu0 0
        %2802 = vmatpush1.bf16.msra.mxu0 0
        %2803 = vmatprep.subr.bf16.mxu0 0
        %2804 = vmatpush1.bf16.msra.mxu0 0
        %2805 = vmatprep.subr.bf16.mxu0 0
        %2806 = vmatpush1.bf16.msra.mxu0 0
        %2807 = vmatprep.subr.bf16.mxu0 0
        %2808 = vmatpush1.bf16.msra.mxu0 0
        %2809 = vmatprep.subr.bf16.mxu0 0
        %2810 = vmatpush1.bf16.msra.mxu0 0
        %2811 = vmatprep.subr.bf16.mxu0 0
        %2812 = vmatpush1.bf16.msra.mxu0 0
        %2813 = vmatprep.subr.bf16.mxu0 0
        %2814 = vmatpush1.bf16.msra.mxu0 0
        %2815 = vmatprep.subr.bf16.mxu0 0
        %2816 = vmatpush1.bf16.msra.mxu0 0
        %2817 = vmatprep.subr.bf16.mxu0 0
        %2818 = vmatpush1.bf16.msra.mxu0 0
        %2819 = vmatprep.subr.bf16.mxu0 0
        %2820 = vmatpush1.bf16.msra.mxu0 0
        %2821 = vmatprep.subr.bf16.mxu0 0
        %2822 = vmatpush1.bf16.msra.mxu0 0
        %2823 = vmatprep.subr.bf16.mxu0 0
        %2824 = vmatpush1.bf16.msra.mxu0 0
        %2825 = vmatprep.subr.bf16.mxu0 0
        %2826 = vmatpush1.bf16.msra.mxu0 0
        %2827 = vmatprep.subr.bf16.mxu0 0
        %2828 = vmatpush1.bf16.msra.mxu0 0
        %2829 = vmatprep.mubr.bf16.mxu0 0
        %2830 = vmatmul.mubr.bf16.gmra.mrb[0].mxu0 %v2795
        %v2831 = vpop.f32.mrb[0].mxu0
        %v2832 = vadd.f32 0.0, %v2831
        %v2833 = vpop.f32.mrb[0].mxu0
        %v2834 = vpop.f32.mrb[0].mxu0
        %v2835 = vpop.f32.mrb[0].mxu0
        %2836 = vdwg.mxu0
        %v2837 = vpack.c.bf16 %v2832, %v2832
        %2839 = vrot.lane.b32.xlu0 %v2682, 120
        %v2840 = vpop.permute.xlu0 %2839
        %2842 = vrot.lane.b32.xlu0 %v2683, 120
        %v2843 = vpop.permute.xlu0 %2842
        %v2845 = vsel %vm1039, %v2840, 0
        %v2848 = vsel %vm1039, %v2843, 0
        %2850 = vmatprep.subr.bf16.mxu0 0
        %2851 = vmatpush1.bf16.xpose.msra.mxu0 %v2848
        %2852 = vmatprep.subr.bf16.mxu0 0
        %2853 = vmatpush1.bf16.xpose.msra.mxu0 0
        %2854 = vmatprep.subr.bf16.mxu0 0
        %2855 = vmatpush1.bf16.xpose.msra.mxu0 0
        %2856 = vmatprep.subr.bf16.mxu0 0
        %2857 = vmatpush1.bf16.xpose.msra.mxu0 0
        %2858 = vmatprep.subr.bf16.mxu0 0
        %2859 = vmatpush1.bf16.xpose.msra.mxu0 0
        %2860 = vmatprep.subr.bf16.mxu0 0
        %2861 = vmatpush1.bf16.xpose.msra.mxu0 0
        %2862 = vmatprep.subr.bf16.mxu0 0
        %2863 = vmatpush1.bf16.xpose.msra.mxu0 0
        %2864 = vmatprep.subr.bf16.mxu0 0
        %2865 = vmatpush1.bf16.xpose.msra.mxu0 0
        %2866 = vmatprep.subr.bf16.mxu0 0
        %2867 = vmatpush1.bf16.xpose.msra.mxu0 0
        %2868 = vmatprep.subr.bf16.mxu0 0
        %2869 = vmatpush1.bf16.xpose.msra.mxu0 0
        %2870 = vmatprep.subr.bf16.mxu0 0
        %2871 = vmatpush1.bf16.xpose.msra.mxu0 0
        %2872 = vmatprep.subr.bf16.mxu0 0
        %2873 = vmatpush1.bf16.xpose.msra.mxu0 0
        %2874 = vmatprep.subr.bf16.mxu0 0
        %2875 = vmatpush1.bf16.xpose.msra.mxu0 0
        %2876 = vmatprep.subr.bf16.mxu0 0
        %2877 = vmatpush1.bf16.xpose.msra.mxu0 0
        %2878 = vmatprep.subr.bf16.mxu0 0
        %2879 = vmatpush1.bf16.xpose.msra.mxu0 0
        %2880 = vmatprep.subr.bf16.mxu0 0
        %2881 = vmatpush1.bf16.xpose.msra.mxu0 0
        %2882 = vmatprep.mubr.bf16.mxu0 0
        %2883 = vmatmul.mubr.bf16.gmra.mrb[0].mxu0 %v2845
        %v2884 = vpop.f32.mrb[0].mxu0
        %v2885 = vadd.f32 0.0, %v2884
        %v2886 = vpop.f32.mrb[0].mxu0
        %v2887 = vpop.f32.mrb[0].mxu0
        %v2888 = vpop.f32.mrb[0].mxu0
        %2889 = vdwg.mxu0
        %2891 = vrot.lane.b32.xlu0 %v2680, 120
        %v2892 = vpop.permute.xlu0 %2891
        %2894 = vrot.lane.b32.xlu0 %v2681, 120
        %v2895 = vpop.permute.xlu0 %2894
        %v2897 = vsel %vm1039, %v2892, 0
        %v2900 = vsel %vm1039, %v2895, 0
        %2902 = vmatprep.subr.bf16.mxu0 0
        %2903 = vmatpush1.bf16.xpose.msra.mxu0 %v2900
        %2904 = vmatprep.subr.bf16.mxu0 0
        %2905 = vmatpush1.bf16.xpose.msra.mxu0 0
        %2906 = vmatprep.subr.bf16.mxu0 0
        %2907 = vmatpush1.bf16.xpose.msra.mxu0 0
        %2908 = vmatprep.subr.bf16.mxu0 0
        %2909 = vmatpush1.bf16.xpose.msra.mxu0 0
        %2910 = vmatprep.subr.bf16.mxu0 0
        %2911 = vmatpush1.bf16.xpose.msra.mxu0 0
        %2912 = vmatprep.subr.bf16.mxu0 0
        %2913 = vmatpush1.bf16.xpose.msra.mxu0 0
        %2914 = vmatprep.subr.bf16.mxu0 0
        %2915 = vmatpush1.bf16.xpose.msra.mxu0 0
        %2916 = vmatprep.subr.bf16.mxu0 0
        %2917 = vmatpush1.bf16.xpose.msra.mxu0 0
        %2918 = vmatprep.subr.bf16.mxu0 0
        %2919 = vmatpush1.bf16.xpose.msra.mxu0 0
        %2920 = vmatprep.subr.bf16.mxu0 0
        %2921 = vmatpush1.bf16.xpose.msra.mxu0 0
        %2922 = vmatprep.subr.bf16.mxu0 0
        %2923 = vmatpush1.bf16.xpose.msra.mxu0 0
        %2924 = vmatprep.subr.bf16.mxu0 0
        %2925 = vmatpush1.bf16.xpose.msra.mxu0 0
        %2926 = vmatprep.subr.bf16.mxu0 0
        %2927 = vmatpush1.bf16.xpose.msra.mxu0 0
        %2928 = vmatprep.subr.bf16.mxu0 0
        %2929 = vmatpush1.bf16.xpose.msra.mxu0 0
        %2930 = vmatprep.subr.bf16.mxu0 0
        %2931 = vmatpush1.bf16.xpose.msra.mxu0 0
        %2932 = vmatprep.subr.bf16.mxu0 0
        %2933 = vmatpush1.bf16.xpose.msra.mxu0 0
        %2934 = vmatprep.mubr.bf16.mxu0 0
        %2935 = vmatmul.mubr.bf16.gmra.mrb[0].mxu0 %v2897
        %v2936 = vpop.f32.mrb[0].mxu0
        %v2937 = vadd.f32 %v2885, %v2936
        %v2938 = vpop.f32.mrb[0].mxu0
        %v2939 = vpop.f32.mrb[0].mxu0
        %v2940 = vpop.f32.mrb[0].mxu0
        %2941 = vdwg.mxu0
        %v2942 = vsel %vm2776, %v2937, -inf
        %2943 = vmax.xlane.f32.xlu0 %v2942
        %v2944 = vpop.xlane.xlu0 %2943
        %v2945 = vsub.f32 %v2937, %v2944
        %v2946 = vmul.f32 %v2945, 1.442695
        %v2947 = vpow.pop %v2946
        %v2948 = vsel %vm2776, %v2947, 0.0
        %2949 = vadd.xlane.f32.xlu0 %v2948
        %v2950 = vpop.xlane.xlu0 %2949
        %v2951 = vrcp.pop %v2950
        %v2952 = vmul.f32 %v2947, %v2951
        %v2953 = vpack.c.bf16 %v2952, %v2952
        %2954 = vrot.lane.b32.xlu0 %v2788, 88
        %v2955 = vpop.permute.xlu0 %2954
        %v2958 = vsel %vm2776, %v2953, 0
        %2960 = vmatprep.subr.bf16.mxu0 0
        %2961 = vmatpush1.bf16.msra.mxu0 %v2955
        %2962 = vmatprep.subr.bf16.mxu0 0
        %2963 = vmatpush1.bf16.msra.mxu0 0
        %2964 = vmatprep.subr.bf16.mxu0 0
        %2965 = vmatpush1.bf16.msra.mxu0 0
        %2966 = vmatprep.subr.bf16.mxu0 0
        %2967 = vmatpush1.bf16.msra.mxu0 0
        %2968 = vmatprep.subr.bf16.mxu0 0
        %2969 = vmatpush1.bf16.msra.mxu0 0
        %2970 = vmatprep.subr.bf16.mxu0 0
        %2971 = vmatpush1.bf16.msra.mxu0 0
        %2972 = vmatprep.subr.bf16.mxu0 0
        %2973 = vmatpush1.bf16.msra.mxu0 0
        %2974 = vmatprep.subr.bf16.mxu0 0
        %2975 = vmatpush1.bf16.msra.mxu0 0
        %2976 = vmatprep.subr.bf16.mxu0 0
        %2977 = vmatpush1.bf16.msra.mxu0 0
        %2978 = vmatprep.subr.bf16.mxu0 0
        %2979 = vmatpush1.bf16.msra.mxu0 0
        %2980 = vmatprep.subr.bf16.mxu0 0
        %2981 = vmatpush1.bf16.msra.mxu0 0
        %2982 = vmatprep.subr.bf16.mxu0 0
        %2983 = vmatpush1.bf16.msra.mxu0 0
        %2984 = vmatprep.subr.bf16.mxu0 0
        %2985 = vmatpush1.bf16.msra.mxu0 0
        %2986 = vmatprep.subr.bf16.mxu0 0
        %2987 = vmatpush1.bf16.msra.mxu0 0
        %2988 = vmatprep.subr.bf16.mxu0 0
        %2989 = vmatpush1.bf16.msra.mxu0 0
        %2990 = vmatprep.subr.bf16.mxu0 0
        %2991 = vmatpush1.bf16.msra.mxu0 0
        %2992 = vmatprep.mubr.bf16.mxu0 0
        %2993 = vmatmul.mubr.bf16.gmra.mrb[0].mxu0 %v2958
        %v2994 = vpop.f32.mrb[0].mxu0
        %v2995 = vadd.f32 0.0, %v2994
        %v2996 = vpop.f32.mrb[0].mxu0
        %v2997 = vpop.f32.mrb[0].mxu0
        %v2998 = vpop.f32.mrb[0].mxu0
        %2999 = vdwg.mxu0
        %v3000 = vpack.c.bf16 %v2995, %v2995
        %v3002 = vsel %vm1039, %v3000, 0
        %v3005 = vsel %vm1105, %v2673, 0
        %3007 = vmatprep.subr.bf16.mxu0 0
        %3008 = vmatpush1.bf16.msra.mxu0 %v3005
        %3009 = vmatprep.subr.bf16.mxu0 0
        %3010 = vmatpush1.bf16.msra.mxu0 0
        %3011 = vmatprep.subr.bf16.mxu0 0
        %3012 = vmatpush1.bf16.msra.mxu0 0
        %3013 = vmatprep.subr.bf16.mxu0 0
        %3014 = vmatpush1.bf16.msra.mxu0 0
        %3015 = vmatprep.subr.bf16.mxu0 0
        %3016 = vmatpush1.bf16.msra.mxu0 0
        %3017 = vmatprep.subr.bf16.mxu0 0
        %3018 = vmatpush1.bf16.msra.mxu0 0
        %3019 = vmatprep.subr.bf16.mxu0 0
        %3020 = vmatpush1.bf16.msra.mxu0 0
        %3021 = vmatprep.subr.bf16.mxu0 0
        %3022 = vmatpush1.bf16.msra.mxu0 0
        %3023 = vmatprep.subr.bf16.mxu0 0
        %3024 = vmatpush1.bf16.msra.mxu0 0
        %3025 = vmatprep.subr.bf16.mxu0 0
        %3026 = vmatpush1.bf16.msra.mxu0 0
        %3027 = vmatprep.subr.bf16.mxu0 0
        %3028 = vmatpush1.bf16.msra.mxu0 0
        %3029 = vmatprep.subr.bf16.mxu0 0
        %3030 = vmatpush1.bf16.msra.mxu0 0
        %3031 = vmatprep.subr.bf16.mxu0 0
        %3032 = vmatpush1.bf16.msra.mxu0 0
        %3033 = vmatprep.subr.bf16.mxu0 0
        %3034 = vmatpush1.bf16.msra.mxu0 0
        %3035 = vmatprep.subr.bf16.mxu0 0
        %3036 = vmatpush1.bf16.msra.mxu0 0
        %3037 = vmatprep.subr.bf16.mxu0 0
        %3038 = vmatpush1.bf16.msra.mxu0 0
        %3039 = vmatprep.mubr.bf16.mxu0 0
        %3040 = vmatmul.mubr.bf16.gmra.mrb[0].mxu0 %v3002
        %v3041 = vpop.f32.mrb[0].mxu0
        %v3042 = vadd.f32 0.0, %v3041
        %v3043 = vpop.f32.mrb[0].mxu0
        %v3044 = vpop.f32.mrb[0].mxu0
        %v3045 = vpop.f32.mrb[0].mxu0
        %3046 = vdwg.mxu0
        %v3048 = vsel %vm1039, %v2837, 0
        %v3051 = vsel %vm1105, %v2672, 0
        %3053 = vmatprep.subr.bf16.mxu0 0
        %3054 = vmatpush1.bf16.msra.mxu0 %v3051
        %3055 = vmatprep.subr.bf16.mxu0 0
        %3056 = vmatpush1.bf16.msra.mxu0 0
        %3057 = vmatprep.subr.bf16.mxu0 0
        %3058 = vmatpush1.bf16.msra.mxu0 0
        %3059 = vmatprep.subr.bf16.mxu0 0
        %3060 = vmatpush1.bf16.msra.mxu0 0
        %3061 = vmatprep.subr.bf16.mxu0 0
        %3062 = vmatpush1.bf16.msra.mxu0 0
        %3063 = vmatprep.subr.bf16.mxu0 0
        %3064 = vmatpush1.bf16.msra.mxu0 0
        %3065 = vmatprep.subr.bf16.mxu0 0
        %3066 = vmatpush1.bf16.msra.mxu0 0
        %3067 = vmatprep.subr.bf16.mxu0 0
        %3068 = vmatpush1.bf16.msra.mxu0 0
        %3069 = vmatprep.subr.bf16.mxu0 0
        %3070 = vmatpush1.bf16.msra.mxu0 0
        %3071 = vmatprep.subr.bf16.mxu0 0
        %3072 = vmatpush1.bf16.msra.mxu0 0
        %3073 = vmatprep.subr.bf16.mxu0 0
        %3074 = vmatpush1.bf16.msra.mxu0 0
        %3075 = vmatprep.subr.bf16.mxu0 0
        %3076 = vmatpush1.bf16.msra.mxu0 0
        %3077 = vmatprep.subr.bf16.mxu0 0
        %3078 = vmatpush1.bf16.msra.mxu0 0
        %3079 = vmatprep.subr.bf16.mxu0 0
        %3080 = vmatpush1.bf16.msra.mxu0 0
        %3081 = vmatprep.subr.bf16.mxu0 0
        %3082 = vmatpush1.bf16.msra.mxu0 0
        %3083 = vmatprep.subr.bf16.mxu0 0
        %3084 = vmatpush1.bf16.msra.mxu0 0
        %3085 = vmatprep.mubr.bf16.mxu0 0
        %3086 = vmatmul.mubr.bf16.gmra.mrb[0].mxu0 %v3048
        %v3087 = vpop.f32.mrb[0].mxu0
        %v3088 = vadd.f32 %v3042, %v3087
        %v3089 = vpop.f32.mrb[0].mxu0
        %v3090 = vpop.f32.mrb[0].mxu0
        %v3091 = vpop.f32.mrb[0].mxu0
        %3092 = vdwg.mxu0
        %3093 = vrot.lane.b32.xlu0 %v2682, 112
        %v3094 = vpop.permute.xlu0 %3093
        %3095 = vrot.lane.b32.xlu0 %v2683, 112
        %v3096 = vpop.permute.xlu0 %3095
        %v3098 = vsel %vm1039, %v3094, 0
        %v3101 = vsel %vm1039, %v3096, 0
        %3103 = vmatprep.subr.bf16.mxu0 0
        %3104 = vmatpush1.bf16.xpose.msra.mxu0 %v3101
        %3105 = vmatprep.subr.bf16.mxu0 0
        %3106 = vmatpush1.bf16.xpose.msra.mxu0 0
        %3107 = vmatprep.subr.bf16.mxu0 0
        %3108 = vmatpush1.bf16.xpose.msra.mxu0 0
        %3109 = vmatprep.subr.bf16.mxu0 0
        %3110 = vmatpush1.bf16.xpose.msra.mxu0 0
        %3111 = vmatprep.subr.bf16.mxu0 0
        %3112 = vmatpush1.bf16.xpose.msra.mxu0 0
        %3113 = vmatprep.subr.bf16.mxu0 0
        %3114 = vmatpush1.bf16.xpose.msra.mxu0 0
        %3115 = vmatprep.subr.bf16.mxu0 0
        %3116 = vmatpush1.bf16.xpose.msra.mxu0 0
        %3117 = vmatprep.subr.bf16.mxu0 0
        %3118 = vmatpush1.bf16.xpose.msra.mxu0 0
        %3119 = vmatprep.subr.bf16.mxu0 0
        %3120 = vmatpush1.bf16.xpose.msra.mxu0 0
        %3121 = vmatprep.subr.bf16.mxu0 0
        %3122 = vmatpush1.bf16.xpose.msra.mxu0 0
        %3123 = vmatprep.subr.bf16.mxu0 0
        %3124 = vmatpush1.bf16.xpose.msra.mxu0 0
        %3125 = vmatprep.subr.bf16.mxu0 0
        %3126 = vmatpush1.bf16.xpose.msra.mxu0 0
        %3127 = vmatprep.subr.bf16.mxu0 0
        %3128 = vmatpush1.bf16.xpose.msra.mxu0 0
        %3129 = vmatprep.subr.bf16.mxu0 0
        %3130 = vmatpush1.bf16.xpose.msra.mxu0 0
        %3131 = vmatprep.subr.bf16.mxu0 0
        %3132 = vmatpush1.bf16.xpose.msra.mxu0 0
        %3133 = vmatprep.subr.bf16.mxu0 0
        %3134 = vmatpush1.bf16.xpose.msra.mxu0 0
        %3135 = vmatprep.mubr.bf16.mxu0 0
        %3136 = vmatmul.mubr.bf16.gmra.mrb[0].mxu0 %v3098
        %v3137 = vpop.f32.mrb[0].mxu0
        %v3138 = vadd.f32 0.0, %v3137
        %v3139 = vpop.f32.mrb[0].mxu0
        %v3140 = vpop.f32.mrb[0].mxu0
        %v3141 = vpop.f32.mrb[0].mxu0
        %3142 = vdwg.mxu0
        %3143 = vrot.lane.b32.xlu0 %v2680, 112
        %v3144 = vpop.permute.xlu0 %3143
        %3145 = vrot.lane.b32.xlu0 %v2681, 112
        %v3146 = vpop.permute.xlu0 %3145
        %v3148 = vsel %vm1039, %v3144, 0
        %v3151 = vsel %vm1039, %v3146, 0
        %3153 = vmatprep.subr.bf16.mxu0 0
        %3154 = vmatpush1.bf16.xpose.msra.mxu0 %v3151
        %3155 = vmatprep.subr.bf16.mxu0 0
        %3156 = vmatpush1.bf16.xpose.msra.mxu0 0
        %3157 = vmatprep.subr.bf16.mxu0 0
        %3158 = vmatpush1.bf16.xpose.msra.mxu0 0
        %3159 = vmatprep.subr.bf16.mxu0 0
        %3160 = vmatpush1.bf16.xpose.msra.mxu0 0
        %3161 = vmatprep.subr.bf16.mxu0 0
        %3162 = vmatpush1.bf16.xpose.msra.mxu0 0
        %3163 = vmatprep.subr.bf16.mxu0 0
        %3164 = vmatpush1.bf16.xpose.msra.mxu0 0
        %3165 = vmatprep.subr.bf16.mxu0 0
        %3166 = vmatpush1.bf16.xpose.msra.mxu0 0
        %3167 = vmatprep.subr.bf16.mxu0 0
        %3168 = vmatpush1.bf16.xpose.msra.mxu0 0
        %3169 = vmatprep.subr.bf16.mxu0 0
        %3170 = vmatpush1.bf16.xpose.msra.mxu0 0
        %3171 = vmatprep.subr.bf16.mxu0 0
        %3172 = vmatpush1.bf16.xpose.msra.mxu0 0
        %3173 = vmatprep.subr.bf16.mxu0 0
        %3174 = vmatpush1.bf16.xpose.msra.mxu0 0
        %3175 = vmatprep.subr.bf16.mxu0 0
        %3176 = vmatpush1.bf16.xpose.msra.mxu0 0
        %3177 = vmatprep.subr.bf16.mxu0 0
        %3178 = vmatpush1.bf16.xpose.msra.mxu0 0
        %3179 = vmatprep.subr.bf16.mxu0 0
        %3180 = vmatpush1.bf16.xpose.msra.mxu0 0
        %3181 = vmatprep.subr.bf16.mxu0 0
        %3182 = vmatpush1.bf16.xpose.msra.mxu0 0
        %3183 = vmatprep.subr.bf16.mxu0 0
        %3184 = vmatpush1.bf16.xpose.msra.mxu0 0
        %3185 = vmatprep.mubr.bf16.mxu0 0
        %3186 = vmatmul.mubr.bf16.gmra.mrb[0].mxu0 %v3148
        %v3187 = vpop.f32.mrb[0].mxu0
        %v3188 = vadd.f32 %v3138, %v3187
        %v3189 = vpop.f32.mrb[0].mxu0
        %v3190 = vpop.f32.mrb[0].mxu0
        %v3191 = vpop.f32.mrb[0].mxu0
        %3192 = vdwg.mxu0
        %v3193 = vsel %vm2776, %v3188, -inf
        %3194 = vmax.xlane.f32.xlu0 %v3193
        %v3195 = vpop.xlane.xlu0 %3194
        %v3196 = vsub.f32 %v3188, %v3195
        %v3197 = vmul.f32 %v3196, 1.442695
        %v3198 = vpow.pop %v3197
        %v3199 = vsel %vm2776, %v3198, 0.0
        %3200 = vadd.xlane.f32.xlu0 %v3199
        %v3201 = vpop.xlane.xlu0 %3200
        %v3202 = vrcp.pop %v3201
        %v3203 = vmul.f32 %v3198, %v3202
        %v3204 = vpack.c.bf16 %v3203, %v3203
        %3205 = vrot.lane.b32.xlu0 %v2788, 80
        %v3206 = vpop.permute.xlu0 %3205
        %v3209 = vsel %vm2776, %v3204, 0
        %3211 = vmatprep.subr.bf16.mxu0 0
        %3212 = vmatpush1.bf16.msra.mxu0 %v3206
        %3213 = vmatprep.subr.bf16.mxu0 0
        %3214 = vmatpush1.bf16.msra.mxu0 0
        %3215 = vmatprep.subr.bf16.mxu0 0
        %3216 = vmatpush1.bf16.msra.mxu0 0
        %3217 = vmatprep.subr.bf16.mxu0 0
        %3218 = vmatpush1.bf16.msra.mxu0 0
        %3219 = vmatprep.subr.bf16.mxu0 0
        %3220 = vmatpush1.bf16.msra.mxu0 0
        %3221 = vmatprep.subr.bf16.mxu0 0
        %3222 = vmatpush1.bf16.msra.mxu0 0
        %3223 = vmatprep.subr.bf16.mxu0 0
        %3224 = vmatpush1.bf16.msra.mxu0 0
        %3225 = vmatprep.subr.bf16.mxu0 0
        %3226 = vmatpush1.bf16.msra.mxu0 0
        %3227 = vmatprep.subr.bf16.mxu0 0
        %3228 = vmatpush1.bf16.msra.mxu0 0
        %3229 = vmatprep.subr.bf16.mxu0 0
        %3230 = vmatpush1.bf16.msra.mxu0 0
        %3231 = vmatprep.subr.bf16.mxu0 0
        %3232 = vmatpush1.bf16.msra.mxu0 0
        %3233 = vmatprep.subr.bf16.mxu0 0
        %3234 = vmatpush1.bf16.msra.mxu0 0
        %3235 = vmatprep.subr.bf16.mxu0 0
        %3236 = vmatpush1.bf16.msra.mxu0 0
        %3237 = vmatprep.subr.bf16.mxu0 0
        %3238 = vmatpush1.bf16.msra.mxu0 0
        %3239 = vmatprep.subr.bf16.mxu0 0
        %3240 = vmatpush1.bf16.msra.mxu0 0
        %3241 = vmatprep.subr.bf16.mxu0 0
        %3242 = vmatpush1.bf16.msra.mxu0 0
        %3243 = vmatprep.mubr.bf16.mxu0 0
        %3244 = vmatmul.mubr.bf16.gmra.mrb[0].mxu0 %v3209
        %v3245 = vpop.f32.mrb[0].mxu0
        %v3246 = vadd.f32 0.0, %v3245
        %v3247 = vpop.f32.mrb[0].mxu0
        %v3248 = vpop.f32.mrb[0].mxu0
        %v3249 = vpop.f32.mrb[0].mxu0
        %3250 = vdwg.mxu0
        %v3251 = vpack.c.bf16 %v3246, %v3246
        %v3253 = vsel %vm1039, %v3251, 0
        %v3256 = vsel %vm1105, %v2674, 0
        %3258 = vmatprep.subr.bf16.mxu0 0
        %3259 = vmatpush1.bf16.msra.mxu0 %v3256
        %3260 = vmatprep.subr.bf16.mxu0 0
        %3261 = vmatpush1.bf16.msra.mxu0 0
        %3262 = vmatprep.subr.bf16.mxu0 0
        %3263 = vmatpush1.bf16.msra.mxu0 0
        %3264 = vmatprep.subr.bf16.mxu0 0
        %3265 = vmatpush1.bf16.msra.mxu0 0
        %3266 = vmatprep.subr.bf16.mxu0 0
        %3267 = vmatpush1.bf16.msra.mxu0 0
        %3268 = vmatprep.subr.bf16.mxu0 0
        %3269 = vmatpush1.bf16.msra.mxu0 0
        %3270 = vmatprep.subr.bf16.mxu0 0
        %3271 = vmatpush1.bf16.msra.mxu0 0
        %3272 = vmatprep.subr.bf16.mxu0 0
        %3273 = vmatpush1.bf16.msra.mxu0 0
        %3274 = vmatprep.subr.bf16.mxu0 0
        %3275 = vmatpush1.bf16.msra.mxu0 0
        %3276 = vmatprep.subr.bf16.mxu0 0
        %3277 = vmatpush1.bf16.msra.mxu0 0
        %3278 = vmatprep.subr.bf16.mxu0 0
        %3279 = vmatpush1.bf16.msra.mxu0 0
        %3280 = vmatprep.subr.bf16.mxu0 0
        %3281 = vmatpush1.bf16.msra.mxu0 0
        %3282 = vmatprep.subr.bf16.mxu0 0
        %3283 = vmatpush1.bf16.msra.mxu0 0
        %3284 = vmatprep.subr.bf16.mxu0 0
        %3285 = vmatpush1.bf16.msra.mxu0 0
        %3286 = vmatprep.subr.bf16.mxu0 0
        %3287 = vmatpush1.bf16.msra.mxu0 0
        %3288 = vmatprep.subr.bf16.mxu0 0
        %3289 = vmatpush1.bf16.msra.mxu0 0
        %3290 = vmatprep.mubr.bf16.mxu0 0
        %3291 = vmatmul.mubr.bf16.gmra.mrb[0].mxu0 %v3253
        %v3292 = vpop.f32.mrb[0].mxu0
        %v3293 = vadd.f32 0.0, %v3292
        %v3294 = vpop.f32.mrb[0].mxu0
        %v3295 = vpop.f32.mrb[0].mxu0
        %v3296 = vpop.f32.mrb[0].mxu0
        %3297 = vdwg.mxu0
        %v3298 = vadd.f32 %v3088, %v3293
        %3299 = vrot.lane.b32.xlu0 %v2682, 104
        %v3300 = vpop.permute.xlu0 %3299
        %3301 = vrot.lane.b32.xlu0 %v2683, 104
        %v3302 = vpop.permute.xlu0 %3301
        %v3304 = vsel %vm1039, %v3300, 0
        %v3307 = vsel %vm1039, %v3302, 0
        %3309 = vmatprep.subr.bf16.mxu0 0
        %3310 = vmatpush1.bf16.xpose.msra.mxu0 %v3307
        %3311 = vmatprep.subr.bf16.mxu0 0
        %3312 = vmatpush1.bf16.xpose.msra.mxu0 0
        %3313 = vmatprep.subr.bf16.mxu0 0
        %3314 = vmatpush1.bf16.xpose.msra.mxu0 0
        %3315 = vmatprep.subr.bf16.mxu0 0
        %3316 = vmatpush1.bf16.xpose.msra.mxu0 0
        %3317 = vmatprep.subr.bf16.mxu0 0
        %3318 = vmatpush1.bf16.xpose.msra.mxu0 0
        %3319 = vmatprep.subr.bf16.mxu0 0
        %3320 = vmatpush1.bf16.xpose.msra.mxu0 0
        %3321 = vmatprep.subr.bf16.mxu0 0
        %3322 = vmatpush1.bf16.xpose.msra.mxu0 0
        %3323 = vmatprep.subr.bf16.mxu0 0
        %3324 = vmatpush1.bf16.xpose.msra.mxu0 0
        %3325 = vmatprep.subr.bf16.mxu0 0
        %3326 = vmatpush1.bf16.xpose.msra.mxu0 0
        %3327 = vmatprep.subr.bf16.mxu0 0
        %3328 = vmatpush1.bf16.xpose.msra.mxu0 0
        %3329 = vmatprep.subr.bf16.mxu0 0
        %3330 = vmatpush1.bf16.xpose.msra.mxu0 0
        %3331 = vmatprep.subr.bf16.mxu0 0
        %3332 = vmatpush1.bf16.xpose.msra.mxu0 0
        %3333 = vmatprep.subr.bf16.mxu0 0
        %3334 = vmatpush1.bf16.xpose.msra.mxu0 0
        %3335 = vmatprep.subr.bf16.mxu0 0
        %3336 = vmatpush1.bf16.xpose.msra.mxu0 0
        %3337 = vmatprep.subr.bf16.mxu0 0
        %3338 = vmatpush1.bf16.xpose.msra.mxu0 0
        %3339 = vmatprep.subr.bf16.mxu0 0
        %3340 = vmatpush1.bf16.xpose.msra.mxu0 0
        %3341 = vmatprep.mubr.bf16.mxu0 0
        %3342 = vmatmul.mubr.bf16.gmra.mrb[0].mxu0 %v3304
        %v3343 = vpop.f32.mrb[0].mxu0
        %v3344 = vadd.f32 0.0, %v3343
        %v3345 = vpop.f32.mrb[0].mxu0
        %v3346 = vpop.f32.mrb[0].mxu0
        %v3347 = vpop.f32.mrb[0].mxu0
        %3348 = vdwg.mxu0
        %3349 = vrot.lane.b32.xlu0 %v2680, 104
        %v3350 = vpop.permute.xlu0 %3349
        %3351 = vrot.lane.b32.xlu0 %v2681, 104
        %v3352 = vpop.permute.xlu0 %3351
        %v3354 = vsel %vm1039, %v3350, 0
        %v3357 = vsel %vm1039, %v3352, 0
        %3359 = vmatprep.subr.bf16.mxu0 0
        %3360 = vmatpush1.bf16.xpose.msra.mxu0 %v3357
        %3361 = vmatprep.subr.bf16.mxu0 0
        %3362 = vmatpush1.bf16.xpose.msra.mxu0 0
        %3363 = vmatprep.subr.bf16.mxu0 0
        %3364 = vmatpush1.bf16.xpose.msra.mxu0 0
        %3365 = vmatprep.subr.bf16.mxu0 0
        %3366 = vmatpush1.bf16.xpose.msra.mxu0 0
        %3367 = vmatprep.subr.bf16.mxu0 0
        %3368 = vmatpush1.bf16.xpose.msra.mxu0 0
        %3369 = vmatprep.subr.bf16.mxu0 0
        %3370 = vmatpush1.bf16.xpose.msra.mxu0 0
        %3371 = vmatprep.subr.bf16.mxu0 0
        %3372 = vmatpush1.bf16.xpose.msra.mxu0 0
        %3373 = vmatprep.subr.bf16.mxu0 0
        %3374 = vmatpush1.bf16.xpose.msra.mxu0 0
        %3375 = vmatprep.subr.bf16.mxu0 0
        %3376 = vmatpush1.bf16.xpose.msra.mxu0 0
        %3377 = vmatprep.subr.bf16.mxu0 0
        %3378 = vmatpush1.bf16.xpose.msra.mxu0 0
        %3379 = vmatprep.subr.bf16.mxu0 0
        %3380 = vmatpush1.bf16.xpose.msra.mxu0 0
        %3381 = vmatprep.subr.bf16.mxu0 0
        %3382 = vmatpush1.bf16.xpose.msra.mxu0 0
        %3383 = vmatprep.subr.bf16.mxu0 0
        %3384 = vmatpush1.bf16.xpose.msra.mxu0 0
        %3385 = vmatprep.subr.bf16.mxu0 0
        %3386 = vmatpush1.bf16.xpose.msra.mxu0 0
        %3387 = vmatprep.subr.bf16.mxu0 0
        %3388 = vmatpush1.bf16.xpose.msra.mxu0 0
        %3389 = vmatprep.subr.bf16.mxu0 0
        %3390 = vmatpush1.bf16.xpose.msra.mxu0 0
        %3391 = vmatprep.mubr.bf16.mxu0 0
        %3392 = vmatmul.mubr.bf16.gmra.mrb[0].mxu0 %v3354
        %v3393 = vpop.f32.mrb[0].mxu0
        %v3394 = vadd.f32 %v3344, %v3393
        %v3395 = vpop.f32.mrb[0].mxu0
        %v3396 = vpop.f32.mrb[0].mxu0
        %v3397 = vpop.f32.mrb[0].mxu0
        %3398 = vdwg.mxu0
        %v3399 = vsel %vm2776, %v3394, -inf
        %3400 = vmax.xlane.f32.xlu0 %v3399
        %v3401 = vpop.xlane.xlu0 %3400
        %v3402 = vsub.f32 %v3394, %v3401
        %v3403 = vmul.f32 %v3402, 1.442695
        %v3404 = vpow.pop %v3403
        %v3405 = vsel %vm2776, %v3404, 0.0
        %3406 = vadd.xlane.f32.xlu0 %v3405
        %v3407 = vpop.xlane.xlu0 %3406
        %v3408 = vrcp.pop %v3407
        %v3409 = vmul.f32 %v3404, %v3408
        %v3410 = vpack.c.bf16 %v3409, %v3409
        %3411 = vrot.lane.b32.xlu0 %v2788, 72
        %v3412 = vpop.permute.xlu0 %3411
        %v3415 = vsel %vm2776, %v3410, 0
        %3417 = vmatprep.subr.bf16.mxu0 0
        %3418 = vmatpush1.bf16.msra.mxu0 %v3412
        %3419 = vmatprep.subr.bf16.mxu0 0
        %3420 = vmatpush1.bf16.msra.mxu0 0
        %3421 = vmatprep.subr.bf16.mxu0 0
        %3422 = vmatpush1.bf16.msra.mxu0 0
        %3423 = vmatprep.subr.bf16.mxu0 0
        %3424 = vmatpush1.bf16.msra.mxu0 0
        %3425 = vmatprep.subr.bf16.mxu0 0
        %3426 = vmatpush1.bf16.msra.mxu0 0
        %3427 = vmatprep.subr.bf16.mxu0 0
        %3428 = vmatpush1.bf16.msra.mxu0 0
        %3429 = vmatprep.subr.bf16.mxu0 0
        %3430 = vmatpush1.bf16.msra.mxu0 0
        %3431 = vmatprep.subr.bf16.mxu0 0
        %3432 = vmatpush1.bf16.msra.mxu0 0
        %3433 = vmatprep.subr.bf16.mxu0 0
        %3434 = vmatpush1.bf16.msra.mxu0 0
        %3435 = vmatprep.subr.bf16.mxu0 0
        %3436 = vmatpush1.bf16.msra.mxu0 0
        %3437 = vmatprep.subr.bf16.mxu0 0
        %3438 = vmatpush1.bf16.msra.mxu0 0
        %3439 = vmatprep.subr.bf16.mxu0 0
        %3440 = vmatpush1.bf16.msra.mxu0 0
        %3441 = vmatprep.subr.bf16.mxu0 0
        %3442 = vmatpush1.bf16.msra.mxu0 0
        %3443 = vmatprep.subr.bf16.mxu0 0
        %3444 = vmatpush1.bf16.msra.mxu0 0
        %3445 = vmatprep.subr.bf16.mxu0 0
        %3446 = vmatpush1.bf16.msra.mxu0 0
        %3447 = vmatprep.subr.bf16.mxu0 0
        %3448 = vmatpush1.bf16.msra.mxu0 0
        %3449 = vmatprep.mubr.bf16.mxu0 0
        %3450 = vmatmul.mubr.bf16.gmra.mrb[0].mxu0 %v3415
        %v3451 = vpop.f32.mrb[0].mxu0
        %v3452 = vadd.f32 0.0, %v3451
        %v3453 = vpop.f32.mrb[0].mxu0
        %v3454 = vpop.f32.mrb[0].mxu0
        %v3455 = vpop.f32.mrb[0].mxu0
        %3456 = vdwg.mxu0
        %v3457 = vpack.c.bf16 %v3452, %v3452
        %v3459 = vsel %vm1039, %v3457, 0
        %v3462 = vsel %vm1105, %v2675, 0
        %3464 = vmatprep.subr.bf16.mxu0 0
        %3465 = vmatpush1.bf16.msra.mxu0 %v3462
        %3466 = vmatprep.subr.bf16.mxu0 0
        %3467 = vmatpush1.bf16.msra.mxu0 0
        %3468 = vmatprep.subr.bf16.mxu0 0
        %3469 = vmatpush1.bf16.msra.mxu0 0
        %3470 = vmatprep.subr.bf16.mxu0 0
        %3471 = vmatpush1.bf16.msra.mxu0 0
        %3472 = vmatprep.subr.bf16.mxu0 0
        %3473 = vmatpush1.bf16.msra.mxu0 0
        %3474 = vmatprep.subr.bf16.mxu0 0
        %3475 = vmatpush1.bf16.msra.mxu0 0
        %3476 = vmatprep.subr.bf16.mxu0 0
        %3477 = vmatpush1.bf16.msra.mxu0 0
        %3478 = vmatprep.subr.bf16.mxu0 0
        %3479 = vmatpush1.bf16.msra.mxu0 0
        %3480 = vmatprep.subr.bf16.mxu0 0
        %3481 = vmatpush1.bf16.msra.mxu0 0
        %3482 = vmatprep.subr.bf16.mxu0 0
        %3483 = vmatpush1.bf16.msra.mxu0 0
        %3484 = vmatprep.subr.bf16.mxu0 0
        %3485 = vmatpush1.bf16.msra.mxu0 0
        %3486 = vmatprep.subr.bf16.mxu0 0
        %3487 = vmatpush1.bf16.msra.mxu0 0
        %3488 = vmatprep.subr.bf16.mxu0 0
        %3489 = vmatpush1.bf16.msra.mxu0 0
        %3490 = vmatprep.subr.bf16.mxu0 0
        %3491 = vmatpush1.bf16.msra.mxu0 0
        %3492 = vmatprep.subr.bf16.mxu0 0
        %3493 = vmatpush1.bf16.msra.mxu0 0
        %3494 = vmatprep.subr.bf16.mxu0 0
        %3495 = vmatpush1.bf16.msra.mxu0 0
        %3496 = vmatprep.mubr.bf16.mxu0 0
        %3497 = vmatmul.mubr.bf16.gmra.mrb[0].mxu0 %v3459
        %v3498 = vpop.f32.mrb[0].mxu0
        %v3499 = vadd.f32 0.0, %v3498
        %v3500 = vpop.f32.mrb[0].mxu0
        %v3501 = vpop.f32.mrb[0].mxu0
        %v3502 = vpop.f32.mrb[0].mxu0
        %3503 = vdwg.mxu0
        %v3504 = vadd.f32 %v3298, %v3499
        %v3506 = vlaneseq
        %v3507 = vshrl.u32 %v3506, 7
        %v3508 = vsub.s32 0, %v3507
        %v3509 = vrot.slane %v2677, %v3508
        %v3511 = vadd.f32 %v3504, %v3509
        %v3512 = vadd.f32 %v2382, %v3511
        %v3513 = vsel %vm916, %v3512, 0.0
        %3514 = vadd.xlane.f32.xlu0 %v3513
        %v3515 = vpop.xlane.xlu0 %3514
        %v3516 = vmul.f32 %v3515, %v1681
        %v3517 = vsub.f32 %v3512, %v3516
        %v3518 = vmul.f32 %v3517, %v3517
        %v3519 = vsel %vm916, %v3518, 0.0
        %3520 = vadd.xlane.f32.xlu0 %v3519
        %v3521 = vpop.xlane.xlu0 %3520
        %v3522 = vmul.f32 %v3521, %v1681
        %v3523 = vadd.f32 %v3522, 1e-05
        %v3524 = vrsqrt.pop %v3523
        %v3525 = vmul.f32 %v3517, %v3524
        %s3526 = scalar_lea.vmem [#allocation12], 4
        %v3527 = vld [vmem:[%s3526] sm:$0x1]
        %v3529 = vlaneseq
        %v3530 = vshrl.u32 %v3529, 7
        %v3531 = vsub.s32 0, %v3530
        %v3532 = vrot.slane %v3527, %v3531
        %v3534 = vmul.f32 %v3525, %v3532
        %s3535 = scalar_lea.vmem [#allocation12], 5
        %v3536 = vld [vmem:[%s3535] sm:$0x1]
        %v3538 = vlaneseq
        %v3539 = vshrl.u32 %v3538, 7
        %v3540 = vsub.s32 0, %v3539
        %v3541 = vrot.slane %v3536, %v3540
        %v3543 = vadd.f32 %v3534, %v3541
        %v3544 = vld [vmem:[%s19] sm:$0xf]
        %v3545 = vld [vmem:[%s19 + $0x4] sm:$0xf]
        %v3546 = vld [vmem:[%s19 + $0x8] sm:$0xf]
        %v3547 = vld [vmem:[%s19 + $0xc] sm:$0xf]
        %v3548 = vld [vmem:[%s20] sm:$0x1]
        %v3549 = vpack.c.bf16 %v3543, %v3543
        %v3551 = vlaneseq
        %v3552 = vshrl.u32 %v3551, 7
        %v3553 = vsub.s32 0, %v3552
        %v3554 = vrot.slane %v3548, %v3553
        %v3560 = vunpack.c.l.b16 %v3544
        %v3561 = vunpack.c.l.b16 %v3545
        %v3562 = vunpack.c.l.b16 %v3546
        %v3563 = vunpack.c.l.b16 %v3547
        %v3564 = vpack.c.b16 %v3561, %v3560
        %v3565 = vpack.c.b16 %v3563, %v3562
        %v3569 = vsel %vm916, %v3549, 0
        %3571 = vmatprep.subr.bf16.mxu0 0
        %3572 = vmatpush1.bf16.msra.mxu0 %v3564
        %3573 = vmatprep.subr.bf16.mxu0 0
        %3574 = vmatpush1.bf16.msra.mxu0 %v3565
        %3575 = vmatprep.subr.bf16.mxu0 0
        %3576 = vmatpush1.bf16.msra.mxu0 0
        %3577 = vmatprep.subr.bf16.mxu0 0
        %3578 = vmatpush1.bf16.msra.mxu0 0
        %3579 = vmatprep.subr.bf16.mxu0 0
        %3580 = vmatpush1.bf16.msra.mxu0 0
        %3581 = vmatprep.subr.bf16.mxu0 0
        %3582 = vmatpush1.bf16.msra.mxu0 0
        %3583 = vmatprep.subr.bf16.mxu0 0
        %3584 = vmatpush1.bf16.msra.mxu0 0
        %3585 = vmatprep.subr.bf16.mxu0 0
        %3586 = vmatpush1.bf16.msra.mxu0 0
        %3587 = vmatprep.subr.bf16.mxu0 0
        %3588 = vmatpush1.bf16.msra.mxu0 0
        %3589 = vmatprep.subr.bf16.mxu0 0
        %3590 = vmatpush1.bf16.msra.mxu0 0
        %3591 = vmatprep.subr.bf16.mxu0 0
        %3592 = vmatpush1.bf16.msra.mxu0 0
        %3593 = vmatprep.subr.bf16.mxu0 0
        %3594 = vmatpush1.bf16.msra.mxu0 0
        %3595 = vmatprep.subr.bf16.mxu0 0
        %3596 = vmatpush1.bf16.msra.mxu0 0
        %3597 = vmatprep.subr.bf16.mxu0 0
        %3598 = vmatpush1.bf16.msra.mxu0 0
        %3599 = vmatprep.subr.bf16.mxu0 0
        %3600 = vmatpush1.bf16.msra.mxu0 0
        %3601 = vmatprep.subr.bf16.mxu0 0
        %3602 = vmatpush1.bf16.msra.mxu0 0
        %3603 = vmatprep.mubr.bf16.mxu0 0
        %3604 = vmatmul.mubr.bf16.gmra.mrb[0].mxu0 %v3569
        %v3605 = vpop.f32.mrb[0].mxu0
        %v3606 = vadd.f32 %v3554, %v3605
        %v3607 = vpop.f32.mrb[0].mxu0
        %v3608 = vpop.f32.mrb[0].mxu0
        %v3609 = vpop.f32.mrb[0].mxu0
        %3610 = vdwg.mxu0
        %v3611 = vmax.f32 %v3606, 0.0
        %v3612 = vld [vmem:[%s21] sm:$0xf]
        %v3613 = vld [vmem:[%s21 + $0x4] sm:$0xf]
        %v3614 = vld [vmem:[%s21 + $0x8] sm:$0xf]
        %v3615 = vld [vmem:[%s21 + $0xc] sm:$0xf]
        %v3616 = vld [vmem:[%s21 + $0x10] sm:$0xf]
        %v3617 = vld [vmem:[%s21 + $0x14] sm:$0xf]
        %v3618 = vld [vmem:[%s21 + $0x18] sm:$0xf]
        %v3619 = vld [vmem:[%s21 + $0x1c] sm:$0xf]
        %v3620 = vld [vmem:[%s22] sm:$0x1]
        %v3621 = vpack.c.bf16 %v3611, %v3611
        %v3623 = vlaneseq
        %v3624 = vshrl.u32 %v3623, 7
        %v3625 = vsub.s32 0, %v3624
        %v3626 = vrot.slane %v3620, %v3625
        %v3636 = vunpack.c.l.b16 %v3612
        %v3637 = vunpack.c.l.b16 %v3613
        %v3638 = vunpack.c.l.b16 %v3614
        %v3639 = vunpack.c.l.b16 %v3615
        %v3640 = vunpack.c.l.b16 %v3616
        %v3641 = vunpack.c.l.b16 %v3617
        %v3642 = vunpack.c.l.b16 %v3618
        %v3643 = vunpack.c.l.b16 %v3619
        %v3644 = vpack.c.b16 %v3637, %v3636
        %v3645 = vpack.c.b16 %v3639, %v3638
        %v3646 = vpack.c.b16 %v3641, %v3640
        %v3647 = vpack.c.b16 %v3643, %v3642
        %vm3652 = vcmask 523264
        %v3654 = vsel %vm3652, %v3621, 0
        %3656 = vmatprep.subr.bf16.mxu0 0
        %3657 = vmatpush1.bf16.msra.mxu0 %v3644
        %3658 = vmatprep.subr.bf16.mxu0 0
        %3659 = vmatpush1.bf16.msra.mxu0 %v3645
        %3660 = vmatprep.subr.bf16.mxu0 0
        %3661 = vmatpush1.bf16.msra.mxu0 %v3646
        %3662 = vmatprep.subr.bf16.mxu0 0
        %3663 = vmatpush1.bf16.msra.mxu0 %v3647
        %3664 = vmatprep.subr.bf16.mxu0 0
        %3665 = vmatpush1.bf16.msra.mxu0 0
        %3666 = vmatprep.subr.bf16.mxu0 0
        %3667 = vmatpush1.bf16.msra.mxu0 0
        %3668 = vmatprep.subr.bf16.mxu0 0
        %3669 = vmatpush1.bf16.msra.mxu0 0
        %3670 = vmatprep.subr.bf16.mxu0 0
        %3671 = vmatpush1.bf16.msra.mxu0 0
        %3672 = vmatprep.subr.bf16.mxu0 0
        %3673 = vmatpush1.bf16.msra.mxu0 0
        %3674 = vmatprep.subr.bf16.mxu0 0
        %3675 = vmatpush1.bf16.msra.mxu0 0
        %3676 = vmatprep.subr.bf16.mxu0 0
        %3677 = vmatpush1.bf16.msra.mxu0 0
        %3678 = vmatprep.subr.bf16.mxu0 0
        %3679 = vmatpush1.bf16.msra.mxu0 0
        %3680 = vmatprep.subr.bf16.mxu0 0
        %3681 = vmatpush1.bf16.msra.mxu0 0
        %3682 = vmatprep.subr.bf16.mxu0 0
        %3683 = vmatpush1.bf16.msra.mxu0 0
        %3684 = vmatprep.subr.bf16.mxu0 0
        %3685 = vmatpush1.bf16.msra.mxu0 0
        %3686 = vmatprep.subr.bf16.mxu0 0
        %3687 = vmatpush1.bf16.msra.mxu0 0
        %3688 = vmatprep.mubr.bf16.mxu0 0
        %3689 = vmatmul.mubr.bf16.gmra.mrb[0].mxu0 %v3654
        %v3690 = vpop.f32.mrb[0].mxu0
        %v3691 = vadd.f32 %v3626, %v3690
        %v3692 = vpop.f32.mrb[0].mxu0
        %v3693 = vpop.f32.mrb[0].mxu0
        %v3694 = vpop.f32.mrb[0].mxu0
        %3695 = vdwg.mxu0
        %v3696 = vadd.f32 %v3543, %v3691
        %v3697 = vsel %vm916, %v3696, 0.0
        %3698 = vadd.xlane.f32.xlu0 %v3697
        %v3699 = vpop.xlane.xlu0 %3698
        %v3700 = vmul.f32 %v3699, %v1681
        %v3701 = vsub.f32 %v3696, %v3700
        %v3702 = vmul.f32 %v3701, %v3701
        %v3703 = vsel %vm916, %v3702, 0.0
        %3704 = vadd.xlane.f32.xlu0 %v3703
        %v3705 = vpop.xlane.xlu0 %3704
        %v3706 = vmul.f32 %v3705, %v1681
        %v3707 = vadd.f32 %v3706, 1e-05
        %v3708 = vrsqrt.pop %v3707
        %v3709 = vmul.f32 %v3701, %v3708
        %s3710 = scalar_lea.vmem [#allocation12], 6
        %v3711 = vld [vmem:[%s3710] sm:$0x1]
        %v3713 = vlaneseq
        %v3714 = vshrl.u32 %v3713, 7
        %v3715 = vsub.s32 0, %v3714
        %v3716 = vrot.slane %v3711, %v3715
        %v3718 = vmul.f32 %v3709, %v3716
        %s3719 = scalar_lea.vmem [#allocation12], 7
        %v3720 = vld [vmem:[%s3719] sm:$0x1]
        %v3722 = vlaneseq
        %v3723 = vshrl.u32 %v3722, 7
        %v3724 = vsub.s32 0, %v3723
        %v3725 = vrot.slane %v3720, %v3724
        %v3727 = vadd.f32 %v3718, %v3725
        %3728 = vst.msk [vmem:[%s888] sm:$0xff] %vm916, %v3727
        %p3729 = scmp.lt.s32.totalorder %s38, 1
        %s3730 = scalar_select %p3729, %s38, 1
        %s3731 = smul.addr %s3730, 8
        %s3732 = scalar_lea.vmem %s23, %s3731
        // Predicated region
        $region141: #{transformer_decoder_first_layer.1} parent=111 // pred_check
          %p3733 = pneg %p569
        $region142: #{transformer_decoder_first_layer.1} parent=111 // pred_check_branch
          %3735 = sbr.rel (%p3733) target = $region144
        $region143: #{transformer_decoder_first_layer.1} parent=111 // pred_region
          _
        $region144: #{transformer_decoder_first_layer.1} parent=111 // pred_fallthru
          _
      $region112: #{transformer_decoder_first_layer.1} parent=5 // pred_fallthru
        _
      %p3736 = scmp.le.s32.totalorder 2, %s33
      // Predicated region
      $region145: #{transformer_decoder_first_layer.1} parent=5 // pred_check
        %p3737 = pneg %p3736
      $region146: #{transformer_decoder_first_layer.1} parent=5 // pred_check_branch
        %3739 = sbr.rel (%p3737) target = $region148
      $region147: #{transformer_decoder_first_layer.1} parent=5 // pred_region
        %s3740 = ssub.s32 %s33, 2
        // Predicated region
        $region149: #{transformer_decoder_first_layer.1} parent=147 // pred_check
          %p3741 = pneg %p575
        $region150: #{transformer_decoder_first_layer.1} parent=147 // pred_check_branch
          %3743 = sbr.rel (%p3741) target = $region152
        $region151: #{transformer_decoder_first_layer.1} parent=147 // pred_region
          %p3744 = scmp.lt.s32.totalorder %s39, 1
          %s3745 = scalar_select %p3744, %s39, 1
          %s3746 = smul.addr %s3745, 8
          %s3747 = scalar_lea.vmem %s23, %s3746
        $region152: #{transformer_decoder_first_layer.1} parent=147 // pred_fallthru
          _
      $region148: #{transformer_decoder_first_layer.1} parent=5 // pred_fallthru
        _
    $region6: #{transformer_decoder_first_layer.1} parent=1 // loop_footer
      %s37 = sadd.s32 1, %s33
    $region7: #{transformer_decoder_first_layer.1} parent=1 // loop_footer_branch
      %32 = sbr.rel target = $region3
    $region8: #{transformer_decoder_first_layer.1} parent=1 // loop_exit
      _
    %3748 = vsyncpa [#allocation3], 1
    %s3749 = scalar_lea.sflag [#allocation3], 1
    %3750 = vsyncpa %s3749, 1
    %3751 = vsyncpa [#allocation5], 1
    %3752 = vsyncpa [#allocation8], 1
    %3753 = vsyncpa [#allocation11], 1

</llo_original>
